<compile_context>
chip_gen: v7x
topology: tpu7x:2x2x1
jax: 0.10.0
libtpu: 0.0.40
codegen_flags: <defaults>
</compile_context>

<pallas_src>
import math
from functools import partial

import jax
import jax.numpy as jnp
from jax import lax
from jax.experimental import pallas as pl
from jax.experimental.pallas import tpu as pltpu

LANE = 128


def _round_up(x, m):
    return (x + m - 1) // m * m


def _pick_tile(n, candidates):
    for t in candidates:
        if n % t == 0:
            return t
    return n  # unreachable when n is a multiple of 128 and 128 is a candidate


def _chip_kind():
    try:
        return jax.devices()[0].device_kind.lower()
    except Exception:
        return ""


# ---------------------------------------------------------------------------
# Kernel 1: Conv3d (one wide im2col contraction) + fused [K|V|Q] projection
# ---------------------------------------------------------------------------
def _conv_qkv_kernel(patch_ref, wc_ref, bc_ref, wqkv_ref, bqkv_ref, qkv_ref):
    # patch_ref : (TQ1, Kc)   bf16     wc_ref   : (Kc, Cp)   bf16
    # bc_ref    : (1, Cp)     f32      wqkv_ref : (Cp, 3*Cp) bf16
    # bqkv_ref  : (1, 3*Cp)   f32      qkv_ref  : (TQ1, 3*Cp) bf16
    y = jnp.dot(patch_ref[...], wc_ref[...],
                preferred_element_type=jnp.float32) + bc_ref[...]
    y = y.astype(jnp.bfloat16)
    cp = wc_ref.shape[1]
    # Split the fused projection over Cp-wide column groups so the live f32
    # block stays at (TQ1, Cp) instead of (TQ1, 3*Cp) (less vreg spill).
    for g in range(3):
        lo, hi = g * cp, (g + 1) * cp
        r = jnp.dot(y, wqkv_ref[:, lo:hi],
                    preferred_element_type=jnp.float32) + bqkv_ref[:, lo:hi]
        qkv_ref[:, lo:hi] = r.astype(qkv_ref.dtype)


# ---------------------------------------------------------------------------
# Kernel 2: flash attention (online softmax) + output projection
# ---------------------------------------------------------------------------
def _flash_attn_kernel(q_ref, kv_ref, wo_ref, bo_ref, out_ref,
                       m_sc, l_sc, acc_sc, *, n_valid, tk, exp_dtype):
    ki = pl.program_id(2)

    @pl.when(ki == 0)
    def _():
        m_sc[...] = jnp.full(m_sc.shape, -jnp.inf, dtype=m_sc.dtype)
        l_sc[...] = jnp.zeros(l_sc.shape, dtype=l_sc.dtype)
        acc_sc[...] = jnp.zeros(acc_sc.shape, dtype=acc_sc.dtype)

    # K and V arrive as one contiguous (TK, 2*Cp) slab (single fetch per step).
    cp = kv_ref.shape[-1] // 2
    k = kv_ref[:, :cp]
    v = kv_ref[:, cp:]

    # logits; 1/sqrt(d_k) already folded into the Q projection columns.
    s = lax.dot_general(q_ref[...], k, (((1,), (1,)), ((), ())),
                        preferred_element_type=jnp.float32)          # (TQ, TK)
    if n_valid is not None:  # mask zero-padded key positions (trace-time branch)
        col = ki * tk + lax.broadcasted_iota(jnp.int32, s.shape, 1)
        s = jnp.where(col < n_valid, s, -jnp.inf)

    m_prev = m_sc[...]
    m_new = jnp.maximum(m_prev, jnp.max(s, axis=-1, keepdims=True))
    alpha = jnp.exp(m_prev - m_new)
    # exp in bf16 on chips with bf16 EUP/VPU (v6e/v7x); f32 otherwise.
    p = jnp.exp((s - m_new).astype(exp_dtype))
    l_sc[...] = alpha * l_sc[...] + jnp.sum(p.astype(jnp.float32),
                                            axis=-1, keepdims=True)
    acc_sc[...] = alpha * acc_sc[...] + jnp.dot(
        p.astype(jnp.bfloat16), v, preferred_element_type=jnp.float32)
    m_sc[...] = m_new

    @pl.when(ki == pl.num_programs(2) - 1)
    def _():
        # TODO(synk): nn.Dropout(p=0.1) inside the attention is identity in
        # eval mode; omitted (kernel is inference-only).
        o = acc_sc[...] / l_sc[...]          # exact normalize (accuracy headroom)
        o = jnp.dot(o.astype(jnp.bfloat16), wo_ref[...],
                    preferred_element_type=jnp.float32) + bo_ref[...]
        out_ref[...] = o.astype(out_ref.dtype)


# ---------------------------------------------------------------------------
# Wrapper: layout plumbing (channels-last, lane padding, im2col, weight fusion)
# ---------------------------------------------------------------------------
def position_attention_forward(x, params, K=3):
    """x: (bs, C, H, W, D) float32 (PyTorch NC-spatial layout). Returns (bs, N, C)."""
    bs, C, H, W, D = x.shape
    # TODO(synk): even kernel_size requires PyTorch-style asymmetric SAME padding.
    assert K % 2 == 1
    pad = (K - 1) // 2
    N = H * W * D
    K3 = K * K * K
    Cp = _round_up(C, LANE)            # lane-dense channel axis
    Kc = _round_up(K3 * C, LANE)       # im2col contraction axis padded as a WHOLE
    Np = _round_up(N, LANE)            # sequence padded for tiling (keys masked)
    f32, bf16 = jnp.float32, jnp.bfloat16

    kind = _chip_kind()
    softmax_bf16 = any(g in kind for g in ("v6", "v7"))      # bf16 EUP/VPU chips
    big_vmem = any(g in kind for g in ("v5", "v6"))          # 128-MiB-VMEM chips
    vmem_limit = (64 if big_vmem else 32) * 1024 * 1024

    def pad_mat(w):                              # (C, C) -> (Cp, Cp)
        return jnp.pad(w, ((0, Cp - C), (0, Cp - C)))

    def pad_vec(b):                              # (C,) -> (Cp,)
        return jnp.pad(b, (0, Cp - C))

    # channels-last + SAME spatial padding + im2col patches (unpadded C per tap;
    # only the whole contraction axis is padded up to Kc).
    # TODO(synk): for large volumes, avoid materializing the K^3-blown-up im2col
    # tensor in HBM: DMA a haloed x slab per grid step (memory_space=pl.ANY +
    # make_async_copy) and fold the K^3 taps in-kernel.
    x_cl = jnp.transpose(x, (0, 2, 3, 4, 1))                       # (bs,H,W,D,C)
    xp = jnp.pad(x_cl, ((0, 0), (pad, pad), (pad, pad), (pad, pad), (0, 0)))
    taps = [lax.slice(xp, (0, kh, kw, kd, 0), (bs, kh + H, kw + W, kd + D, C))
            for kh in range(K) for kw in range(K) for kd in range(K)]
    patches = jnp.stack(taps, axis=-2).reshape(bs, N, K3 * C)
    patches = jnp.pad(patches,
                      ((0, 0), (0, Np - N), (0, Kc - K3 * C))).astype(bf16)

    # weight re-layout (host-side, one time)
    wc = jnp.transpose(params["conv_w"], (2, 3, 4, 1, 0)).reshape(K3 * C, C)
    wc = jnp.pad(wc, ((0, Kc - K3 * C), (0, Cp - C))).astype(bf16)   # (Kc, Cp)
    bc = pad_vec(params["conv_b"]).reshape(1, Cp).astype(f32)

    scale = 1.0 / math.sqrt(C)                   # d_k = d_model = C
    # [K | V | Q] ordering so K,V occupy one contiguous 2*Cp slab for kernel 2.
    wqkv = jnp.concatenate([pad_mat(params["wk"].T),
                            pad_mat(params["wv"].T),
                            pad_mat(params["wq"].T * scale)], axis=1).astype(bf16)
    bqkv = jnp.concatenate([pad_vec(params["bk"]),
                            pad_vec(params["bv"]),
                            pad_vec(params["bq"] * scale)]).reshape(1, 3 * Cp)
    bqkv = bqkv.astype(f32)
    wo = pad_mat(params["wo"].T).astype(bf16)
    bo = pad_vec(params["bo"]).reshape(1, Cp).astype(f32)

    # Tiles: kernel-1 tile kept small-ish for vreg pressure; kernel-2 tiles as
    # big as divides Np (cuts per-step overhead and K/V HBM re-reads).
    TQ1 = _pick_tile(Np, (256, 128))
    TQ2 = _pick_tile(Np, (1024, 512, 256, 128))
    TK = _pick_tile(Np, (1024, 512, 256, 128))
    nq1, nq2, nk = Np // TQ1, Np // TQ2, Np // TK

    # ---- kernel 1: conv + fused [K|V|Q] projection ---------------------------
    qkv = pl.pallas_call(
        _conv_qkv_kernel,
        out_shape=jax.ShapeDtypeStruct((bs, Np, 3 * Cp), bf16),
        grid=(bs, nq1),
        in_specs=[
            pl.BlockSpec((pl.Squeezed(), TQ1, Kc), lambda b, q: (b, q, 0)),
            pl.BlockSpec((Kc, Cp), lambda b, q: (0, 0)),
            pl.BlockSpec((1, Cp), lambda b, q: (0, 0)),
            pl.BlockSpec((Cp, 3 * Cp), lambda b, q: (0, 0)),
            pl.BlockSpec((1, 3 * Cp), lambda b, q: (0, 0)),
        ],
        out_specs=pl.BlockSpec((pl.Squeezed(), TQ1, 3 * Cp),
                               lambda b, q: (b, q, 0)),
        compiler_params=pltpu.CompilerParams(
            dimension_semantics=("parallel", "parallel"),
            vmem_limit_bytes=vmem_limit),
    )(patches, wc, bc, wqkv, bqkv)

    # ---- kernel 2: flash attention + output projection -----------------------
    kernel2 = partial(_flash_attn_kernel,
                      n_valid=(N if Np != N else None),
                      tk=TK,
                      exp_dtype=(bf16 if softmax_bf16 else f32))
    out_p = pl.pallas_call(
        kernel2,
        out_shape=jax.ShapeDtypeStruct((bs, Np, Cp), bf16),
        grid=(bs, nq2, nk),
        in_specs=[
            # Q: channel block index 2 -> offset 2*Cp in the [K|V|Q] layout.
            pl.BlockSpec((pl.Squeezed(), TQ2, Cp), lambda b, q, k: (b, q, 2)),
            # K|V: one contiguous (TK, 2*Cp) slab at channel offset 0.
            pl.BlockSpec((pl.Squeezed(), TK, 2 * Cp), lambda b, q, k: (b, k, 0)),
            pl.BlockSpec((Cp, Cp), lambda b, q, k: (0, 0)),                 # Wo
            pl.BlockSpec((1, Cp), lambda b, q, k: (0, 0)),                  # bo
        ],
        out_specs=pl.BlockSpec((pl.Squeezed(), TQ2, Cp),
                               lambda b, q, k: (b, q, 0)),
        scratch_shapes=[pltpu.VMEM((TQ2, 1), f32),
                        pltpu.VMEM((TQ2, 1), f32),
                        pltpu.VMEM((TQ2, Cp), f32)],
        compiler_params=pltpu.CompilerParams(
            dimension_semantics=("parallel", "parallel", "arbitrary"),
            vmem_limit_bytes=vmem_limit),
    )(qkv, qkv, wo, bo)

    # slice off sequence/channel padding (API returns (bs, N, C) f32 like torch)
    return out_p[:, :N, :C].astype(f32)


def init_params(key, d_model, K):
    C = d_model
    ks = jax.random.split(key, 10)
    s = 0.05
    return {
        "conv_w": s * jax.random.normal(ks[0], (C, C, K, K, K), jnp.float32),
        "conv_b": s * jax.random.normal(ks[1], (C,), jnp.float32),
        "wq": s * jax.random.normal(ks[2], (C, C), jnp.float32),
        "bq": s * jax.random.normal(ks[3], (C,), jnp.float32),
        "wk": s * jax.random.normal(ks[4], (C, C), jnp.float32),
        "bk": s * jax.random.normal(ks[5], (C,), jnp.float32),
        "wv": s * jax.random.normal(ks[6], (C, C), jnp.float32),
        "bv": s * jax.random.normal(ks[7], (C,), jnp.float32),
        "wo": s * jax.random.normal(ks[8], (C, C), jnp.float32),
        "bo": s * jax.random.normal(ks[9], (C,), jnp.float32),
    }


def ref_forward(x, params):
    """Pure-JAX reference mirroring the PyTorch forward (eval mode)."""
    bs, C, H, W, D = x.shape
    hp = lax.Precision.HIGHEST
    y = lax.conv_general_dilated(
        x, params["conv_w"], window_strides=(1, 1, 1), padding="SAME",
        dimension_numbers=("NCDHW", "OIDHW", "NCDHW"), precision=hp)
    y = y + params["conv_b"][None, :, None, None, None]
    y = y.reshape(bs, C, -1).transpose(0, 2, 1)                    # (bs, N, C)
    q = jnp.einsum("bnc,dc->bnd", y, params["wq"], precision=hp) + params["bq"]
    k = jnp.einsum("bnc,dc->bnd", y, params["wk"], precision=hp) + params["bk"]
    v = jnp.einsum("bnc,dc->bnd", y, params["wv"], precision=hp) + params["bv"]
    att = jax.nn.softmax(
        jnp.einsum("bnd,bmd->bnm", q, k, precision=hp) / math.sqrt(C), axis=-1)
    o = jnp.einsum("bnm,bmd->bnd", att, v, precision=hp)
    return jnp.einsum("bnd,ed->bne", o, params["wo"], precision=hp) + params["bo"]


if __name__ == "__main__":
    bs, d_model, H, W, D, K = 2, 32, 4, 4, 8, 3
    key = jax.random.PRNGKey(0)
    kx, kp = jax.random.split(key)
    x = jax.random.normal(kx, (bs, d_model, H, W, D), jnp.float32)
    params = init_params(kp, d_model, K)

    fwd = jax.jit(partial(position_attention_forward, K=K))
    out = jax.block_until_ready(fwd(x, params))

    assert out.shape == (bs, H * W * D, d_model)
    ref = ref_forward(x, params)
    err = float(jnp.max(jnp.abs(out - ref)))
    assert jnp.allclose(out, ref, atol=2e-2, rtol=2e-2), f"max abs err {err}"
    print("KERNEL_OK")
</pallas_src>

<mosaic_0001>
module attributes {stable_mosaic.version = 11 : i64} {
  func.func @_flash_attn_kernel(%arg0: i32, %arg1: i32, %arg2: i32, %arg3: memref<1x128x128xbf16, #tpu.memory_space<vmem>>, %arg4: memref<1x128x256xbf16, #tpu.memory_space<vmem>>, %arg5: memref<128x128xbf16, #tpu.memory_space<vmem>>, %arg6: memref<1x128xf32, #tpu.memory_space<vmem>>, %arg7: memref<1x128x128xbf16, #tpu.memory_space<vmem>>, %arg8: memref<128x1xf32, #tpu.memory_space<vmem>>, %arg9: memref<128x1xf32, #tpu.memory_space<vmem>>, %arg10: memref<128x128xf32, #tpu.memory_space<vmem>>) attributes {dimension_semantics = [#tpu.dimension_semantics<parallel>, #tpu.dimension_semantics<parallel>, #tpu.dimension_semantics<arbitrary>], iteration_bounds = array<i64: 2, 1, 1>, scalar_prefetch = 0 : i64, scratch_operands = 3 : i64, tpu.core_type = #tpu.core_type<tc>, window_params = [{transform_indices = @transform_0, window_bounds = array<i64: 1, 128, 128>}, {transform_indices = @transform_1, window_bounds = array<i64: 1, 128, 256>}, {pipeline_mode = #tpu.pipeline_mode<synchronous>, transform_indices = @transform_2, window_bounds = array<i64: 128, 128>}, {pipeline_mode = #tpu.pipeline_mode<synchronous>, transform_indices = @transform_3, window_bounds = array<i64: 1, 128>}, {transform_indices = @transform_4, window_bounds = array<i64: 1, 128, 128>}]} {
    %c0_i32 = arith.constant 0 : i32
    %0 = arith.cmpi eq, %arg2, %c0_i32 : i32
    %1 = arith.extui %0 : i1 to i32
    %c0_i32_0 = arith.constant 0 : i32
    %2 = arith.cmpi ne, %1, %c0_i32_0 : i32
    scf.if %2 {
      %cst_25 = arith.constant 0xFF800000 : f32
      %36 = vector.broadcast %cst_25 : f32 to vector<128x1xf32>
      %c0_26 = arith.constant 0 : index
      %c0_27 = arith.constant 0 : index
      %37 = vector.load %arg8[%c0_26, %c0_27] : memref<128x1xf32, #tpu.memory_space<vmem>>, vector<128x1xf32>
      tpu.vector_store %arg8[%c0_26, %c0_27], %36 {strides = array<i32>} : memref<128x1xf32, #tpu.memory_space<vmem>>, vector<128x1xf32>,
      %cst_28 = arith.constant 0.000000e+00 : f32
      %38 = vector.broadcast %cst_28 : f32 to vector<128x1xf32>
      %c0_29 = arith.constant 0 : index
      %c0_30 = arith.constant 0 : index
      %39 = vector.load %arg9[%c0_29, %c0_30] : memref<128x1xf32, #tpu.memory_space<vmem>>, vector<128x1xf32>
      tpu.vector_store %arg9[%c0_29, %c0_30], %38 {strides = array<i32>} : memref<128x1xf32, #tpu.memory_space<vmem>>, vector<128x1xf32>,
      %cst_31 = arith.constant 0.000000e+00 : f32
      %40 = vector.broadcast %cst_31 : f32 to vector<128x128xf32>
      %c0_32 = arith.constant 0 : index
      %c0_33 = arith.constant 0 : index
      %41 = vector.load %arg10[%c0_32, %c0_33] : memref<128x128xf32, #tpu.memory_space<vmem>>, vector<128x128xf32>
      tpu.vector_store %arg10[%c0_32, %c0_33], %40 {strides = array<i32>} : memref<128x128xf32, #tpu.memory_space<vmem>>, vector<128x128xf32>,
    } else {
    }
    %c0 = arith.constant 0 : index
    %c0_1 = arith.constant 0 : index
    %c0_2 = arith.constant 0 : index
    %3 = vector.load %arg4[%c0, %c0_1, %c0_2] : memref<1x128x256xbf16, #tpu.memory_space<vmem>>, vector<1x128x128xbf16>
    %4 = vector.shape_cast %3 : vector<1x128x128xbf16> to vector<128x128xbf16>
    %c0_3 = arith.constant 0 : index
    %c0_4 = arith.constant 0 : index
    %c128 = arith.constant 128 : index
    %5 = vector.load %arg4[%c0_3, %c0_4, %c128] : memref<1x128x256xbf16, #tpu.memory_space<vmem>>, vector<1x128x128xbf16>
    %6 = vector.shape_cast %5 : vector<1x128x128xbf16> to vector<128x128xbf16>
    %c0_5 = arith.constant 0 : index
    %c0_6 = arith.constant 0 : index
    %c0_7 = arith.constant 0 : index
    %7 = vector.load %arg3[%c0_5, %c0_6, %c0_7] : memref<1x128x128xbf16, #tpu.memory_space<vmem>>, vector<1x128x128xbf16>
    %8 = vector.shape_cast %7 : vector<1x128x128xbf16> to vector<128x128xbf16>
    %cst = arith.constant dense<0.000000e+00> : vector<128x128xf32>
    %9 = tpu.matmul %8, %4, %cst {dimension_numbers = #tpu.dot_dimension_numbers<[1], [1], [0], [0], [0, 0, 1, 0], [], []>} : vector<128x128xbf16>, vector<128x128xbf16>, vector<128x128xf32> -> vector<128x128xf32>
    %c0_8 = arith.constant 0 : index
    %c0_9 = arith.constant 0 : index
    %10 = vector.load %arg8[%c0_8, %c0_9] : memref<128x1xf32, #tpu.memory_space<vmem>>, vector<128x1xf32>
    %cst_10 = arith.constant dense<0xFF800000> : vector<128xf32>
    %11 = vector.multi_reduction <maximumf>, %9, %cst_10 [1] : vector<128x128xf32> to vector<128xf32>
    %12 = vector.shape_cast %11 : vector<128xf32> to vector<128x1xf32>
    %13 = arith.maximumf %10, %12 : vector<128x1xf32>
    %14 = arith.subf %10, %13 : vector<128x1xf32>
    %15 = math.exp %14 : vector<128x1xf32>
    %16 = vector.broadcast %13 : vector<128x1xf32> to vector<128x128xf32>
    %17 = arith.subf %9, %16 : vector<128x128xf32>
    %18 = math.exp %17 : vector<128x128xf32>
    %c0_11 = arith.constant 0 : index
    %c0_12 = arith.constant 0 : index
    %19 = vector.load %arg9[%c0_11, %c0_12] : memref<128x1xf32, #tpu.memory_space<vmem>>, vector<128x1xf32>
    %20 = arith.mulf %15, %19 : vector<128x1xf32>
    %cst_13 = arith.constant dense<0.000000e+00> : vector<128xf32>
    %21 = vector.multi_reduction <add>, %18, %cst_13 [1] : vector<128x128xf32> to vector<128xf32>
    %22 = vector.shape_cast %21 : vector<128xf32> to vector<128x1xf32>
    %23 = arith.addf %20, %22 : vector<128x1xf32>
    %c0_14 = arith.constant 0 : index
    %c0_15 = arith.constant 0 : index
    %24 = vector.load %arg9[%c0_14, %c0_15] : memref<128x1xf32, #tpu.memory_space<vmem>>, vector<128x1xf32>
    tpu.vector_store %arg9[%c0_14, %c0_15], %23 {strides = array<i32>} : memref<128x1xf32, #tpu.memory_space<vmem>>, vector<128x1xf32>,
    %c0_16 = arith.constant 0 : index
    %c0_17 = arith.constant 0 : index
    %25 = vector.load %arg10[%c0_16, %c0_17] : memref<128x128xf32, #tpu.memory_space<vmem>>, vector<128x128xf32>
    %26 = vector.broadcast %15 : vector<128x1xf32> to vector<128x128xf32>
    %27 = arith.mulf %26, %25 : vector<128x128xf32>
    %28 = arith.truncf %18 : vector<128x128xf32> to vector<128x128xbf16>
    %cst_18 = arith.constant dense<0.000000e+00> : vector<128x128xf32>
    %29 = tpu.matmul %28, %6, %cst_18 {dimension_numbers = #tpu.dot_dimension_numbers<[1], [0], [0], [1], [0, 0, 1, 1], [], []>} : vector<128x128xbf16>, vector<128x128xbf16>, vector<128x128xf32> -> vector<128x128xf32>
    %30 = arith.addf %27, %29 : vector<128x128xf32>
    %c0_19 = arith.constant 0 : index
    %c0_20 = arith.constant 0 : index
    %31 = vector.load %arg10[%c0_19, %c0_20] : memref<128x128xf32, #tpu.memory_space<vmem>>, vector<128x128xf32>
    tpu.vector_store %arg10[%c0_19, %c0_20], %30 {strides = array<i32>} : memref<128x128xf32, #tpu.memory_space<vmem>>, vector<128x128xf32>,
    %c0_21 = arith.constant 0 : index
    %c0_22 = arith.constant 0 : index
    %32 = vector.load %arg8[%c0_21, %c0_22] : memref<128x1xf32, #tpu.memory_space<vmem>>, vector<128x1xf32>
    tpu.vector_store %arg8[%c0_21, %c0_22], %13 {strides = array<i32>} : memref<128x1xf32, #tpu.memory_space<vmem>>, vector<128x1xf32>,
    %c0_i32_23 = arith.constant 0 : i32
    %33 = arith.cmpi eq, %arg2, %c0_i32_23 : i32
    %34 = arith.extui %33 : i1 to i32
    %c0_i32_24 = arith.constant 0 : i32
    %35 = arith.cmpi ne, %34, %c0_i32_24 : i32
    scf.if %35 {
      %c0_25 = arith.constant 0 : index
      %c0_26 = arith.constant 0 : index
      %36 = vector.load %arg10[%c0_25, %c0_26] : memref<128x128xf32, #tpu.memory_space<vmem>>, vector<128x128xf32>
      %c0_27 = arith.constant 0 : index
      %c0_28 = arith.constant 0 : index
      %37 = vector.load %arg9[%c0_27, %c0_28] : memref<128x1xf32, #tpu.memory_space<vmem>>, vector<128x1xf32>
      %38 = vector.broadcast %37 : vector<128x1xf32> to vector<128x128xf32>
      %39 = arith.divf %36, %38 : vector<128x128xf32>
      %40 = arith.truncf %39 : vector<128x128xf32> to vector<128x128xbf16>
      %c0_29 = arith.constant 0 : index
      %c0_30 = arith.constant 0 : index
      %41 = vector.load %arg5[%c0_29, %c0_30] : memref<128x128xbf16, #tpu.memory_space<vmem>>, vector<128x128xbf16>
      %cst_31 = arith.constant dense<0.000000e+00> : vector<128x128xf32>
      %42 = tpu.matmul %40, %41, %cst_31 {dimension_numbers = #tpu.dot_dimension_numbers<[1], [0], [0], [1], [0, 0, 1, 1], [], []>} : vector<128x128xbf16>, vector<128x128xbf16>, vector<128x128xf32> -> vector<128x128xf32>
      %c0_32 = arith.constant 0 : index
      %c0_33 = arith.constant 0 : index
      %43 = vector.load %arg6[%c0_32, %c0_33] : memref<1x128xf32, #tpu.memory_space<vmem>>, vector<1x128xf32>
      %44 = vector.broadcast %43 : vector<1x128xf32> to vector<128x128xf32>
      %45 = arith.addf %42, %44 : vector<128x128xf32>
      %46 = arith.truncf %45 : vector<128x128xf32> to vector<128x128xbf16>
      %c0_34 = arith.constant 0 : index
      %c0_35 = arith.constant 0 : index
      %c0_36 = arith.constant 0 : index
      %47 = vector.load %arg7[%c0_34, %c0_35, %c0_36] : memref<1x128x128xbf16, #tpu.memory_space<vmem>>, vector<1x128x128xbf16>
      %48 = vector.shape_cast %47 : vector<1x128x128xbf16> to vector<128x128xbf16>
      %49 = vector.shape_cast %46 : vector<128x128xbf16> to vector<1x128x128xbf16>
      tpu.vector_store %arg7[%c0_34, %c0_35, %c0_36], %49 {strides = array<i32>} : memref<1x128x128xbf16, #tpu.memory_space<vmem>>, vector<1x128x128xbf16>,
    } else {
    }
    return
  }
  func.func @transform_0(%arg0: i32, %arg1: i32, %arg2: i32) -> (i32, i32, i32) {
    %c2_i32 = arith.constant 2 : i32
    %c0_i32 = arith.constant 0 : i32
    return %arg0, %arg1, %c2_i32 : i32, i32, i32
  }
  func.func @transform_1(%arg0: i32, %arg1: i32, %arg2: i32) -> (i32, i32, i32) {
    %c0_i32 = arith.constant 0 : i32
    %c0_i32_0 = arith.constant 0 : i32
    return %arg0, %arg2, %c0_i32 : i32, i32, i32
  }
  func.func @transform_2(%arg0: i32, %arg1: i32, %arg2: i32) -> (i32, i32) {
    %c0_i32 = arith.constant 0 : i32
    %c0_i32_0 = arith.constant 0 : i32
    %c0_i32_1 = arith.constant 0 : i32
    return %c0_i32, %c0_i32_0 : i32, i32
  }
  func.func @transform_3(%arg0: i32, %arg1: i32, %arg2: i32) -> (i32, i32) {
    %c0_i32 = arith.constant 0 : i32
    %c0_i32_0 = arith.constant 0 : i32
    %c0_i32_1 = arith.constant 0 : i32
    return %c0_i32, %c0_i32_0 : i32, i32
  }
  func.func @transform_4(%arg0: i32, %arg1: i32, %arg2: i32) -> (i32, i32, i32) {
    %c0_i32 = arith.constant 0 : i32
    %c0_i32_0 = arith.constant 0 : i32
    return %arg0, %arg1, %c0_i32 : i32, i32, i32
  }
}

module attributes {stable_mosaic.version = 11 : i64} {
  func.func @_conv_qkv_kernel(%arg0: i32, %arg1: i32, %arg2: memref<1x128x896xbf16, #tpu.memory_space<vmem>>, %arg3: memref<896x128xbf16, #tpu.memory_space<vmem>>, %arg4: memref<1x128xf32, #tpu.memory_space<vmem>>, %arg5: memref<128x384xbf16, #tpu.memory_space<vmem>>, %arg6: memref<1x384xf32, #tpu.memory_space<vmem>>, %arg7: memref<1x128x384xbf16, #tpu.memory_space<vmem>>) attributes {dimension_semantics = [#tpu.dimension_semantics<parallel>, #tpu.dimension_semantics<parallel>], iteration_bounds = array<i64: 2, 1>, scalar_prefetch = 0 : i64, scratch_operands = 0 : i64, tpu.core_type = #tpu.core_type<tc>, window_params = [{transform_indices = @transform_0, window_bounds = array<i64: 1, 128, 896>}, {pipeline_mode = #tpu.pipeline_mode<synchronous>, transform_indices = @transform_1, window_bounds = array<i64: 896, 128>}, {pipeline_mode = #tpu.pipeline_mode<synchronous>, transform_indices = @transform_2, window_bounds = array<i64: 1, 128>}, {pipeline_mode = #tpu.pipeline_mode<synchronous>, transform_indices = @transform_3, window_bounds = array<i64: 128, 384>}, {pipeline_mode = #tpu.pipeline_mode<synchronous>, transform_indices = @transform_4, window_bounds = array<i64: 1, 384>}, {transform_indices = @transform_5, window_bounds = array<i64: 1, 128, 384>}]} {
    %c0 = arith.constant 0 : index
    %c0_0 = arith.constant 0 : index
    %c0_1 = arith.constant 0 : index
    %0 = vector.load %arg2[%c0, %c0_0, %c0_1] : memref<1x128x896xbf16, #tpu.memory_space<vmem>>, vector<1x128x896xbf16>
    %1 = vector.shape_cast %0 : vector<1x128x896xbf16> to vector<128x896xbf16>
    %c0_2 = arith.constant 0 : index
    %c0_3 = arith.constant 0 : index
    %2 = vector.load %arg3[%c0_2, %c0_3] : memref<896x128xbf16, #tpu.memory_space<vmem>>, vector<896x128xbf16>
    %cst = arith.constant dense<0.000000e+00> : vector<128x128xf32>
    %3 = tpu.matmul %1, %2, %cst {dimension_numbers = #tpu.dot_dimension_numbers<[1], [0], [0], [1], [0, 0, 1, 1], [], []>} : vector<128x896xbf16>, vector<896x128xbf16>, vector<128x128xf32> -> vector<128x128xf32>
    %c0_4 = arith.constant 0 : index
    %c0_5 = arith.constant 0 : index
    %4 = vector.load %arg4[%c0_4, %c0_5] : memref<1x128xf32, #tpu.memory_space<vmem>>, vector<1x128xf32>
    %5 = vector.broadcast %4 : vector<1x128xf32> to vector<128x128xf32>
    %6 = arith.addf %3, %5 : vector<128x128xf32>
    %7 = arith.truncf %6 : vector<128x128xf32> to vector<128x128xbf16>
    %c0_6 = arith.constant 0 : index
    %c0_7 = arith.constant 0 : index
    %8 = vector.load %arg5[%c0_6, %c0_7] : memref<128x384xbf16, #tpu.memory_space<vmem>>, vector<128x128xbf16>
    %cst_8 = arith.constant dense<0.000000e+00> : vector<128x128xf32>
    %9 = tpu.matmul %7, %8, %cst_8 {dimension_numbers = #tpu.dot_dimension_numbers<[1], [0], [0], [1], [0, 0, 1, 1], [], []>} : vector<128x128xbf16>, vector<128x128xbf16>, vector<128x128xf32> -> vector<128x128xf32>
    %c0_9 = arith.constant 0 : index
    %c0_10 = arith.constant 0 : index
    %10 = vector.load %arg6[%c0_9, %c0_10] : memref<1x384xf32, #tpu.memory_space<vmem>>, vector<1x128xf32>
    %11 = vector.broadcast %10 : vector<1x128xf32> to vector<128x128xf32>
    %12 = arith.addf %9, %11 : vector<128x128xf32>
    %13 = arith.truncf %12 : vector<128x128xf32> to vector<128x128xbf16>
    %c0_11 = arith.constant 0 : index
    %c0_12 = arith.constant 0 : index
    %c0_13 = arith.constant 0 : index
    %14 = vector.load %arg7[%c0_11, %c0_12, %c0_13] : memref<1x128x384xbf16, #tpu.memory_space<vmem>>, vector<1x128x128xbf16>
    %15 = vector.shape_cast %14 : vector<1x128x128xbf16> to vector<128x128xbf16>
    %16 = vector.shape_cast %13 : vector<128x128xbf16> to vector<1x128x128xbf16>
    tpu.vector_store %arg7[%c0_11, %c0_12, %c0_13], %16 {strides = array<i32>} : memref<1x128x384xbf16, #tpu.memory_space<vmem>>, vector<1x128x128xbf16>,
    %c0_14 = arith.constant 0 : index
    %c128 = arith.constant 128 : index
    %17 = vector.load %arg5[%c0_14, %c128] : memref<128x384xbf16, #tpu.memory_space<vmem>>, vector<128x128xbf16>
    %cst_15 = arith.constant dense<0.000000e+00> : vector<128x128xf32>
    %18 = tpu.matmul %7, %17, %cst_15 {dimension_numbers = #tpu.dot_dimension_numbers<[1], [0], [0], [1], [0, 0, 1, 1], [], []>} : vector<128x128xbf16>, vector<128x128xbf16>, vector<128x128xf32> -> vector<128x128xf32>
    %c0_16 = arith.constant 0 : index
    %c128_17 = arith.constant 128 : index
    %19 = vector.load %arg6[%c0_16, %c128_17] : memref<1x384xf32, #tpu.memory_space<vmem>>, vector<1x128xf32>
    %20 = vector.broadcast %19 : vector<1x128xf32> to vector<128x128xf32>
    %21 = arith.addf %18, %20 : vector<128x128xf32>
    %22 = arith.truncf %21 : vector<128x128xf32> to vector<128x128xbf16>
    %c0_18 = arith.constant 0 : index
    %c0_19 = arith.constant 0 : index
    %c128_20 = arith.constant 128 : index
    %23 = vector.load %arg7[%c0_18, %c0_19, %c128_20] : memref<1x128x384xbf16, #tpu.memory_space<vmem>>, vector<1x128x128xbf16>
    %24 = vector.shape_cast %23 : vector<1x128x128xbf16> to vector<128x128xbf16>
    %25 = vector.shape_cast %22 : vector<128x128xbf16> to vector<1x128x128xbf16>
    tpu.vector_store %arg7[%c0_18, %c0_19, %c128_20], %25 {strides = array<i32>} : memref<1x128x384xbf16, #tpu.memory_space<vmem>>, vector<1x128x128xbf16>,
    %c0_21 = arith.constant 0 : index
    %c256 = arith.constant 256 : index
    %26 = vector.load %arg5[%c0_21, %c256] : memref<128x384xbf16, #tpu.memory_space<vmem>>, vector<128x128xbf16>
    %cst_22 = arith.constant dense<0.000000e+00> : vector<128x128xf32>
    %27 = tpu.matmul %7, %26, %cst_22 {dimension_numbers = #tpu.dot_dimension_numbers<[1], [0], [0], [1], [0, 0, 1, 1], [], []>} : vector<128x128xbf16>, vector<128x128xbf16>, vector<128x128xf32> -> vector<128x128xf32>
    %c0_23 = arith.constant 0 : index
    %c256_24 = arith.constant 256 : index
    %28 = vector.load %arg6[%c0_23, %c256_24] : memref<1x384xf32, #tpu.memory_space<vmem>>, vector<1x128xf32>
    %29 = vector.broadcast %28 : vector<1x128xf32> to vector<128x128xf32>
    %30 = arith.addf %27, %29 : vector<128x128xf32>
    %31 = arith.truncf %30 : vector<128x128xf32> to vector<128x128xbf16>
    %c0_25 = arith.constant 0 : index
    %c0_26 = arith.constant 0 : index
    %c256_27 = arith.constant 256 : index
    %32 = vector.load %arg7[%c0_25, %c0_26, %c256_27] : memref<1x128x384xbf16, #tpu.memory_space<vmem>>, vector<1x128x128xbf16>
    %33 = vector.shape_cast %32 : vector<1x128x128xbf16> to vector<128x128xbf16>
    %34 = vector.shape_cast %31 : vector<128x128xbf16> to vector<1x128x128xbf16>
    tpu.vector_store %arg7[%c0_25, %c0_26, %c256_27], %34 {strides = array<i32>} : memref<1x128x384xbf16, #tpu.memory_space<vmem>>, vector<1x128x128xbf16>,
    return
  }
  func.func @transform_0(%arg0: i32, %arg1: i32) -> (i32, i32, i32) {
    %c0_i32 = arith.constant 0 : i32
    %c0_i32_0 = arith.constant 0 : i32
    return %arg0, %arg1, %c0_i32 : i32, i32, i32
  }
  func.func @transform_1(%arg0: i32, %arg1: i32) -> (i32, i32) {
    %c0_i32 = arith.constant 0 : i32
    %c0_i32_0 = arith.constant 0 : i32
    %c0_i32_1 = arith.constant 0 : i32
    return %c0_i32, %c0_i32_0 : i32, i32
  }
  func.func @transform_2(%arg0: i32, %arg1: i32) -> (i32, i32) {
    %c0_i32 = arith.constant 0 : i32
    %c0_i32_0 = arith.constant 0 : i32
    %c0_i32_1 = arith.constant 0 : i32
    return %c0_i32, %c0_i32_0 : i32, i32
  }
  func.func @transform_3(%arg0: i32, %arg1: i32) -> (i32, i32) {
    %c0_i32 = arith.constant 0 : i32
    %c0_i32_0 = arith.constant 0 : i32
    %c0_i32_1 = arith.constant 0 : i32
    return %c0_i32, %c0_i32_0 : i32, i32
  }
  func.func @transform_4(%arg0: i32, %arg1: i32) -> (i32, i32) {
    %c0_i32 = arith.constant 0 : i32
    %c0_i32_0 = arith.constant 0 : i32
    %c0_i32_1 = arith.constant 0 : i32
    return %c0_i32, %c0_i32_0 : i32, i32
  }
  func.func @transform_5(%arg0: i32, %arg1: i32) -> (i32, i32, i32) {
    %c0_i32 = arith.constant 0 : i32
    %c0_i32_0 = arith.constant 0 : i32
    return %arg0, %arg1, %c0_i32 : i32, i32, i32
  }
}

</mosaic_0001>

<llo_original>
// kernel: position_attention_forward.3
$region0: #{position_attention_forward.3}
  #allocation0 [shape = 'u32[]', space=smem, size = 0x4, offset = 0x4, fixed_abs, tag = 'smem constant byte address 0x4 - core index']
  #allocation1 [shape = 'u32[144,128]{1,0:T(1,128)}', space=vmem, size = 0x12000, scoped, tag = 'internal scratch']
  #allocation2 [shape = 'f32[128,1]{1,0:T(8,128)}', space=vmem, size = 0x10000, scoped, tag = 'scratch operand']
  #allocation3 [shape = 'f32[128,1]{1,0:T(8,128)}', space=vmem, size = 0x10000, scoped, tag = 'scratch operand']
  #allocation4 [shape = 'f32[128,128]{1,0:T(8,128)}', space=vmem, size = 0x10000, scoped, tag = 'scratch operand']
  %s0 = inlined_call_operand.vmem [shape: bf16[2,128,384], index: 0, kind: input, shape index: {}, may-alias: {0,1}]
  %s1 = inlined_call_operand.vmem [shape: bf16[2,128,384], index: 1, kind: input, shape index: {}, may-alias: {0,1}]
  %s2 = inlined_call_operand.vmem [shape: bf16[128,128], index: 2, kind: input, shape index: {}]
  %s3 = inlined_call_operand.vmem [shape: f32[1,128], index: 3, kind: input, shape index: {}]
  %s4 = inlined_call_operand.vmem [shape: bf16[2,128,128], index: 4, kind: output, shape index: {}]
  %s5 = sld [smem:[#allocation0]]
  $region136: #{position_attention_forward.3} parent=0
    _
  %s7 = ssub.s32 1, %s5
  %s8 = scalar_select 0, %s7, %s5
  $region1: #{position_attention_forward.3} parent=0
    #allocation5 [shape = 'u8[65536]{0}', space=vmem, size = 0x10000, scoped, tag = 'input window, operand 0']
    #allocation6 [shape = 'u8[131072]{0}', space=vmem, size = 0x20000, scoped, tag = 'input window, operand 1']
    loop: start=0, step=1, limit=4
    $region2: #{position_attention_forward.3} parent=1 // loop_pre_header
      _
    $region3: #{position_attention_forward.3} parent=1 // loop_header
      %s10 = sphi 0, %s14
      %p11 = scmp.ge.s32.totalorder %s10, 4
      %s17 = sphi 0, %s36
      %s18 = sphi 0, %s32
      %s19 = sphi 0, %s28
      %s20 = sphi 0, %s17
      %s21 = sphi 0, %s18
      %s22 = sphi 0, %s19
      %s23 = sphi 0, %s20
      %s24 = sphi 0, %s21
      %s25 = sphi 0, %s22
      %s41 = sphi 0, %s43
      %s44 = sphi 0, %s41
      %s45 = sphi 0, %s44
      %s61 = sphi 0, %s45
      %s69 = sphi 0, %s71
      %s72 = sphi 0, %s69
      %s73 = sphi 0, %s72
      %s89 = sphi 0, %s73
      %s93 = sphi 0, %s93
      %s95 = sphi 0, %s93
      %s96 = sphi 0, %s95
      %s110 = sphi 0, %s96
      %s114 = sphi 0, %s114
      %s116 = sphi 0, %s114
      %s117 = sphi 0, %s116
      %s131 = sphi 0, %s117
      %s139 = sphi 0, %s141
      %s142 = sphi 0, %s139
      %s143 = sphi 0, %s142
      %s159 = sphi 0, %s143
    $region4: #{position_attention_forward.3} parent=1 // loop_header_branch
      %13 = sbr.rel (%p11) target = $region8
    $region5: #{position_attention_forward.3} parent=1 // loop_body
      %s15 = ssub.s32 %s10, 1
      %s16 = ssub.s32 %s10, 2
      %s26 = sadd.s32 1, %s19
      %p27 = scmp.ge.s32.totalorder %s26, 1
      %s28 = scalar_select %p27, 0, %s26
      %s29 = sadd.s32 1, %s18
      %s30 = scalar_select %p27, %s29, %s18
      %p31 = scmp.ge.s32.totalorder %s30, 1
      %s32 = scalar_select %p31, 0, %s30
      %s33 = sadd.s32 1, %s17
      %s34 = scalar_select %p31, %s33, %s17
      %p35 = scmp.ge.s32.totalorder %s34, 2
      %s36 = scalar_select %p35, 0, %s34
      %s37 = ssub.s32 %s17, %s36
      %s38 = ssub.s32 %s18, %s32
      %s39 = sor.u32 %s37, %s38
      %p40 = scmp.eq.s32.totalorder %s39, 0
      %s42 = sadd.s32 %s41, 1
      %s43 = scalar_select %p40, %s41, %s42
      %p46 = pneg %p40
      %p47 = scmp.eq.s32.totalorder %s10, 1
      %p48 = por %p46, %p47
      %p49 = scmp.ne.s32.totalorder %s41, %s44
      %p50 = scmp.eq.s32.totalorder %s10, 0
      %p51 = por %p49, %p50
      %p52 = scmp.ne.s32.totalorder %s41, %s44
      %p53 = scmp.eq.s32.totalorder %s15, 1
      %p54 = por %p52, %p53
      %p55 = scmp.ne.s32.totalorder %s44, %s45
      %p56 = scmp.eq.s32.totalorder %s15, 0
      %p57 = por %p55, %p56
      %p58 = scmp.ne.s32.totalorder %s44, %s45
      %p59 = scmp.eq.s32.totalorder %s16, 1
      %p60 = por %p58, %p59
      %p62 = scmp.ne.s32.totalorder %s45, %s61
      %p63 = scmp.eq.s32.totalorder %s16, 0
      %p64 = por %p62, %p63
      %s65 = ssub.s32 %s17, %s36
      %s66 = ssub.s32 %s19, %s28
      %s67 = sor.u32 %s65, %s66
      %p68 = scmp.eq.s32.totalorder %s67, 0
      %s70 = sadd.s32 %s69, 1
      %s71 = scalar_select %p68, %s69, %s70
      %p74 = pneg %p68
      %p75 = scmp.eq.s32.totalorder %s10, 1
      %p76 = por %p74, %p75
      %p77 = scmp.ne.s32.totalorder %s69, %s72
      %p78 = scmp.eq.s32.totalorder %s10, 0
      %p79 = por %p77, %p78
      %p80 = scmp.ne.s32.totalorder %s69, %s72
      %p81 = scmp.eq.s32.totalorder %s15, 1
      %p82 = por %p80, %p81
      %p83 = scmp.ne.s32.totalorder %s72, %s73
      %p84 = scmp.eq.s32.totalorder %s15, 0
      %p85 = por %p83, %p84
      %p86 = scmp.ne.s32.totalorder %s72, %s73
      %p87 = scmp.eq.s32.totalorder %s16, 1
      %p88 = por %p86, %p87
      %p90 = scmp.ne.s32.totalorder %s73, %s89
      %p91 = scmp.eq.s32.totalorder %s16, 0
      %p92 = por %p90, %p91
      %s94 = sadd.s32 %s93, 1
      %p97 = scmp.eq.s32.totalorder %s10, 1
      %p98 = scmp.ne.s32.totalorder %s93, %s95
      %p99 = scmp.eq.s32.totalorder %s10, 0
      %p100 = por %p98, %p99
      %p101 = scmp.ne.s32.totalorder %s93, %s95
      %p102 = scmp.eq.s32.totalorder %s15, 1
      %p103 = por %p101, %p102
      %p104 = scmp.ne.s32.totalorder %s95, %s96
      %p105 = scmp.eq.s32.totalorder %s15, 0
      %p106 = por %p104, %p105
      %p107 = scmp.ne.s32.totalorder %s95, %s96
      %p108 = scmp.eq.s32.totalorder %s16, 1
      %p109 = por %p107, %p108
      %p111 = scmp.ne.s32.totalorder %s96, %s110
      %p112 = scmp.eq.s32.totalorder %s16, 0
      %p113 = por %p111, %p112
      %s115 = sadd.s32 %s114, 1
      %p118 = scmp.eq.s32.totalorder %s10, 1
      %p119 = scmp.ne.s32.totalorder %s114, %s116
      %p120 = scmp.eq.s32.totalorder %s10, 0
      %p121 = por %p119, %p120
      %p122 = scmp.ne.s32.totalorder %s114, %s116
      %p123 = scmp.eq.s32.totalorder %s15, 1
      %p124 = por %p122, %p123
      %p125 = scmp.ne.s32.totalorder %s116, %s117
      %p126 = scmp.eq.s32.totalorder %s15, 0
      %p127 = por %p125, %p126
      %p128 = scmp.ne.s32.totalorder %s116, %s117
      %p129 = scmp.eq.s32.totalorder %s16, 1
      %p130 = por %p128, %p129
      %p132 = scmp.ne.s32.totalorder %s117, %s131
      %p133 = scmp.eq.s32.totalorder %s16, 0
      %p134 = por %p132, %p133
      %s135 = ssub.s32 %s17, %s36
      %s136 = ssub.s32 %s18, %s32
      %s137 = sor.u32 %s135, %s136
      %p138 = scmp.eq.s32.totalorder %s137, 0
      %s140 = sadd.s32 %s139, 1
      %s141 = scalar_select %p138, %s139, %s140
      %p144 = pneg %p138
      %p145 = scmp.eq.s32.totalorder %s10, 1
      %p146 = por %p144, %p145
      %p147 = scmp.ne.s32.totalorder %s139, %s142
      %p148 = scmp.eq.s32.totalorder %s10, 0
      %p149 = por %p147, %p148
      %p150 = scmp.ne.s32.totalorder %s139, %s142
      %p151 = scmp.eq.s32.totalorder %s15, 1
      %p152 = por %p150, %p151
      %p153 = scmp.ne.s32.totalorder %s142, %s143
      %p154 = scmp.eq.s32.totalorder %s15, 0
      %p155 = por %p153, %p154
      %p156 = scmp.ne.s32.totalorder %s142, %s143
      %p157 = scmp.eq.s32.totalorder %s16, 1
      %p158 = por %p156, %p157
      %p160 = scmp.ne.s32.totalorder %s143, %s159
      %p161 = scmp.eq.s32.totalorder %s16, 0
      %p162 = por %p160, %p161
      %p163 = scmp.le.s32.totalorder 1, %s10
      %p164 = scmp.lt.s32.totalorder %s10, 3
      %p165 = pnand %p163, %p164
      %p166 = pneg %p165
      // Predicated region
      $region9: #{position_attention_forward.3} parent=5 // pred_check
        _
      $region10: #{position_attention_forward.3} parent=5 // pred_check_branch
        %168 = sbr.rel (%p165) target = $region12
      $region11: #{position_attention_forward.3} parent=5 // pred_region
        %s169 = ssub.s32 %s10, 1
        // Predicated region
        $region13: #{position_attention_forward.3} parent=11 // pred_check
          %p170 = pneg %p106
        $region14: #{position_attention_forward.3} parent=11 // pred_check_branch
          %172 = sbr.rel (%p170) target = $region16
        $region15: #{position_attention_forward.3} parent=11 // pred_region
          _
        $region16: #{position_attention_forward.3} parent=11 // pred_fallthru
          _
        // Predicated region
        $region17: #{position_attention_forward.3} parent=11 // pred_check
          %p173 = pneg %p127
        $region18: #{position_attention_forward.3} parent=11 // pred_check_branch
          %175 = sbr.rel (%p173) target = $region20
        $region19: #{position_attention_forward.3} parent=11 // pred_region
          _
        $region20: #{position_attention_forward.3} parent=11 // pred_fallthru
          _
      $region12: #{position_attention_forward.3} parent=5 // pred_fallthru
        _
      %p176 = scmp.lt.s32.totalorder %s10, 2
      // Predicated region
      $region21: #{position_attention_forward.3} parent=5 // pred_check
        %p177 = pneg %p176
      $region22: #{position_attention_forward.3} parent=5 // pred_check_branch
        %179 = sbr.rel (%p177) target = $region24
      $region23: #{position_attention_forward.3} parent=5 // pred_region
        // Predicated region
        $region25: #{position_attention_forward.3} parent=23 // pred_check
          %p180 = pneg %p51
        $region26: #{position_attention_forward.3} parent=23 // pred_check_branch
          %182 = sbr.rel (%p180) target = $region28
        $region27: #{position_attention_forward.3} parent=23 // pred_region
          %s183 = sand.u32 %s41, 1
          %s184 = sand.u32 %s41, 1
          %s185 = smul.addr %s184, 64
          %s186 = scalar_lea.vmem [#allocation5], %s185
          %s187 = smul.u32 16, %s18
          %s188 = smul.addr %s187, 3
          %s189 = sadd.s32 2, %s188
          %s190 = smul.addr %s17, 48
          %s191 = sadd.s32 %s189, %s190
          %s192 = smul.addr %s191, 4
          %s193 = scalar_lea.vmem %s0, %s192
          // Predicated region
          $region29: #{position_attention_forward.3} parent=27 // pred_check
            _
          $region30: #{position_attention_forward.3} parent=27 // pred_check_branch
            %195 = sbr.rel (0) target = $region32
          $region31: #{position_attention_forward.3} parent=27 // pred_region
            // Predicated region
            $region33: #{position_attention_forward.3} parent=31 // pred_check
              _
            $region34: #{position_attention_forward.3} parent=31 // pred_check_branch
              %197 = sbr.rel target = $region36
            $region35: #{position_attention_forward.3} parent=31 // pred_region
              // Predicated region
              $region48: #{position_attention_forward.3} parent=35 // pred_check
                _
              $region49: #{position_attention_forward.3} parent=35 // pred_check_branch
                %242 = sbr.rel (0) target = $region51
              $region50: #{position_attention_forward.3} parent=35 // pred_region
                loop: start=0, step=1, limit=1
                $region52: #{position_attention_forward.3} parent=50 // loop_pre_header
                  _
                $region53: #{position_attention_forward.3} parent=50 // loop_header
                  %s244 = sphi 0, %s248
                  %p245 = scmp.ge.s32.totalorder %s244, 1
                  %s249 = sphi %s193, %s193
                  %s250 = sphi %s186, %s186
                $region54: #{position_attention_forward.3} parent=50 // loop_header_branch
                  %247 = sbr.rel (%p245) target = $region58
                $region55: #{position_attention_forward.3} parent=50 // loop_body
                  _
                $region56: #{position_attention_forward.3} parent=50 // loop_footer
                  %s248 = sadd.s32 1, %s244
                $region57: #{position_attention_forward.3} parent=50 // loop_footer_branch
                  %243 = sbr.rel target = $region53
                $region58: #{position_attention_forward.3} parent=50 // loop_exit
                  _
                loop: start=0, step=1, limit=1
                $region59: #{position_attention_forward.3} parent=50 // loop_pre_header
                  _
                $region60: #{position_attention_forward.3} parent=50 // loop_header
                  %s253 = sphi 0, %s257
                  %p254 = scmp.ge.s32.totalorder %s253, 1
                  %s258 = sphi %s193, %s193
                  %s259 = sphi %s186, %s186
                $region61: #{position_attention_forward.3} parent=50 // loop_header_branch
                  %256 = sbr.rel (%p254) target = $region65
                $region62: #{position_attention_forward.3} parent=50 // loop_body
                  %v260 = vld [vmem:[%s258] sm:$0xf]
                  %261 = vst [vmem:[%s259] sm:$0xf] %v260
                  %v262 = vld [vmem:[%s258 + $0xc] sm:$0xf]
                  %263 = vst [vmem:[%s259 + $0x4] sm:$0xf] %v262
                  %v264 = vld [vmem:[%s258 + $0x18] sm:$0xf]
                  %265 = vst [vmem:[%s259 + $0x8] sm:$0xf] %v264
                  %v266 = vld [vmem:[%s258 + $0x24] sm:$0xf]
                  %267 = vst [vmem:[%s259 + $0xc] sm:$0xf] %v266
                  %v268 = vld [vmem:[%s258 + $0x30] sm:$0xf]
                  %269 = vst [vmem:[%s259 + $0x10] sm:$0xf] %v268
                  %v270 = vld [vmem:[%s258 + $0x3c] sm:$0xf]
                  %271 = vst [vmem:[%s259 + $0x14] sm:$0xf] %v270
                  %v272 = vld [vmem:[%s258 + $0x48] sm:$0xf]
                  %273 = vst [vmem:[%s259 + $0x18] sm:$0xf] %v272
                  %v274 = vld [vmem:[%s258 + $0x54] sm:$0xf]
                  %275 = vst [vmem:[%s259 + $0x1c] sm:$0xf] %v274
                  %v276 = vld [vmem:[%s258 + $0x60] sm:$0xf]
                  %277 = vst [vmem:[%s259 + $0x20] sm:$0xf] %v276
                  %v278 = vld [vmem:[%s258 + $0x6c] sm:$0xf]
                  %279 = vst [vmem:[%s259 + $0x24] sm:$0xf] %v278
                  %v280 = vld [vmem:[%s258 + $0x78] sm:$0xf]
                  %281 = vst [vmem:[%s259 + $0x28] sm:$0xf] %v280
                  %v282 = vld [vmem:[%s258 + $0x84] sm:$0xf]
                  %283 = vst [vmem:[%s259 + $0x2c] sm:$0xf] %v282
                  %v284 = vld [vmem:[%s258 + $0x90] sm:$0xf]
                  %285 = vst [vmem:[%s259 + $0x30] sm:$0xf] %v284
                  %v286 = vld [vmem:[%s258 + $0x9c] sm:$0xf]
                  %287 = vst [vmem:[%s259 + $0x34] sm:$0xf] %v286
                  %v288 = vld [vmem:[%s258 + $0xa8] sm:$0xf]
                  %289 = vst [vmem:[%s259 + $0x38] sm:$0xf] %v288
                  %v290 = vld [vmem:[%s258 + $0xb4] sm:$0xf]
                  %291 = vst [vmem:[%s259 + $0x3c] sm:$0xf] %v290
                $region63: #{position_attention_forward.3} parent=50 // loop_footer
                  %s257 = sadd.s32 1, %s253
                $region64: #{position_attention_forward.3} parent=50 // loop_footer_branch
                  %252 = sbr.rel target = $region60
                $region65: #{position_attention_forward.3} parent=50 // loop_exit
                  _
              $region51: #{position_attention_forward.3} parent=35 // pred_fallthru
                _
            $region36: #{position_attention_forward.3} parent=31 // pred_fallthru
              _
            // Predicated region
            $region37: #{position_attention_forward.3} parent=31 // pred_check
              _
            $region38: #{position_attention_forward.3} parent=31 // pred_check_branch
              %199 = sbr.rel (0) target = $region40
            $region39: #{position_attention_forward.3} parent=31 // pred_region
              loop: start=0, step=1, limit=1
              $region41: #{position_attention_forward.3} parent=39 // loop_pre_header
                _
              $region42: #{position_attention_forward.3} parent=39 // loop_header
                %s202 = sphi 0, %s206
                %p203 = scmp.ge.s32.totalorder %s202, 1
                %s207 = sphi %s193, %s193
                %s208 = sphi %s186, %s186
              $region43: #{position_attention_forward.3} parent=39 // loop_header_branch
                %205 = sbr.rel (%p203) target = $region47
              $region44: #{position_attention_forward.3} parent=39 // loop_body
                %v209 = vld [vmem:[%s207] sm:$0xf]
                %210 = vst [vmem:[%s208] sm:$0xf] %v209
                %v211 = vld [vmem:[%s207 + $0xc] sm:$0xf]
                %212 = vst [vmem:[%s208 + $0x4] sm:$0xf] %v211
                %v213 = vld [vmem:[%s207 + $0x18] sm:$0xf]
                %214 = vst [vmem:[%s208 + $0x8] sm:$0xf] %v213
                %v215 = vld [vmem:[%s207 + $0x24] sm:$0xf]
                %216 = vst [vmem:[%s208 + $0xc] sm:$0xf] %v215
                %v217 = vld [vmem:[%s207 + $0x30] sm:$0xf]
                %218 = vst [vmem:[%s208 + $0x10] sm:$0xf] %v217
                %v219 = vld [vmem:[%s207 + $0x3c] sm:$0xf]
                %220 = vst [vmem:[%s208 + $0x14] sm:$0xf] %v219
                %v221 = vld [vmem:[%s207 + $0x48] sm:$0xf]
                %222 = vst [vmem:[%s208 + $0x18] sm:$0xf] %v221
                %v223 = vld [vmem:[%s207 + $0x54] sm:$0xf]
                %224 = vst [vmem:[%s208 + $0x1c] sm:$0xf] %v223
                %v225 = vld [vmem:[%s207 + $0x60] sm:$0xf]
                %226 = vst [vmem:[%s208 + $0x20] sm:$0xf] %v225
                %v227 = vld [vmem:[%s207 + $0x6c] sm:$0xf]
                %228 = vst [vmem:[%s208 + $0x24] sm:$0xf] %v227
                %v229 = vld [vmem:[%s207 + $0x78] sm:$0xf]
                %230 = vst [vmem:[%s208 + $0x28] sm:$0xf] %v229
                %v231 = vld [vmem:[%s207 + $0x84] sm:$0xf]
                %232 = vst [vmem:[%s208 + $0x2c] sm:$0xf] %v231
                %v233 = vld [vmem:[%s207 + $0x90] sm:$0xf]
                %234 = vst [vmem:[%s208 + $0x30] sm:$0xf] %v233
                %v235 = vld [vmem:[%s207 + $0x9c] sm:$0xf]
                %236 = vst [vmem:[%s208 + $0x34] sm:$0xf] %v235
                %v237 = vld [vmem:[%s207 + $0xa8] sm:$0xf]
                %238 = vst [vmem:[%s208 + $0x38] sm:$0xf] %v237
                %v239 = vld [vmem:[%s207 + $0xb4] sm:$0xf]
                %240 = vst [vmem:[%s208 + $0x3c] sm:$0xf] %v239
              $region45: #{position_attention_forward.3} parent=39 // loop_footer
                %s206 = sadd.s32 1, %s202
              $region46: #{position_attention_forward.3} parent=39 // loop_footer_branch
                %201 = sbr.rel target = $region42
              $region47: #{position_attention_forward.3} parent=39 // loop_exit
                _
            $region40: #{position_attention_forward.3} parent=31 // pred_fallthru
              _
          $region32: #{position_attention_forward.3} parent=27 // pred_fallthru
            _
          %292 = vnop
        $region28: #{position_attention_forward.3} parent=23 // pred_fallthru
          _
        // Predicated region
        $region66: #{position_attention_forward.3} parent=23 // pred_check
          %p293 = pneg %p79
        $region67: #{position_attention_forward.3} parent=23 // pred_check_branch
          %295 = sbr.rel (%p293) target = $region69
        $region68: #{position_attention_forward.3} parent=23 // pred_region
          %s296 = sand.u32 %s69, 1
          %s297 = sand.u32 %s69, 1
          %s298 = smul.addr %s297, 128
          %s299 = scalar_lea.vmem [#allocation6], %s298
          %s300 = smul.u32 16, %s19
          %s301 = smul.addr %s300, 3
          %s302 = smul.addr %s17, 48
          %s303 = sadd.s32 %s301, %s302
          %s304 = smul.addr %s303, 4
          %s305 = scalar_lea.vmem %s1, %s304
          // Predicated region
          $region70: #{position_attention_forward.3} parent=68 // pred_check
            _
          $region71: #{position_attention_forward.3} parent=68 // pred_check_branch
            %307 = sbr.rel (0) target = $region73
          $region72: #{position_attention_forward.3} parent=68 // pred_region
            // Predicated region
            $region74: #{position_attention_forward.3} parent=72 // pred_check
              _
            $region75: #{position_attention_forward.3} parent=72 // pred_check_branch
              %309 = sbr.rel (0) target = $region77
            $region76: #{position_attention_forward.3} parent=72 // pred_region
              // Predicated region
              $region89: #{position_attention_forward.3} parent=76 // pred_check
                _
              $region90: #{position_attention_forward.3} parent=76 // pred_check_branch
                %354 = sbr.rel (0) target = $region92
              $region91: #{position_attention_forward.3} parent=76 // pred_region
                loop: start=0, step=1, limit=1
                $region93: #{position_attention_forward.3} parent=91 // loop_pre_header
                  _
                $region94: #{position_attention_forward.3} parent=91 // loop_header
                  %s356 = sphi 0, %s360
                  %p357 = scmp.ge.s32.totalorder %s356, 1
                  %s361 = sphi %s305, %s305
                  %s362 = sphi %s299, %s299
                $region95: #{position_attention_forward.3} parent=91 // loop_header_branch
                  %359 = sbr.rel (%p357) target = $region99
                $region96: #{position_attention_forward.3} parent=91 // loop_body
                  %v363 = vld [vmem:[%s361] sm:$0xff]
                  %364 = vst [vmem:[%s362] sm:$0xff] %v363
                  %v365 = vld [vmem:[%s361 + $0xc] sm:$0xff]
                  %366 = vst [vmem:[%s362 + $0x8] sm:$0xff] %v365
                  %v367 = vld [vmem:[%s361 + $0x18] sm:$0xff]
                  %368 = vst [vmem:[%s362 + $0x10] sm:$0xff] %v367
                  %v369 = vld [vmem:[%s361 + $0x24] sm:$0xff]
                  %370 = vst [vmem:[%s362 + $0x18] sm:$0xff] %v369
                  %v371 = vld [vmem:[%s361 + $0x30] sm:$0xff]
                  %372 = vst [vmem:[%s362 + $0x20] sm:$0xff] %v371
                  %v373 = vld [vmem:[%s361 + $0x3c] sm:$0xff]
                  %374 = vst [vmem:[%s362 + $0x28] sm:$0xff] %v373
                  %v375 = vld [vmem:[%s361 + $0x48] sm:$0xff]
                  %376 = vst [vmem:[%s362 + $0x30] sm:$0xff] %v375
                  %v377 = vld [vmem:[%s361 + $0x54] sm:$0xff]
                  %378 = vst [vmem:[%s362 + $0x38] sm:$0xff] %v377
                  %v379 = vld [vmem:[%s361 + $0x60] sm:$0xff]
                  %380 = vst [vmem:[%s362 + $0x40] sm:$0xff] %v379
                  %v381 = vld [vmem:[%s361 + $0x6c] sm:$0xff]
                  %382 = vst [vmem:[%s362 + $0x48] sm:$0xff] %v381
                  %v383 = vld [vmem:[%s361 + $0x78] sm:$0xff]
                  %384 = vst [vmem:[%s362 + $0x50] sm:$0xff] %v383
                  %v385 = vld [vmem:[%s361 + $0x84] sm:$0xff]
                  %386 = vst [vmem:[%s362 + $0x58] sm:$0xff] %v385
                  %v387 = vld [vmem:[%s361 + $0x90] sm:$0xff]
                  %388 = vst [vmem:[%s362 + $0x60] sm:$0xff] %v387
                  %v389 = vld [vmem:[%s361 + $0x9c] sm:$0xff]
                  %390 = vst [vmem:[%s362 + $0x68] sm:$0xff] %v389
                  %v391 = vld [vmem:[%s361 + $0xa8] sm:$0xff]
                  %392 = vst [vmem:[%s362 + $0x70] sm:$0xff] %v391
                  %v393 = vld [vmem:[%s361 + $0xb4] sm:$0xff]
                  %394 = vst [vmem:[%s362 + $0x78] sm:$0xff] %v393
                $region97: #{position_attention_forward.3} parent=91 // loop_footer
                  %s360 = sadd.s32 1, %s356
                $region98: #{position_attention_forward.3} parent=91 // loop_footer_branch
                  %355 = sbr.rel target = $region94
                $region99: #{position_attention_forward.3} parent=91 // loop_exit
                  _
              $region92: #{position_attention_forward.3} parent=76 // pred_fallthru
                _
              // Predicated region
              $region100: #{position_attention_forward.3} parent=76 // pred_check
                _
              $region101: #{position_attention_forward.3} parent=76 // pred_check_branch
                %396 = sbr.rel target = $region103
              $region102: #{position_attention_forward.3} parent=76 // pred_region
                _
              $region103: #{position_attention_forward.3} parent=76 // pred_fallthru
                _
            $region77: #{position_attention_forward.3} parent=72 // pred_fallthru
              _
            // Predicated region
            $region78: #{position_attention_forward.3} parent=72 // pred_check
              _
            $region79: #{position_attention_forward.3} parent=72 // pred_check_branch
              %311 = sbr.rel target = $region81
            $region80: #{position_attention_forward.3} parent=72 // pred_region
              loop: start=0, step=1, limit=1
              $region82: #{position_attention_forward.3} parent=80 // loop_pre_header
                _
              $region83: #{position_attention_forward.3} parent=80 // loop_header
                %s314 = sphi 0, %s318
                %p315 = scmp.ge.s32.totalorder %s314, 1
                %s319 = sphi %s305, %s305
                %s320 = sphi %s299, %s299
              $region84: #{position_attention_forward.3} parent=80 // loop_header_branch
                %317 = sbr.rel (%p315) target = $region88
              $region85: #{position_attention_forward.3} parent=80 // loop_body
                %v321 = vld [vmem:[%s319] sm:$0xff]
                %322 = vst [vmem:[%s320] sm:$0xff] %v321
                %v323 = vld [vmem:[%s319 + $0xc] sm:$0xff]
                %324 = vst [vmem:[%s320 + $0x8] sm:$0xff] %v323
                %v325 = vld [vmem:[%s319 + $0x18] sm:$0xff]
                %326 = vst [vmem:[%s320 + $0x10] sm:$0xff] %v325
                %v327 = vld [vmem:[%s319 + $0x24] sm:$0xff]
                %328 = vst [vmem:[%s320 + $0x18] sm:$0xff] %v327
                %v329 = vld [vmem:[%s319 + $0x30] sm:$0xff]
                %330 = vst [vmem:[%s320 + $0x20] sm:$0xff] %v329
                %v331 = vld [vmem:[%s319 + $0x3c] sm:$0xff]
                %332 = vst [vmem:[%s320 + $0x28] sm:$0xff] %v331
                %v333 = vld [vmem:[%s319 + $0x48] sm:$0xff]
                %334 = vst [vmem:[%s320 + $0x30] sm:$0xff] %v333
                %v335 = vld [vmem:[%s319 + $0x54] sm:$0xff]
                %336 = vst [vmem:[%s320 + $0x38] sm:$0xff] %v335
                %v337 = vld [vmem:[%s319 + $0x60] sm:$0xff]
                %338 = vst [vmem:[%s320 + $0x40] sm:$0xff] %v337
                %v339 = vld [vmem:[%s319 + $0x6c] sm:$0xff]
                %340 = vst [vmem:[%s320 + $0x48] sm:$0xff] %v339
                %v341 = vld [vmem:[%s319 + $0x78] sm:$0xff]
                %342 = vst [vmem:[%s320 + $0x50] sm:$0xff] %v341
                %v343 = vld [vmem:[%s319 + $0x84] sm:$0xff]
                %344 = vst [vmem:[%s320 + $0x58] sm:$0xff] %v343
                %v345 = vld [vmem:[%s319 + $0x90] sm:$0xff]
                %346 = vst [vmem:[%s320 + $0x60] sm:$0xff] %v345
                %v347 = vld [vmem:[%s319 + $0x9c] sm:$0xff]
                %348 = vst [vmem:[%s320 + $0x68] sm:$0xff] %v347
                %v349 = vld [vmem:[%s319 + $0xa8] sm:$0xff]
                %350 = vst [vmem:[%s320 + $0x70] sm:$0xff] %v349
                %v351 = vld [vmem:[%s319 + $0xb4] sm:$0xff]
                %352 = vst [vmem:[%s320 + $0x78] sm:$0xff] %v351
              $region86: #{position_attention_forward.3} parent=80 // loop_footer
                %s318 = sadd.s32 1, %s314
              $region87: #{position_attention_forward.3} parent=80 // loop_footer_branch
                %313 = sbr.rel target = $region83
              $region88: #{position_attention_forward.3} parent=80 // loop_exit
                _
            $region81: #{position_attention_forward.3} parent=72 // pred_fallthru
              _
          $region73: #{position_attention_forward.3} parent=68 // pred_fallthru
            _
          %397 = vnop
        $region69: #{position_attention_forward.3} parent=23 // pred_fallthru
          _
      $region24: #{position_attention_forward.3} parent=5 // pred_fallthru
        _
      %p398 = scmp.le.s32.totalorder 1, %s10
      %p399 = scmp.lt.s32.totalorder %s10, 3
      %p400 = pnand %p398, %p399
      %p401 = pneg %p400
      // Predicated region
      $region104: #{position_attention_forward.3} parent=5 // pred_check
        _
      $region105: #{position_attention_forward.3} parent=5 // pred_check_branch
        %403 = sbr.rel (%p400) target = $region107
      $region106: #{position_attention_forward.3} parent=5 // pred_region
        %s404 = ssub.s32 %s10, 1
        %s405 = sand.u32 %s44, 1
        %s406 = sand.u32 %s44, 1
        %s407 = smul.addr %s406, 64
        %s408 = scalar_lea.vmem [#allocation5], %s407
        // Predicated region
        $region108: #{position_attention_forward.3} parent=106 // pred_check
          %p409 = pneg %p57
        $region109: #{position_attention_forward.3} parent=106 // pred_check_branch
          %411 = sbr.rel (%p409) target = $region111
        $region110: #{position_attention_forward.3} parent=106 // pred_region
          _
        $region111: #{position_attention_forward.3} parent=106 // pred_fallthru
          _
        %s412 = sand.u32 %s72, 1
        %s413 = sand.u32 %s72, 1
        %s414 = smul.addr %s413, 128
        %s415 = scalar_lea.vmem [#allocation6], %s414
        // Predicated region
        $region112: #{position_attention_forward.3} parent=106 // pred_check
          %p416 = pneg %p85
        $region113: #{position_attention_forward.3} parent=106 // pred_check_branch
          %418 = sbr.rel (%p416) target = $region115
        $region114: #{position_attention_forward.3} parent=106 // pred_region
          _
        $region115: #{position_attention_forward.3} parent=106 // pred_fallthru
          _
        %s419 = sand.u32 %s44, 1
        %s420 = sand.u32 %s44, 1
        %s421 = smul.addr %s420, 64
        %s422 = scalar_lea.vmem [#allocation5], %s421
        %p423 = pneg %p57
        %p424 = pneg %p54
        %s425 = sand.u32 %s72, 1
        %s426 = sand.u32 %s72, 1
        %s427 = smul.addr %s426, 128
        %s428 = scalar_lea.vmem [#allocation6], %s427
        %p429 = pneg %p85
        %p430 = pneg %p82
        %p431 = pneg %p106
        %p432 = pneg %p103
        %p433 = pneg %p127
        %p434 = pneg %p124
        %p435 = pneg %p155
        %p436 = pneg %p152
        %s437 = smul.u32 16, %s21
        %p438 = scmp.lt.s32.totalorder %s20, 1
        %s439 = scalar_select %p438, %s20, 1
        %p440 = scmp.lt.s32.totalorder %s437, 15
        %s441 = scalar_select %p440, %s437, 15
        %s442 = smul.addr %s439, 16
        %s443 = sadd.s32 %s441, %s442
        %s444 = smul.addr %s443, 4
        %s445 = scalar_lea.vmem %s4, %s444
        %s446 = smul.u32 16, %s21
        %s447 = smul.u32 16, %s22
        %s448 = smul.u32 16, %s21
        %p449 = scmp.lt.s32.totalorder %s20, 1
        %s450 = scalar_select %p449, %s20, 1
        %p451 = scmp.lt.s32.totalorder %s448, 15
        %s452 = scalar_select %p451, %s448, 15
        %s453 = smul.addr %s450, 16
        %s454 = sadd.s32 %s452, %s453
        %s455 = smul.addr %s454, 4
        %s456 = scalar_lea.vmem %s4, %s455
        %s457 = smul.u32 16, %s21
        %p459 = scmp.eq.s32.totalorder %s22, 0
        // Predicated region
        $region116: #{position_attention_forward.3} parent=106 // pred_check
          %p460 = pneg %p459
        $region117: #{position_attention_forward.3} parent=106 // pred_check_branch
          %462 = sbr.rel (%p460) target = $region119
        $region118: #{position_attention_forward.3} parent=106 // pred_region
          %vm463 = vcmask 7168
          %464 = vst.msk [vmem:[#allocation2] sm:$0xff] %vm463, -inf
          %465 = vst.msk [vmem:[#allocation2 + $0x8] sm:$0xff] %vm463, -inf
          %466 = vst.msk [vmem:[#allocation2 + $0x10] sm:$0xff] %vm463, -inf
          %467 = vst.msk [vmem:[#allocation2 + $0x18] sm:$0xff] %vm463, -inf
          %468 = vst.msk [vmem:[#allocation2 + $0x20] sm:$0xff] %vm463, -inf
          %469 = vst.msk [vmem:[#allocation2 + $0x28] sm:$0xff] %vm463, -inf
          %470 = vst.msk [vmem:[#allocation2 + $0x30] sm:$0xff] %vm463, -inf
          %471 = vst.msk [vmem:[#allocation2 + $0x38] sm:$0xff] %vm463, -inf
          %472 = vst.msk [vmem:[#allocation2 + $0x40] sm:$0xff] %vm463, -inf
          %473 = vst.msk [vmem:[#allocation2 + $0x48] sm:$0xff] %vm463, -inf
          %474 = vst.msk [vmem:[#allocation2 + $0x50] sm:$0xff] %vm463, -inf
          %475 = vst.msk [vmem:[#allocation2 + $0x58] sm:$0xff] %vm463, -inf
          %476 = vst.msk [vmem:[#allocation2 + $0x60] sm:$0xff] %vm463, -inf
          %477 = vst.msk [vmem:[#allocation2 + $0x68] sm:$0xff] %vm463, -inf
          %478 = vst.msk [vmem:[#allocation2 + $0x70] sm:$0xff] %vm463, -inf
          %479 = vst.msk [vmem:[#allocation2 + $0x78] sm:$0xff] %vm463, -inf
          %480 = vst.msk [vmem:[#allocation3] sm:$0xff] %vm463, 0.0
          %481 = vst.msk [vmem:[#allocation3 + $0x8] sm:$0xff] %vm463, 0.0
          %482 = vst.msk [vmem:[#allocation3 + $0x10] sm:$0xff] %vm463, 0.0
          %483 = vst.msk [vmem:[#allocation3 + $0x18] sm:$0xff] %vm463, 0.0
          %484 = vst.msk [vmem:[#allocation3 + $0x20] sm:$0xff] %vm463, 0.0
          %485 = vst.msk [vmem:[#allocation3 + $0x28] sm:$0xff] %vm463, 0.0
          %486 = vst.msk [vmem:[#allocation3 + $0x30] sm:$0xff] %vm463, 0.0
          %487 = vst.msk [vmem:[#allocation3 + $0x38] sm:$0xff] %vm463, 0.0
          %488 = vst.msk [vmem:[#allocation3 + $0x40] sm:$0xff] %vm463, 0.0
          %489 = vst.msk [vmem:[#allocation3 + $0x48] sm:$0xff] %vm463, 0.0
          %490 = vst.msk [vmem:[#allocation3 + $0x50] sm:$0xff] %vm463, 0.0
          %491 = vst.msk [vmem:[#allocation3 + $0x58] sm:$0xff] %vm463, 0.0
          %492 = vst.msk [vmem:[#allocation3 + $0x60] sm:$0xff] %vm463, 0.0
          %493 = vst.msk [vmem:[#allocation3 + $0x68] sm:$0xff] %vm463, 0.0
          %494 = vst.msk [vmem:[#allocation3 + $0x70] sm:$0xff] %vm463, 0.0
          %495 = vst.msk [vmem:[#allocation3 + $0x78] sm:$0xff] %vm463, 0.0
          %496 = vst [vmem:[#allocation4] sm:$0xff] 0.0
          %497 = vst [vmem:[#allocation4 + $0x8] sm:$0xff] 0.0
          %498 = vst [vmem:[#allocation4 + $0x10] sm:$0xff] 0.0
          %499 = vst [vmem:[#allocation4 + $0x18] sm:$0xff] 0.0
          %500 = vst [vmem:[#allocation4 + $0x20] sm:$0xff] 0.0
          %501 = vst [vmem:[#allocation4 + $0x28] sm:$0xff] 0.0
          %502 = vst [vmem:[#allocation4 + $0x30] sm:$0xff] 0.0
          %503 = vst [vmem:[#allocation4 + $0x38] sm:$0xff] 0.0
          %504 = vst [vmem:[#allocation4 + $0x40] sm:$0xff] 0.0
          %505 = vst [vmem:[#allocation4 + $0x48] sm:$0xff] 0.0
          %506 = vst [vmem:[#allocation4 + $0x50] sm:$0xff] 0.0
          %507 = vst [vmem:[#allocation4 + $0x58] sm:$0xff] 0.0
          %508 = vst [vmem:[#allocation4 + $0x60] sm:$0xff] 0.0
          %509 = vst [vmem:[#allocation4 + $0x68] sm:$0xff] 0.0
          %510 = vst [vmem:[#allocation4 + $0x70] sm:$0xff] 0.0
          %511 = vst [vmem:[#allocation4 + $0x78] sm:$0xff] 0.0
        $region119: #{position_attention_forward.3} parent=106 // pred_fallthru
          _
        %v512 = vld [vmem:[%s415] sm:$0xf]
        %v513 = vld [vmem:[%s415 + $0x8] sm:$0xf]
        %v514 = vld [vmem:[%s415 + $0x10] sm:$0xf]
        %v515 = vld [vmem:[%s415 + $0x18] sm:$0xf]
        %v516 = vld [vmem:[%s415 + $0x20] sm:$0xf]
        %v517 = vld [vmem:[%s415 + $0x28] sm:$0xf]
        %v518 = vld [vmem:[%s415 + $0x30] sm:$0xf]
        %v519 = vld [vmem:[%s415 + $0x38] sm:$0xf]
        %v520 = vld [vmem:[%s415 + $0x40] sm:$0xf]
        %v521 = vld [vmem:[%s415 + $0x48] sm:$0xf]
        %v522 = vld [vmem:[%s415 + $0x50] sm:$0xf]
        %v523 = vld [vmem:[%s415 + $0x58] sm:$0xf]
        %v524 = vld [vmem:[%s415 + $0x60] sm:$0xf]
        %v525 = vld [vmem:[%s415 + $0x68] sm:$0xf]
        %v526 = vld [vmem:[%s415 + $0x70] sm:$0xf]
        %v527 = vld [vmem:[%s415 + $0x78] sm:$0xf]
        %v528 = vld [vmem:[%s415 + $0x4] sm:$0xf]
        %v529 = vld [vmem:[%s415 + $0xc] sm:$0xf]
        %v530 = vld [vmem:[%s415 + $0x14] sm:$0xf]
        %v531 = vld [vmem:[%s415 + $0x1c] sm:$0xf]
        %v532 = vld [vmem:[%s415 + $0x24] sm:$0xf]
        %v533 = vld [vmem:[%s415 + $0x2c] sm:$0xf]
        %v534 = vld [vmem:[%s415 + $0x34] sm:$0xf]
        %v535 = vld [vmem:[%s415 + $0x3c] sm:$0xf]
        %v536 = vld [vmem:[%s415 + $0x44] sm:$0xf]
        %v537 = vld [vmem:[%s415 + $0x4c] sm:$0xf]
        %v538 = vld [vmem:[%s415 + $0x54] sm:$0xf]
        %v539 = vld [vmem:[%s415 + $0x5c] sm:$0xf]
        %v540 = vld [vmem:[%s415 + $0x64] sm:$0xf]
        %v541 = vld [vmem:[%s415 + $0x6c] sm:$0xf]
        %v542 = vld [vmem:[%s415 + $0x74] sm:$0xf]
        %v543 = vld [vmem:[%s415 + $0x7c] sm:$0xf]
        %v544 = vld [vmem:[%s408] sm:$0xf]
        %v545 = vld [vmem:[%s408 + $0x4] sm:$0xf]
        %v546 = vld [vmem:[%s408 + $0x8] sm:$0xf]
        %v547 = vld [vmem:[%s408 + $0xc] sm:$0xf]
        %v548 = vld [vmem:[%s408 + $0x10] sm:$0xf]
        %v549 = vld [vmem:[%s408 + $0x14] sm:$0xf]
        %v550 = vld [vmem:[%s408 + $0x18] sm:$0xf]
        %v551 = vld [vmem:[%s408 + $0x1c] sm:$0xf]
        %v552 = vld [vmem:[%s408 + $0x20] sm:$0xf]
        %v553 = vld [vmem:[%s408 + $0x24] sm:$0xf]
        %v554 = vld [vmem:[%s408 + $0x28] sm:$0xf]
        %v555 = vld [vmem:[%s408 + $0x2c] sm:$0xf]
        %v556 = vld [vmem:[%s408 + $0x30] sm:$0xf]
        %v557 = vld [vmem:[%s408 + $0x34] sm:$0xf]
        %v558 = vld [vmem:[%s408 + $0x38] sm:$0xf]
        %v559 = vld [vmem:[%s408 + $0x3c] sm:$0xf]
        %v576 = vunpack.c.l.b16 %v544
        %v577 = vunpack.c.l.b16 %v545
        %v578 = vunpack.c.l.b16 %v546
        %v579 = vunpack.c.l.b16 %v547
        %v580 = vunpack.c.l.b16 %v548
        %v581 = vunpack.c.l.b16 %v549
        %v582 = vunpack.c.l.b16 %v550
        %v583 = vunpack.c.l.b16 %v551
        %v584 = vunpack.c.l.b16 %v552
        %v585 = vunpack.c.l.b16 %v553
        %v586 = vunpack.c.l.b16 %v554
        %v587 = vunpack.c.l.b16 %v555
        %v588 = vunpack.c.l.b16 %v556
        %v589 = vunpack.c.l.b16 %v557
        %v590 = vunpack.c.l.b16 %v558
        %v591 = vunpack.c.l.b16 %v559
        %v592 = vpack.c.b16 %v577, %v576
        %v593 = vpack.c.b16 %v579, %v578
        %v594 = vpack.c.b16 %v581, %v580
        %v595 = vpack.c.b16 %v583, %v582
        %v596 = vpack.c.b16 %v585, %v584
        %v597 = vpack.c.b16 %v587, %v586
        %v598 = vpack.c.b16 %v589, %v588
        %v599 = vpack.c.b16 %v591, %v590
        %v624 = vunpack.c.l.b16 %v512
        %v625 = vunpack.c.l.b16 %v513
        %v626 = vunpack.c.l.b16 %v514
        %v627 = vunpack.c.l.b16 %v515
        %v628 = vunpack.c.l.b16 %v516
        %v629 = vunpack.c.l.b16 %v517
        %v630 = vunpack.c.l.b16 %v518
        %v631 = vunpack.c.l.b16 %v519
        %v632 = vunpack.c.l.b16 %v520
        %v633 = vunpack.c.l.b16 %v521
        %v634 = vunpack.c.l.b16 %v522
        %v635 = vunpack.c.l.b16 %v523
        %v636 = vunpack.c.l.b16 %v524
        %v637 = vunpack.c.l.b16 %v525
        %v638 = vunpack.c.l.b16 %v526
        %v639 = vunpack.c.l.b16 %v527
        %v640 = vpack.c.b16 %v625, %v624
        %v641 = vpack.c.b16 %v627, %v626
        %v642 = vpack.c.b16 %v629, %v628
        %v643 = vpack.c.b16 %v631, %v630
        %v644 = vpack.c.b16 %v633, %v632
        %v645 = vpack.c.b16 %v635, %v634
        %v646 = vpack.c.b16 %v637, %v636
        %v647 = vpack.c.b16 %v639, %v638
        %656 = vmatprep.subr.bf16.mxu0 0
        %657 = vmatpush1.bf16.xpose.msra.mxu0 %v640
        %658 = vmatprep.subr.bf16.mxu0 0
        %659 = vmatpush1.bf16.xpose.msra.mxu0 %v641
        %660 = vmatprep.subr.bf16.mxu0 0
        %661 = vmatpush1.bf16.xpose.msra.mxu0 %v642
        %662 = vmatprep.subr.bf16.mxu0 0
        %663 = vmatpush1.bf16.xpose.msra.mxu0 %v643
        %664 = vmatprep.subr.bf16.mxu0 0
        %665 = vmatpush1.bf16.xpose.msra.mxu0 %v644
        %666 = vmatprep.subr.bf16.mxu0 0
        %667 = vmatpush1.bf16.xpose.msra.mxu0 %v645
        %668 = vmatprep.subr.bf16.mxu0 0
        %669 = vmatpush1.bf16.xpose.msra.mxu0 %v646
        %670 = vmatprep.subr.bf16.mxu0 0
        %671 = vmatpush1.bf16.xpose.msra.mxu0 %v647
        %672 = vmatprep.subr.bf16.mxu0 0
        %673 = vmatpush1.bf16.xpose.msra.mxu0 0
        %674 = vmatprep.subr.bf16.mxu0 0
        %675 = vmatpush1.bf16.xpose.msra.mxu0 0
        %676 = vmatprep.subr.bf16.mxu0 0
        %677 = vmatpush1.bf16.xpose.msra.mxu0 0
        %678 = vmatprep.subr.bf16.mxu0 0
        %679 = vmatpush1.bf16.xpose.msra.mxu0 0
        %680 = vmatprep.subr.bf16.mxu0 0
        %681 = vmatpush1.bf16.xpose.msra.mxu0 0
        %682 = vmatprep.subr.bf16.mxu0 0
        %683 = vmatpush1.bf16.xpose.msra.mxu0 0
        %684 = vmatprep.subr.bf16.mxu0 0
        %685 = vmatpush1.bf16.xpose.msra.mxu0 0
        %686 = vmatprep.subr.bf16.mxu0 0
        %687 = vmatpush1.bf16.xpose.msra.mxu0 0
        %688 = vmatprep.mubr.bf16.mxu0 0
        %689 = vmatmul.mubr.bf16.gmra.mrb[0].mxu0 %v592
        %v690 = vpop.f32.mrb[0].mxu0
        %v691 = vadd.f32 0.0, %v690
        %v692 = vpop.f32.mrb[0].mxu0
        %v693 = vpop.f32.mrb[0].mxu0
        %v694 = vadd.f32 0.0, %v693
        %v695 = vpop.f32.mrb[0].mxu0
        %696 = vmatprep.mubr.bf16.mxu0 0
        %697 = vmatmul.mubr.bf16.gmra.mrb[0].mxu0 %v593
        %v698 = vpop.f32.mrb[0].mxu0
        %v699 = vadd.f32 0.0, %v698
        %v700 = vpop.f32.mrb[0].mxu0
        %v701 = vpop.f32.mrb[0].mxu0
        %v702 = vadd.f32 0.0, %v701
        %v703 = vpop.f32.mrb[0].mxu0
        %704 = vmatprep.mubr.bf16.mxu0 0
        %705 = vmatmul.mubr.bf16.gmra.mrb[0].mxu0 %v594
        %v706 = vpop.f32.mrb[0].mxu0
        %v707 = vadd.f32 0.0, %v706
        %v708 = vpop.f32.mrb[0].mxu0
        %v709 = vpop.f32.mrb[0].mxu0
        %v710 = vadd.f32 0.0, %v709
        %v711 = vpop.f32.mrb[0].mxu0
        %712 = vmatprep.mubr.bf16.mxu0 0
        %713 = vmatmul.mubr.bf16.gmra.mrb[0].mxu0 %v595
        %v714 = vpop.f32.mrb[0].mxu0
        %v715 = vadd.f32 0.0, %v714
        %v716 = vpop.f32.mrb[0].mxu0
        %v717 = vpop.f32.mrb[0].mxu0
        %v718 = vadd.f32 0.0, %v717
        %v719 = vpop.f32.mrb[0].mxu0
        %720 = vmatprep.mubr.bf16.mxu0 0
        %721 = vmatmul.mubr.bf16.gmra.mrb[0].mxu0 %v596
        %v722 = vpop.f32.mrb[0].mxu0
        %v723 = vadd.f32 0.0, %v722
        %v724 = vpop.f32.mrb[0].mxu0
        %v725 = vpop.f32.mrb[0].mxu0
        %v726 = vadd.f32 0.0, %v725
        %v727 = vpop.f32.mrb[0].mxu0
        %728 = vmatprep.mubr.bf16.mxu0 0
        %729 = vmatmul.mubr.bf16.gmra.mrb[0].mxu0 %v597
        %v730 = vpop.f32.mrb[0].mxu0
        %v731 = vadd.f32 0.0, %v730
        %v732 = vpop.f32.mrb[0].mxu0
        %v733 = vpop.f32.mrb[0].mxu0
        %v734 = vadd.f32 0.0, %v733
        %v735 = vpop.f32.mrb[0].mxu0
        %736 = vmatprep.mubr.bf16.mxu0 0
        %737 = vmatmul.mubr.bf16.gmra.mrb[0].mxu0 %v598
        %v738 = vpop.f32.mrb[0].mxu0
        %v739 = vadd.f32 0.0, %v738
        %v740 = vpop.f32.mrb[0].mxu0
        %v741 = vpop.f32.mrb[0].mxu0
        %v742 = vadd.f32 0.0, %v741
        %v743 = vpop.f32.mrb[0].mxu0
        %744 = vmatprep.mubr.bf16.mxu0 0
        %745 = vmatmul.mubr.bf16.gmra.mrb[0].mxu0 %v599
        %v746 = vpop.f32.mrb[0].mxu0
        %v747 = vadd.f32 0.0, %v746
        %v748 = vpop.f32.mrb[0].mxu0
        %v749 = vpop.f32.mrb[0].mxu0
        %v750 = vadd.f32 0.0, %v749
        %v751 = vpop.f32.mrb[0].mxu0
        %752 = vdwg.mxu0
        %v753 = vld [vmem:[#allocation2] sm:$0xff]
        %v754 = vld [vmem:[#allocation2 + $0x8] sm:$0xff]
        %v755 = vld [vmem:[#allocation2 + $0x10] sm:$0xff]
        %v756 = vld [vmem:[#allocation2 + $0x18] sm:$0xff]
        %v757 = vld [vmem:[#allocation2 + $0x20] sm:$0xff]
        %v758 = vld [vmem:[#allocation2 + $0x28] sm:$0xff]
        %v759 = vld [vmem:[#allocation2 + $0x30] sm:$0xff]
        %v760 = vld [vmem:[#allocation2 + $0x38] sm:$0xff]
        %v761 = vld [vmem:[#allocation2 + $0x40] sm:$0xff]
        %v762 = vld [vmem:[#allocation2 + $0x48] sm:$0xff]
        %v763 = vld [vmem:[#allocation2 + $0x50] sm:$0xff]
        %v764 = vld [vmem:[#allocation2 + $0x58] sm:$0xff]
        %v765 = vld [vmem:[#allocation2 + $0x60] sm:$0xff]
        %v766 = vld [vmem:[#allocation2 + $0x68] sm:$0xff]
        %v767 = vld [vmem:[#allocation2 + $0x70] sm:$0xff]
        %v768 = vld [vmem:[#allocation2 + $0x78] sm:$0xff]
        %769 = vmax.xlane.f32.xlu0 %v691
        %v770 = vpop.xlane.xlu0 %769
        %771 = vmax.xlane.f32.xlu0 %v694
        %v772 = vpop.xlane.xlu0 %771
        %773 = vmax.xlane.f32.xlu0 %v699
        %v774 = vpop.xlane.xlu0 %773
        %775 = vmax.xlane.f32.xlu0 %v702
        %v776 = vpop.xlane.xlu0 %775
        %777 = vmax.xlane.f32.xlu0 %v707
        %v778 = vpop.xlane.xlu0 %777
        %779 = vmax.xlane.f32.xlu0 %v710
        %v780 = vpop.xlane.xlu0 %779
        %781 = vmax.xlane.f32.xlu0 %v715
        %v782 = vpop.xlane.xlu0 %781
        %783 = vmax.xlane.f32.xlu0 %v718
        %v784 = vpop.xlane.xlu0 %783
        %785 = vmax.xlane.f32.xlu0 %v723
        %v786 = vpop.xlane.xlu0 %785
        %787 = vmax.xlane.f32.xlu0 %v726
        %v788 = vpop.xlane.xlu0 %787
        %789 = vmax.xlane.f32.xlu0 %v731
        %v790 = vpop.xlane.xlu0 %789
        %791 = vmax.xlane.f32.xlu0 %v734
        %v792 = vpop.xlane.xlu0 %791
        %793 = vmax.xlane.f32.xlu0 %v739
        %v794 = vpop.xlane.xlu0 %793
        %795 = vmax.xlane.f32.xlu0 %v742
        %v796 = vpop.xlane.xlu0 %795
        %797 = vmax.xlane.f32.xlu0 %v747
        %v798 = vpop.xlane.xlu0 %797
        %799 = vmax.xlane.f32.xlu0 %v750
        %v800 = vpop.xlane.xlu0 %799
        %v801 = vmax.f32 %v753, %v770
        %v802 = vmax.f32 %v754, %v772
        %v803 = vmax.f32 %v755, %v774
        %v804 = vmax.f32 %v756, %v776
        %v805 = vmax.f32 %v757, %v778
        %v806 = vmax.f32 %v758, %v780
        %v807 = vmax.f32 %v759, %v782
        %v808 = vmax.f32 %v760, %v784
        %v809 = vmax.f32 %v761, %v786
        %v810 = vmax.f32 %v762, %v788
        %v811 = vmax.f32 %v763, %v790
        %v812 = vmax.f32 %v764, %v792
        %v813 = vmax.f32 %v765, %v794
        %v814 = vmax.f32 %v766, %v796
        %v815 = vmax.f32 %v767, %v798
        %v816 = vmax.f32 %v768, %v800
        %v817 = vsub.f32 %v753, %v801
        %v818 = vsub.f32 %v754, %v802
        %v819 = vsub.f32 %v755, %v803
        %v820 = vsub.f32 %v756, %v804
        %v821 = vsub.f32 %v757, %v805
        %v822 = vsub.f32 %v758, %v806
        %v823 = vsub.f32 %v759, %v807
        %v824 = vsub.f32 %v760, %v808
        %v825 = vsub.f32 %v761, %v809
        %v826 = vsub.f32 %v762, %v810
        %v827 = vsub.f32 %v763, %v811
        %v828 = vsub.f32 %v764, %v812
        %v829 = vsub.f32 %v765, %v813
        %v830 = vsub.f32 %v766, %v814
        %v831 = vsub.f32 %v767, %v815
        %v832 = vsub.f32 %v768, %v816
        %v833 = vmul.f32 %v817, 1.442695
        %v834 = vpow.pop %v833
        %v835 = vmul.f32 %v818, 1.442695
        %v836 = vpow.pop %v835
        %v837 = vmul.f32 %v819, 1.442695
        %v838 = vpow.pop %v837
        %v839 = vmul.f32 %v820, 1.442695
        %v840 = vpow.pop %v839
        %v841 = vmul.f32 %v821, 1.442695
        %v842 = vpow.pop %v841
        %v843 = vmul.f32 %v822, 1.442695
        %v844 = vpow.pop %v843
        %v845 = vmul.f32 %v823, 1.442695
        %v846 = vpow.pop %v845
        %v847 = vmul.f32 %v824, 1.442695
        %v848 = vpow.pop %v847
        %v849 = vmul.f32 %v825, 1.442695
        %v850 = vpow.pop %v849
        %v851 = vmul.f32 %v826, 1.442695
        %v852 = vpow.pop %v851
        %v853 = vmul.f32 %v827, 1.442695
        %v854 = vpow.pop %v853
        %v855 = vmul.f32 %v828, 1.442695
        %v856 = vpow.pop %v855
        %v857 = vmul.f32 %v829, 1.442695
        %v858 = vpow.pop %v857
        %v859 = vmul.f32 %v830, 1.442695
        %v860 = vpow.pop %v859
        %v861 = vmul.f32 %v831, 1.442695
        %v862 = vpow.pop %v861
        %v863 = vmul.f32 %v832, 1.442695
        %v864 = vpow.pop %v863
        %866 = vset.pattern.permute.xlu0 0
        %867 = vperm.xlu0 %866, %v801
        %v868 = vpop.permute.xlu0 %867
        %871 = vset.pattern.permute.xlu0 0
        %872 = vperm.xlu0 %871, %v802
        %v873 = vpop.permute.xlu0 %872
        %876 = vset.pattern.permute.xlu0 0
        %877 = vperm.xlu0 %876, %v803
        %v878 = vpop.permute.xlu0 %877
        %881 = vset.pattern.permute.xlu0 0
        %882 = vperm.xlu0 %881, %v804
        %v883 = vpop.permute.xlu0 %882
        %886 = vset.pattern.permute.xlu0 0
        %887 = vperm.xlu0 %886, %v805
        %v888 = vpop.permute.xlu0 %887
        %891 = vset.pattern.permute.xlu0 0
        %892 = vperm.xlu0 %891, %v806
        %v893 = vpop.permute.xlu0 %892
        %896 = vset.pattern.permute.xlu0 0
        %897 = vperm.xlu0 %896, %v807
        %v898 = vpop.permute.xlu0 %897
        %901 = vset.pattern.permute.xlu0 0
        %902 = vperm.xlu0 %901, %v808
        %v903 = vpop.permute.xlu0 %902
        %906 = vset.pattern.permute.xlu0 0
        %907 = vperm.xlu0 %906, %v809
        %v908 = vpop.permute.xlu0 %907
        %911 = vset.pattern.permute.xlu0 0
        %912 = vperm.xlu0 %911, %v810
        %v913 = vpop.permute.xlu0 %912
        %916 = vset.pattern.permute.xlu0 0
        %917 = vperm.xlu0 %916, %v811
        %v918 = vpop.permute.xlu0 %917
        %921 = vset.pattern.permute.xlu0 0
        %922 = vperm.xlu0 %921, %v812
        %v923 = vpop.permute.xlu0 %922
        %926 = vset.pattern.permute.xlu0 0
        %927 = vperm.xlu0 %926, %v813
        %v928 = vpop.permute.xlu0 %927
        %931 = vset.pattern.permute.xlu0 0
        %932 = vperm.xlu0 %931, %v814
        %v933 = vpop.permute.xlu0 %932
        %936 = vset.pattern.permute.xlu0 0
        %937 = vperm.xlu0 %936, %v815
        %v938 = vpop.permute.xlu0 %937
        %941 = vset.pattern.permute.xlu0 0
        %942 = vperm.xlu0 %941, %v816
        %v943 = vpop.permute.xlu0 %942
        %v945 = vsub.f32 %v691, %v868
        %v946 = vsub.f32 %v694, %v873
        %v947 = vsub.f32 %v699, %v878
        %v948 = vsub.f32 %v702, %v883
        %v949 = vsub.f32 %v707, %v888
        %v950 = vsub.f32 %v710, %v893
        %v951 = vsub.f32 %v715, %v898
        %v952 = vsub.f32 %v718, %v903
        %v953 = vsub.f32 %v723, %v908
        %v954 = vsub.f32 %v726, %v913
        %v955 = vsub.f32 %v731, %v918
        %v956 = vsub.f32 %v734, %v923
        %v957 = vsub.f32 %v739, %v928
        %v958 = vsub.f32 %v742, %v933
        %v959 = vsub.f32 %v747, %v938
        %v960 = vsub.f32 %v750, %v943
        %v961 = vmul.f32 %v945, 1.442695
        %v962 = vpow.pop %v961
        %v963 = vmul.f32 %v946, 1.442695
        %v964 = vpow.pop %v963
        %v965 = vmul.f32 %v947, 1.442695
        %v966 = vpow.pop %v965
        %v967 = vmul.f32 %v948, 1.442695
        %v968 = vpow.pop %v967
        %v969 = vmul.f32 %v949, 1.442695
        %v970 = vpow.pop %v969
        %v971 = vmul.f32 %v950, 1.442695
        %v972 = vpow.pop %v971
        %v973 = vmul.f32 %v951, 1.442695
        %v974 = vpow.pop %v973
        %v975 = vmul.f32 %v952, 1.442695
        %v976 = vpow.pop %v975
        %v977 = vmul.f32 %v953, 1.442695
        %v978 = vpow.pop %v977
        %v979 = vmul.f32 %v954, 1.442695
        %v980 = vpow.pop %v979
        %v981 = vmul.f32 %v955, 1.442695
        %v982 = vpow.pop %v981
        %v983 = vmul.f32 %v956, 1.442695
        %v984 = vpow.pop %v983
        %v985 = vmul.f32 %v957, 1.442695
        %v986 = vpow.pop %v985
        %v987 = vmul.f32 %v958, 1.442695
        %v988 = vpow.pop %v987
        %v989 = vmul.f32 %v959, 1.442695
        %v990 = vpow.pop %v989
        %v991 = vmul.f32 %v960, 1.442695
        %v992 = vpow.pop %v991
        %v993 = vld [vmem:[#allocation3] sm:$0xff]
        %v994 = vld [vmem:[#allocation3 + $0x8] sm:$0xff]
        %v995 = vld [vmem:[#allocation3 + $0x10] sm:$0xff]
        %v996 = vld [vmem:[#allocation3 + $0x18] sm:$0xff]
        %v997 = vld [vmem:[#allocation3 + $0x20] sm:$0xff]
        %v998 = vld [vmem:[#allocation3 + $0x28] sm:$0xff]
        %v999 = vld [vmem:[#allocation3 + $0x30] sm:$0xff]
        %v1000 = vld [vmem:[#allocation3 + $0x38] sm:$0xff]
        %v1001 = vld [vmem:[#allocation3 + $0x40] sm:$0xff]
        %v1002 = vld [vmem:[#allocation3 + $0x48] sm:$0xff]
        %v1003 = vld [vmem:[#allocation3 + $0x50] sm:$0xff]
        %v1004 = vld [vmem:[#allocation3 + $0x58] sm:$0xff]
        %v1005 = vld [vmem:[#allocation3 + $0x60] sm:$0xff]
        %v1006 = vld [vmem:[#allocation3 + $0x68] sm:$0xff]
        %v1007 = vld [vmem:[#allocation3 + $0x70] sm:$0xff]
        %v1008 = vld [vmem:[#allocation3 + $0x78] sm:$0xff]
        %v1009 = vmul.f32 %v834, %v993
        %v1010 = vmul.f32 %v836, %v994
        %v1011 = vmul.f32 %v838, %v995
        %v1012 = vmul.f32 %v840, %v996
        %v1013 = vmul.f32 %v842, %v997
        %v1014 = vmul.f32 %v844, %v998
        %v1015 = vmul.f32 %v846, %v999
        %v1016 = vmul.f32 %v848, %v1000
        %v1017 = vmul.f32 %v850, %v1001
        %v1018 = vmul.f32 %v852, %v1002
        %v1019 = vmul.f32 %v854, %v1003
        %v1020 = vmul.f32 %v856, %v1004
        %v1021 = vmul.f32 %v858, %v1005
        %v1022 = vmul.f32 %v860, %v1006
        %v1023 = vmul.f32 %v862, %v1007
        %v1024 = vmul.f32 %v864, %v1008
        %1025 = vadd.xlane.f32.xlu0 %v962
        %v1026 = vpop.xlane.xlu0 %1025
        %1027 = vadd.xlane.f32.xlu0 %v964
        %v1028 = vpop.xlane.xlu0 %1027
        %1029 = vadd.xlane.f32.xlu0 %v966
        %v1030 = vpop.xlane.xlu0 %1029
        %1031 = vadd.xlane.f32.xlu0 %v968
        %v1032 = vpop.xlane.xlu0 %1031
        %1033 = vadd.xlane.f32.xlu0 %v970
        %v1034 = vpop.xlane.xlu0 %1033
        %1035 = vadd.xlane.f32.xlu0 %v972
        %v1036 = vpop.xlane.xlu0 %1035
        %1037 = vadd.xlane.f32.xlu0 %v974
        %v1038 = vpop.xlane.xlu0 %1037
        %1039 = vadd.xlane.f32.xlu0 %v976
        %v1040 = vpop.xlane.xlu0 %1039
        %1041 = vadd.xlane.f32.xlu0 %v978
        %v1042 = vpop.xlane.xlu0 %1041
        %1043 = vadd.xlane.f32.xlu0 %v980
        %v1044 = vpop.xlane.xlu0 %1043
        %1045 = vadd.xlane.f32.xlu0 %v982
        %v1046 = vpop.xlane.xlu0 %1045
        %1047 = vadd.xlane.f32.xlu0 %v984
        %v1048 = vpop.xlane.xlu0 %1047
        %1049 = vadd.xlane.f32.xlu0 %v986
        %v1050 = vpop.xlane.xlu0 %1049
        %1051 = vadd.xlane.f32.xlu0 %v988
        %v1052 = vpop.xlane.xlu0 %1051
        %1053 = vadd.xlane.f32.xlu0 %v990
        %v1054 = vpop.xlane.xlu0 %1053
        %1055 = vadd.xlane.f32.xlu0 %v992
        %v1056 = vpop.xlane.xlu0 %1055
        %v1057 = vadd.f32 %v1009, %v1026
        %v1058 = vadd.f32 %v1010, %v1028
        %v1059 = vadd.f32 %v1011, %v1030
        %v1060 = vadd.f32 %v1012, %v1032
        %v1061 = vadd.f32 %v1013, %v1034
        %v1062 = vadd.f32 %v1014, %v1036
        %v1063 = vadd.f32 %v1015, %v1038
        %v1064 = vadd.f32 %v1016, %v1040
        %v1065 = vadd.f32 %v1017, %v1042
        %v1066 = vadd.f32 %v1018, %v1044
        %v1067 = vadd.f32 %v1019, %v1046
        %v1068 = vadd.f32 %v1020, %v1048
        %v1069 = vadd.f32 %v1021, %v1050
        %v1070 = vadd.f32 %v1022, %v1052
        %v1071 = vadd.f32 %v1023, %v1054
        %v1072 = vadd.f32 %v1024, %v1056
        %vm1073 = vcmask 7168
        %1074 = vst.msk [vmem:[#allocation3] sm:$0xff] %vm1073, %v1057
        %1075 = vst.msk [vmem:[#allocation3 + $0x8] sm:$0xff] %vm1073, %v1058
        %1076 = vst.msk [vmem:[#allocation3 + $0x10] sm:$0xff] %vm1073, %v1059
        %1077 = vst.msk [vmem:[#allocation3 + $0x18] sm:$0xff] %vm1073, %v1060
        %1078 = vst.msk [vmem:[#allocation3 + $0x20] sm:$0xff] %vm1073, %v1061
        %1079 = vst.msk [vmem:[#allocation3 + $0x28] sm:$0xff] %vm1073, %v1062
        %1080 = vst.msk [vmem:[#allocation3 + $0x30] sm:$0xff] %vm1073, %v1063
        %1081 = vst.msk [vmem:[#allocation3 + $0x38] sm:$0xff] %vm1073, %v1064
        %1082 = vst.msk [vmem:[#allocation3 + $0x40] sm:$0xff] %vm1073, %v1065
        %1083 = vst.msk [vmem:[#allocation3 + $0x48] sm:$0xff] %vm1073, %v1066
        %1084 = vst.msk [vmem:[#allocation3 + $0x50] sm:$0xff] %vm1073, %v1067
        %1085 = vst.msk [vmem:[#allocation3 + $0x58] sm:$0xff] %vm1073, %v1068
        %1086 = vst.msk [vmem:[#allocation3 + $0x60] sm:$0xff] %vm1073, %v1069
        %1087 = vst.msk [vmem:[#allocation3 + $0x68] sm:$0xff] %vm1073, %v1070
        %1088 = vst.msk [vmem:[#allocation3 + $0x70] sm:$0xff] %vm1073, %v1071
        %1089 = vst.msk [vmem:[#allocation3 + $0x78] sm:$0xff] %vm1073, %v1072
        %v1090 = vld [vmem:[#allocation4] sm:$0xff]
        %v1091 = vld [vmem:[#allocation4 + $0x8] sm:$0xff]
        %v1092 = vld [vmem:[#allocation4 + $0x10] sm:$0xff]
        %v1093 = vld [vmem:[#allocation4 + $0x18] sm:$0xff]
        %v1094 = vld [vmem:[#allocation4 + $0x20] sm:$0xff]
        %v1095 = vld [vmem:[#allocation4 + $0x28] sm:$0xff]
        %v1096 = vld [vmem:[#allocation4 + $0x30] sm:$0xff]
        %v1097 = vld [vmem:[#allocation4 + $0x38] sm:$0xff]
        %v1098 = vld [vmem:[#allocation4 + $0x40] sm:$0xff]
        %v1099 = vld [vmem:[#allocation4 + $0x48] sm:$0xff]
        %v1100 = vld [vmem:[#allocation4 + $0x50] sm:$0xff]
        %v1101 = vld [vmem:[#allocation4 + $0x58] sm:$0xff]
        %v1102 = vld [vmem:[#allocation4 + $0x60] sm:$0xff]
        %v1103 = vld [vmem:[#allocation4 + $0x68] sm:$0xff]
        %v1104 = vld [vmem:[#allocation4 + $0x70] sm:$0xff]
        %v1105 = vld [vmem:[#allocation4 + $0x78] sm:$0xff]
        %1107 = vset.pattern.permute.xlu0 0
        %1108 = vperm.xlu0 %1107, %v834
        %v1109 = vpop.permute.xlu0 %1108
        %1112 = vset.pattern.permute.xlu0 0
        %1113 = vperm.xlu0 %1112, %v836
        %v1114 = vpop.permute.xlu0 %1113
        %1117 = vset.pattern.permute.xlu0 0
        %1118 = vperm.xlu0 %1117, %v838
        %v1119 = vpop.permute.xlu0 %1118
        %1122 = vset.pattern.permute.xlu0 0
        %1123 = vperm.xlu0 %1122, %v840
        %v1124 = vpop.permute.xlu0 %1123
        %1127 = vset.pattern.permute.xlu0 0
        %1128 = vperm.xlu0 %1127, %v842
        %v1129 = vpop.permute.xlu0 %1128
        %1132 = vset.pattern.permute.xlu0 0
        %1133 = vperm.xlu0 %1132, %v844
        %v1134 = vpop.permute.xlu0 %1133
        %1137 = vset.pattern.permute.xlu0 0
        %1138 = vperm.xlu0 %1137, %v846
        %v1139 = vpop.permute.xlu0 %1138
        %1142 = vset.pattern.permute.xlu0 0
        %1143 = vperm.xlu0 %1142, %v848
        %v1144 = vpop.permute.xlu0 %1143
        %1147 = vset.pattern.permute.xlu0 0
        %1148 = vperm.xlu0 %1147, %v850
        %v1149 = vpop.permute.xlu0 %1148
        %1152 = vset.pattern.permute.xlu0 0
        %1153 = vperm.xlu0 %1152, %v852
        %v1154 = vpop.permute.xlu0 %1153
        %1157 = vset.pattern.permute.xlu0 0
        %1158 = vperm.xlu0 %1157, %v854
        %v1159 = vpop.permute.xlu0 %1158
        %1162 = vset.pattern.permute.xlu0 0
        %1163 = vperm.xlu0 %1162, %v856
        %v1164 = vpop.permute.xlu0 %1163
        %1167 = vset.pattern.permute.xlu0 0
        %1168 = vperm.xlu0 %1167, %v858
        %v1169 = vpop.permute.xlu0 %1168
        %1172 = vset.pattern.permute.xlu0 0
        %1173 = vperm.xlu0 %1172, %v860
        %v1174 = vpop.permute.xlu0 %1173
        %1177 = vset.pattern.permute.xlu0 0
        %1178 = vperm.xlu0 %1177, %v862
        %v1179 = vpop.permute.xlu0 %1178
        %1182 = vset.pattern.permute.xlu0 0
        %1183 = vperm.xlu0 %1182, %v864
        %v1184 = vpop.permute.xlu0 %1183
        %v1186 = vmul.f32 %v1109, %v1090
        %v1187 = vmul.f32 %v1114, %v1091
        %v1188 = vmul.f32 %v1119, %v1092
        %v1189 = vmul.f32 %v1124, %v1093
        %v1190 = vmul.f32 %v1129, %v1094
        %v1191 = vmul.f32 %v1134, %v1095
        %v1192 = vmul.f32 %v1139, %v1096
        %v1193 = vmul.f32 %v1144, %v1097
        %v1194 = vmul.f32 %v1149, %v1098
        %v1195 = vmul.f32 %v1154, %v1099
        %v1196 = vmul.f32 %v1159, %v1100
        %v1197 = vmul.f32 %v1164, %v1101
        %v1198 = vmul.f32 %v1169, %v1102
        %v1199 = vmul.f32 %v1174, %v1103
        %v1200 = vmul.f32 %v1179, %v1104
        %v1201 = vmul.f32 %v1184, %v1105
        %v1202 = vpack.c.bf16 %v964, %v962
        %v1203 = vpack.c.bf16 %v968, %v966
        %v1204 = vpack.c.bf16 %v972, %v970
        %v1205 = vpack.c.bf16 %v976, %v974
        %v1206 = vpack.c.bf16 %v980, %v978
        %v1207 = vpack.c.bf16 %v984, %v982
        %v1208 = vpack.c.bf16 %v988, %v986
        %v1209 = vpack.c.bf16 %v992, %v990
        %v1226 = vunpack.c.l.b16 %v528
        %v1227 = vunpack.c.l.b16 %v529
        %v1228 = vunpack.c.l.b16 %v530
        %v1229 = vunpack.c.l.b16 %v531
        %v1230 = vunpack.c.l.b16 %v532
        %v1231 = vunpack.c.l.b16 %v533
        %v1232 = vunpack.c.l.b16 %v534
        %v1233 = vunpack.c.l.b16 %v535
        %v1234 = vunpack.c.l.b16 %v536
        %v1235 = vunpack.c.l.b16 %v537
        %v1236 = vunpack.c.l.b16 %v538
        %v1237 = vunpack.c.l.b16 %v539
        %v1238 = vunpack.c.l.b16 %v540
        %v1239 = vunpack.c.l.b16 %v541
        %v1240 = vunpack.c.l.b16 %v542
        %v1241 = vunpack.c.l.b16 %v543
        %v1242 = vpack.c.b16 %v1227, %v1226
        %v1243 = vpack.c.b16 %v1229, %v1228
        %v1244 = vpack.c.b16 %v1231, %v1230
        %v1245 = vpack.c.b16 %v1233, %v1232
        %v1246 = vpack.c.b16 %v1235, %v1234
        %v1247 = vpack.c.b16 %v1237, %v1236
        %v1248 = vpack.c.b16 %v1239, %v1238
        %v1249 = vpack.c.b16 %v1241, %v1240
        %1258 = vmatprep.subr.bf16.mxu0 0
        %1259 = vmatpush1.bf16.msra.mxu0 %v1242
        %1260 = vmatprep.subr.bf16.mxu0 0
        %1261 = vmatpush1.bf16.msra.mxu0 %v1243
        %1262 = vmatprep.subr.bf16.mxu0 0
        %1263 = vmatpush1.bf16.msra.mxu0 %v1244
        %1264 = vmatprep.subr.bf16.mxu0 0
        %1265 = vmatpush1.bf16.msra.mxu0 %v1245
        %1266 = vmatprep.subr.bf16.mxu0 0
        %1267 = vmatpush1.bf16.msra.mxu0 %v1246
        %1268 = vmatprep.subr.bf16.mxu0 0
        %1269 = vmatpush1.bf16.msra.mxu0 %v1247
        %1270 = vmatprep.subr.bf16.mxu0 0
        %1271 = vmatpush1.bf16.msra.mxu0 %v1248
        %1272 = vmatprep.subr.bf16.mxu0 0
        %1273 = vmatpush1.bf16.msra.mxu0 %v1249
        %1274 = vmatprep.subr.bf16.mxu0 0
        %1275 = vmatpush1.bf16.msra.mxu0 0
        %1276 = vmatprep.subr.bf16.mxu0 0
        %1277 = vmatpush1.bf16.msra.mxu0 0
        %1278 = vmatprep.subr.bf16.mxu0 0
        %1279 = vmatpush1.bf16.msra.mxu0 0
        %1280 = vmatprep.subr.bf16.mxu0 0
        %1281 = vmatpush1.bf16.msra.mxu0 0
        %1282 = vmatprep.subr.bf16.mxu0 0
        %1283 = vmatpush1.bf16.msra.mxu0 0
        %1284 = vmatprep.subr.bf16.mxu0 0
        %1285 = vmatpush1.bf16.msra.mxu0 0
        %1286 = vmatprep.subr.bf16.mxu0 0
        %1287 = vmatpush1.bf16.msra.mxu0 0
        %1288 = vmatprep.subr.bf16.mxu0 0
        %1289 = vmatpush1.bf16.msra.mxu0 0
        %1290 = vmatprep.mubr.bf16.mxu0 0
        %1291 = vmatmul.mubr.bf16.gmra.mrb[0].mxu0 %v1202
        %v1292 = vpop.f32.mrb[0].mxu0
        %v1293 = vadd.f32 0.0, %v1292
        %v1294 = vpop.f32.mrb[0].mxu0
        %v1295 = vpop.f32.mrb[0].mxu0
        %v1296 = vadd.f32 0.0, %v1295
        %v1297 = vpop.f32.mrb[0].mxu0
        %1298 = vmatprep.mubr.bf16.mxu0 0
        %1299 = vmatmul.mubr.bf16.gmra.mrb[0].mxu0 %v1203
        %v1300 = vpop.f32.mrb[0].mxu0
        %v1301 = vadd.f32 0.0, %v1300
        %v1302 = vpop.f32.mrb[0].mxu0
        %v1303 = vpop.f32.mrb[0].mxu0
        %v1304 = vadd.f32 0.0, %v1303
        %v1305 = vpop.f32.mrb[0].mxu0
        %1306 = vmatprep.mubr.bf16.mxu0 0
        %1307 = vmatmul.mubr.bf16.gmra.mrb[0].mxu0 %v1204
        %v1308 = vpop.f32.mrb[0].mxu0
        %v1309 = vadd.f32 0.0, %v1308
        %v1310 = vpop.f32.mrb[0].mxu0
        %v1311 = vpop.f32.mrb[0].mxu0
        %v1312 = vadd.f32 0.0, %v1311
        %v1313 = vpop.f32.mrb[0].mxu0
        %1314 = vmatprep.mubr.bf16.mxu0 0
        %1315 = vmatmul.mubr.bf16.gmra.mrb[0].mxu0 %v1205
        %v1316 = vpop.f32.mrb[0].mxu0
        %v1317 = vadd.f32 0.0, %v1316
        %v1318 = vpop.f32.mrb[0].mxu0
        %v1319 = vpop.f32.mrb[0].mxu0
        %v1320 = vadd.f32 0.0, %v1319
        %v1321 = vpop.f32.mrb[0].mxu0
        %1322 = vmatprep.mubr.bf16.mxu0 0
        %1323 = vmatmul.mubr.bf16.gmra.mrb[0].mxu0 %v1206
        %v1324 = vpop.f32.mrb[0].mxu0
        %v1325 = vadd.f32 0.0, %v1324
        %v1326 = vpop.f32.mrb[0].mxu0
        %v1327 = vpop.f32.mrb[0].mxu0
        %v1328 = vadd.f32 0.0, %v1327
        %v1329 = vpop.f32.mrb[0].mxu0
        %1330 = vmatprep.mubr.bf16.mxu0 0
        %1331 = vmatmul.mubr.bf16.gmra.mrb[0].mxu0 %v1207
        %v1332 = vpop.f32.mrb[0].mxu0
        %v1333 = vadd.f32 0.0, %v1332
        %v1334 = vpop.f32.mrb[0].mxu0
        %v1335 = vpop.f32.mrb[0].mxu0
        %v1336 = vadd.f32 0.0, %v1335
        %v1337 = vpop.f32.mrb[0].mxu0
        %1338 = vmatprep.mubr.bf16.mxu0 0
        %1339 = vmatmul.mubr.bf16.gmra.mrb[0].mxu0 %v1208
        %v1340 = vpop.f32.mrb[0].mxu0
        %v1341 = vadd.f32 0.0, %v1340
        %v1342 = vpop.f32.mrb[0].mxu0
        %v1343 = vpop.f32.mrb[0].mxu0
        %v1344 = vadd.f32 0.0, %v1343
        %v1345 = vpop.f32.mrb[0].mxu0
        %1346 = vmatprep.mubr.bf16.mxu0 0
        %1347 = vmatmul.mubr.bf16.gmra.mrb[0].mxu0 %v1209
        %v1348 = vpop.f32.mrb[0].mxu0
        %v1349 = vadd.f32 0.0, %v1348
        %v1350 = vpop.f32.mrb[0].mxu0
        %v1351 = vpop.f32.mrb[0].mxu0
        %v1352 = vadd.f32 0.0, %v1351
        %v1353 = vpop.f32.mrb[0].mxu0
        %1354 = vdwg.mxu0
        %v1355 = vadd.f32 %v1186, %v1293
        %v1356 = vadd.f32 %v1187, %v1296
        %v1357 = vadd.f32 %v1188, %v1301
        %v1358 = vadd.f32 %v1189, %v1304
        %v1359 = vadd.f32 %v1190, %v1309
        %v1360 = vadd.f32 %v1191, %v1312
        %v1361 = vadd.f32 %v1192, %v1317
        %v1362 = vadd.f32 %v1193, %v1320
        %v1363 = vadd.f32 %v1194, %v1325
        %v1364 = vadd.f32 %v1195, %v1328
        %v1365 = vadd.f32 %v1196, %v1333
        %v1366 = vadd.f32 %v1197, %v1336
        %v1367 = vadd.f32 %v1198, %v1341
        %v1368 = vadd.f32 %v1199, %v1344
        %v1369 = vadd.f32 %v1200, %v1349
        %v1370 = vadd.f32 %v1201, %v1352
        %1371 = vst [vmem:[#allocation4] sm:$0xff] %v1355
        %1372 = vst [vmem:[#allocation4 + $0x8] sm:$0xff] %v1356
        %1373 = vst [vmem:[#allocation4 + $0x10] sm:$0xff] %v1357
        %1374 = vst [vmem:[#allocation4 + $0x18] sm:$0xff] %v1358
        %1375 = vst [vmem:[#allocation4 + $0x20] sm:$0xff] %v1359
        %1376 = vst [vmem:[#allocation4 + $0x28] sm:$0xff] %v1360
        %1377 = vst [vmem:[#allocation4 + $0x30] sm:$0xff] %v1361
        %1378 = vst [vmem:[#allocation4 + $0x38] sm:$0xff] %v1362
        %1379 = vst [vmem:[#allocation4 + $0x40] sm:$0xff] %v1363
        %1380 = vst [vmem:[#allocation4 + $0x48] sm:$0xff] %v1364
        %1381 = vst [vmem:[#allocation4 + $0x50] sm:$0xff] %v1365
        %1382 = vst [vmem:[#allocation4 + $0x58] sm:$0xff] %v1366
        %1383 = vst [vmem:[#allocation4 + $0x60] sm:$0xff] %v1367
        %1384 = vst [vmem:[#allocation4 + $0x68] sm:$0xff] %v1368
        %1385 = vst [vmem:[#allocation4 + $0x70] sm:$0xff] %v1369
        %1386 = vst [vmem:[#allocation4 + $0x78] sm:$0xff] %v1370
        %1387 = vst.msk [vmem:[#allocation2] sm:$0xff] %vm1073, %v801
        %1388 = vst.msk [vmem:[#allocation2 + $0x8] sm:$0xff] %vm1073, %v802
        %1389 = vst.msk [vmem:[#allocation2 + $0x10] sm:$0xff] %vm1073, %v803
        %1390 = vst.msk [vmem:[#allocation2 + $0x18] sm:$0xff] %vm1073, %v804
        %1391 = vst.msk [vmem:[#allocation2 + $0x20] sm:$0xff] %vm1073, %v805
        %1392 = vst.msk [vmem:[#allocation2 + $0x28] sm:$0xff] %vm1073, %v806
        %1393 = vst.msk [vmem:[#allocation2 + $0x30] sm:$0xff] %vm1073, %v807
        %1394 = vst.msk [vmem:[#allocation2 + $0x38] sm:$0xff] %vm1073, %v808
        %1395 = vst.msk [vmem:[#allocation2 + $0x40] sm:$0xff] %vm1073, %v809
        %1396 = vst.msk [vmem:[#allocation2 + $0x48] sm:$0xff] %vm1073, %v810
        %1397 = vst.msk [vmem:[#allocation2 + $0x50] sm:$0xff] %vm1073, %v811
        %1398 = vst.msk [vmem:[#allocation2 + $0x58] sm:$0xff] %vm1073, %v812
        %1399 = vst.msk [vmem:[#allocation2 + $0x60] sm:$0xff] %vm1073, %v813
        %1400 = vst.msk [vmem:[#allocation2 + $0x68] sm:$0xff] %vm1073, %v814
        %1401 = vst.msk [vmem:[#allocation2 + $0x70] sm:$0xff] %vm1073, %v815
        %1402 = vst.msk [vmem:[#allocation2 + $0x78] sm:$0xff] %vm1073, %v816
        // Predicated region
        $region120: #{position_attention_forward.3} parent=106 // pred_check
          %p1403 = pneg %p459
        $region121: #{position_attention_forward.3} parent=106 // pred_check_branch
          %1405 = sbr.rel (%p1403) target = $region123
        $region122: #{position_attention_forward.3} parent=106 // pred_region
          %v1406 = vld [vmem:[#allocation4] sm:$0xff]
          %v1407 = vld [vmem:[#allocation4 + $0x8] sm:$0xff]
          %v1408 = vld [vmem:[#allocation4 + $0x10] sm:$0xff]
          %v1409 = vld [vmem:[#allocation4 + $0x18] sm:$0xff]
          %v1410 = vld [vmem:[#allocation4 + $0x20] sm:$0xff]
          %v1411 = vld [vmem:[#allocation4 + $0x28] sm:$0xff]
          %v1412 = vld [vmem:[#allocation4 + $0x30] sm:$0xff]
          %v1413 = vld [vmem:[#allocation4 + $0x38] sm:$0xff]
          %v1414 = vld [vmem:[#allocation4 + $0x40] sm:$0xff]
          %v1415 = vld [vmem:[#allocation4 + $0x48] sm:$0xff]
          %v1416 = vld [vmem:[#allocation4 + $0x50] sm:$0xff]
          %v1417 = vld [vmem:[#allocation4 + $0x58] sm:$0xff]
          %v1418 = vld [vmem:[#allocation4 + $0x60] sm:$0xff]
          %v1419 = vld [vmem:[#allocation4 + $0x68] sm:$0xff]
          %v1420 = vld [vmem:[#allocation4 + $0x70] sm:$0xff]
          %v1421 = vld [vmem:[#allocation4 + $0x78] sm:$0xff]
          %v1422 = vld [vmem:[#allocation3] sm:$0xff]
          %v1423 = vld [vmem:[#allocation3 + $0x8] sm:$0xff]
          %v1424 = vld [vmem:[#allocation3 + $0x10] sm:$0xff]
          %v1425 = vld [vmem:[#allocation3 + $0x18] sm:$0xff]
          %v1426 = vld [vmem:[#allocation3 + $0x20] sm:$0xff]
          %v1427 = vld [vmem:[#allocation3 + $0x28] sm:$0xff]
          %v1428 = vld [vmem:[#allocation3 + $0x30] sm:$0xff]
          %v1429 = vld [vmem:[#allocation3 + $0x38] sm:$0xff]
          %v1430 = vld [vmem:[#allocation3 + $0x40] sm:$0xff]
          %v1431 = vld [vmem:[#allocation3 + $0x48] sm:$0xff]
          %v1432 = vld [vmem:[#allocation3 + $0x50] sm:$0xff]
          %v1433 = vld [vmem:[#allocation3 + $0x58] sm:$0xff]
          %v1434 = vld [vmem:[#allocation3 + $0x60] sm:$0xff]
          %v1435 = vld [vmem:[#allocation3 + $0x68] sm:$0xff]
          %v1436 = vld [vmem:[#allocation3 + $0x70] sm:$0xff]
          %v1437 = vld [vmem:[#allocation3 + $0x78] sm:$0xff]
          %1439 = vset.pattern.permute.xlu0 0
          %1440 = vperm.xlu0 %1439, %v1422
          %v1441 = vpop.permute.xlu0 %1440
          %1444 = vset.pattern.permute.xlu0 0
          %1445 = vperm.xlu0 %1444, %v1423
          %v1446 = vpop.permute.xlu0 %1445
          %1449 = vset.pattern.permute.xlu0 0
          %1450 = vperm.xlu0 %1449, %v1424
          %v1451 = vpop.permute.xlu0 %1450
          %1454 = vset.pattern.permute.xlu0 0
          %1455 = vperm.xlu0 %1454, %v1425
          %v1456 = vpop.permute.xlu0 %1455
          %1459 = vset.pattern.permute.xlu0 0
          %1460 = vperm.xlu0 %1459, %v1426
          %v1461 = vpop.permute.xlu0 %1460
          %1464 = vset.pattern.permute.xlu0 0
          %1465 = vperm.xlu0 %1464, %v1427
          %v1466 = vpop.permute.xlu0 %1465
          %1469 = vset.pattern.permute.xlu0 0
          %1470 = vperm.xlu0 %1469, %v1428
          %v1471 = vpop.permute.xlu0 %1470
          %1474 = vset.pattern.permute.xlu0 0
          %1475 = vperm.xlu0 %1474, %v1429
          %v1476 = vpop.permute.xlu0 %1475
          %1479 = vset.pattern.permute.xlu0 0
          %1480 = vperm.xlu0 %1479, %v1430
          %v1481 = vpop.permute.xlu0 %1480
          %1484 = vset.pattern.permute.xlu0 0
          %1485 = vperm.xlu0 %1484, %v1431
          %v1486 = vpop.permute.xlu0 %1485
          %1489 = vset.pattern.permute.xlu0 0
          %1490 = vperm.xlu0 %1489, %v1432
          %v1491 = vpop.permute.xlu0 %1490
          %1494 = vset.pattern.permute.xlu0 0
          %1495 = vperm.xlu0 %1494, %v1433
          %v1496 = vpop.permute.xlu0 %1495
          %1499 = vset.pattern.permute.xlu0 0
          %1500 = vperm.xlu0 %1499, %v1434
          %v1501 = vpop.permute.xlu0 %1500
          %1504 = vset.pattern.permute.xlu0 0
          %1505 = vperm.xlu0 %1504, %v1435
          %v1506 = vpop.permute.xlu0 %1505
          %1509 = vset.pattern.permute.xlu0 0
          %1510 = vperm.xlu0 %1509, %v1436
          %v1511 = vpop.permute.xlu0 %1510
          %1514 = vset.pattern.permute.xlu0 0
          %1515 = vperm.xlu0 %1514, %v1437
          %v1516 = vpop.permute.xlu0 %1515
          %v1518 = vrcp.pop %v1441
          %v1519 = vmul.f32 %v1406, %v1518
          %v1520 = vrcp.pop %v1446
          %v1521 = vmul.f32 %v1407, %v1520
          %v1522 = vrcp.pop %v1451
          %v1523 = vmul.f32 %v1408, %v1522
          %v1524 = vrcp.pop %v1456
          %v1525 = vmul.f32 %v1409, %v1524
          %v1526 = vrcp.pop %v1461
          %v1527 = vmul.f32 %v1410, %v1526
          %v1528 = vrcp.pop %v1466
          %v1529 = vmul.f32 %v1411, %v1528
          %v1530 = vrcp.pop %v1471
          %v1531 = vmul.f32 %v1412, %v1530
          %v1532 = vrcp.pop %v1476
          %v1533 = vmul.f32 %v1413, %v1532
          %v1534 = vrcp.pop %v1481
          %v1535 = vmul.f32 %v1414, %v1534
          %v1536 = vrcp.pop %v1486
          %v1537 = vmul.f32 %v1415, %v1536
          %v1538 = vrcp.pop %v1491
          %v1539 = vmul.f32 %v1416, %v1538
          %v1540 = vrcp.pop %v1496
          %v1541 = vmul.f32 %v1417, %v1540
          %v1542 = vrcp.pop %v1501
          %v1543 = vmul.f32 %v1418, %v1542
          %v1544 = vrcp.pop %v1506
          %v1545 = vmul.f32 %v1419, %v1544
          %v1546 = vrcp.pop %v1511
          %v1547 = vmul.f32 %v1420, %v1546
          %v1548 = vrcp.pop %v1516
          %v1549 = vmul.f32 %v1421, %v1548
          %v1550 = vpack.c.bf16 %v1521, %v1519
          %v1551 = vpack.c.bf16 %v1525, %v1523
          %v1552 = vpack.c.bf16 %v1529, %v1527
          %v1553 = vpack.c.bf16 %v1533, %v1531
          %v1554 = vpack.c.bf16 %v1537, %v1535
          %v1555 = vpack.c.bf16 %v1541, %v1539
          %v1556 = vpack.c.bf16 %v1545, %v1543
          %v1557 = vpack.c.bf16 %v1549, %v1547
          %v1558 = vld [vmem:[%s2] sm:$0xf]
          %v1559 = vld [vmem:[%s2 + $0x4] sm:$0xf]
          %v1560 = vld [vmem:[%s2 + $0x8] sm:$0xf]
          %v1561 = vld [vmem:[%s2 + $0xc] sm:$0xf]
          %v1562 = vld [vmem:[%s2 + $0x10] sm:$0xf]
          %v1563 = vld [vmem:[%s2 + $0x14] sm:$0xf]
          %v1564 = vld [vmem:[%s2 + $0x18] sm:$0xf]
          %v1565 = vld [vmem:[%s2 + $0x1c] sm:$0xf]
          %v1566 = vld [vmem:[%s2 + $0x20] sm:$0xf]
          %v1567 = vld [vmem:[%s2 + $0x24] sm:$0xf]
          %v1568 = vld [vmem:[%s2 + $0x28] sm:$0xf]
          %v1569 = vld [vmem:[%s2 + $0x2c] sm:$0xf]
          %v1570 = vld [vmem:[%s2 + $0x30] sm:$0xf]
          %v1571 = vld [vmem:[%s2 + $0x34] sm:$0xf]
          %v1572 = vld [vmem:[%s2 + $0x38] sm:$0xf]
          %v1573 = vld [vmem:[%s2 + $0x3c] sm:$0xf]
          %v1574 = vld [vmem:[%s3] sm:$0x1]
          %v1576 = vlaneseq
          %v1577 = vshrl.u32 %v1576, 7
          %v1578 = vsub.s32 0, %v1577
          %v1579 = vrot.slane %v1574, %v1578
          %v1597 = vunpack.c.l.b16 %v1558
          %v1598 = vunpack.c.l.b16 %v1559
          %v1599 = vunpack.c.l.b16 %v1560
          %v1600 = vunpack.c.l.b16 %v1561
          %v1601 = vunpack.c.l.b16 %v1562
          %v1602 = vunpack.c.l.b16 %v1563
          %v1603 = vunpack.c.l.b16 %v1564
          %v1604 = vunpack.c.l.b16 %v1565
          %v1605 = vunpack.c.l.b16 %v1566
          %v1606 = vunpack.c.l.b16 %v1567
          %v1607 = vunpack.c.l.b16 %v1568
          %v1608 = vunpack.c.l.b16 %v1569
          %v1609 = vunpack.c.l.b16 %v1570
          %v1610 = vunpack.c.l.b16 %v1571
          %v1611 = vunpack.c.l.b16 %v1572
          %v1612 = vunpack.c.l.b16 %v1573
          %v1613 = vpack.c.b16 %v1598, %v1597
          %v1614 = vpack.c.b16 %v1600, %v1599
          %v1615 = vpack.c.b16 %v1602, %v1601
          %v1616 = vpack.c.b16 %v1604, %v1603
          %v1617 = vpack.c.b16 %v1606, %v1605
          %v1618 = vpack.c.b16 %v1608, %v1607
          %v1619 = vpack.c.b16 %v1610, %v1609
          %v1620 = vpack.c.b16 %v1612, %v1611
          %1629 = vmatprep.subr.bf16.mxu0 0
          %1630 = vmatpush1.bf16.msra.mxu0 %v1613
          %1631 = vmatprep.subr.bf16.mxu0 0
          %1632 = vmatpush1.bf16.msra.mxu0 %v1614
          %1633 = vmatprep.subr.bf16.mxu0 0
          %1634 = vmatpush1.bf16.msra.mxu0 %v1615
          %1635 = vmatprep.subr.bf16.mxu0 0
          %1636 = vmatpush1.bf16.msra.mxu0 %v1616
          %1637 = vmatprep.subr.bf16.mxu0 0
          %1638 = vmatpush1.bf16.msra.mxu0 %v1617
          %1639 = vmatprep.subr.bf16.mxu0 0
          %1640 = vmatpush1.bf16.msra.mxu0 %v1618
          %1641 = vmatprep.subr.bf16.mxu0 0
          %1642 = vmatpush1.bf16.msra.mxu0 %v1619
          %1643 = vmatprep.subr.bf16.mxu0 0
          %1644 = vmatpush1.bf16.msra.mxu0 %v1620
          %1645 = vmatprep.subr.bf16.mxu0 0
          %1646 = vmatpush1.bf16.msra.mxu0 0
          %1647 = vmatprep.subr.bf16.mxu0 0
          %1648 = vmatpush1.bf16.msra.mxu0 0
          %1649 = vmatprep.subr.bf16.mxu0 0
          %1650 = vmatpush1.bf16.msra.mxu0 0
          %1651 = vmatprep.subr.bf16.mxu0 0
          %1652 = vmatpush1.bf16.msra.mxu0 0
          %1653 = vmatprep.subr.bf16.mxu0 0
          %1654 = vmatpush1.bf16.msra.mxu0 0
          %1655 = vmatprep.subr.bf16.mxu0 0
          %1656 = vmatpush1.bf16.msra.mxu0 0
          %1657 = vmatprep.subr.bf16.mxu0 0
          %1658 = vmatpush1.bf16.msra.mxu0 0
          %1659 = vmatprep.subr.bf16.mxu0 0
          %1660 = vmatpush1.bf16.msra.mxu0 0
          %1661 = vmatprep.mubr.bf16.mxu0 0
          %1662 = vmatmul.mubr.bf16.gmra.mrb[0].mxu0 %v1550
          %v1663 = vpop.f32.mrb[0].mxu0
          %v1664 = vadd.f32 %v1579, %v1663
          %v1665 = vpop.f32.mrb[0].mxu0
          %v1666 = vpop.f32.mrb[0].mxu0
          %v1667 = vadd.f32 %v1579, %v1666
          %v1668 = vpop.f32.mrb[0].mxu0
          %1669 = vmatprep.mubr.bf16.mxu0 0
          %1670 = vmatmul.mubr.bf16.gmra.mrb[0].mxu0 %v1551
          %v1671 = vpop.f32.mrb[0].mxu0
          %v1672 = vadd.f32 %v1579, %v1671
          %v1673 = vpop.f32.mrb[0].mxu0
          %v1674 = vpop.f32.mrb[0].mxu0
          %v1675 = vadd.f32 %v1579, %v1674
          %v1676 = vpop.f32.mrb[0].mxu0
          %1677 = vmatprep.mubr.bf16.mxu0 0
          %1678 = vmatmul.mubr.bf16.gmra.mrb[0].mxu0 %v1552
          %v1679 = vpop.f32.mrb[0].mxu0
          %v1680 = vadd.f32 %v1579, %v1679
          %v1681 = vpop.f32.mrb[0].mxu0
          %v1682 = vpop.f32.mrb[0].mxu0
          %v1683 = vadd.f32 %v1579, %v1682
          %v1684 = vpop.f32.mrb[0].mxu0
          %1685 = vmatprep.mubr.bf16.mxu0 0
          %1686 = vmatmul.mubr.bf16.gmra.mrb[0].mxu0 %v1553
          %v1687 = vpop.f32.mrb[0].mxu0
          %v1688 = vadd.f32 %v1579, %v1687
          %v1689 = vpop.f32.mrb[0].mxu0
          %v1690 = vpop.f32.mrb[0].mxu0
          %v1691 = vadd.f32 %v1579, %v1690
          %v1692 = vpop.f32.mrb[0].mxu0
          %1693 = vmatprep.mubr.bf16.mxu0 0
          %1694 = vmatmul.mubr.bf16.gmra.mrb[0].mxu0 %v1554
          %v1695 = vpop.f32.mrb[0].mxu0
          %v1696 = vadd.f32 %v1579, %v1695
          %v1697 = vpop.f32.mrb[0].mxu0
          %v1698 = vpop.f32.mrb[0].mxu0
          %v1699 = vadd.f32 %v1579, %v1698
          %v1700 = vpop.f32.mrb[0].mxu0
          %1701 = vmatprep.mubr.bf16.mxu0 0
          %1702 = vmatmul.mubr.bf16.gmra.mrb[0].mxu0 %v1555
          %v1703 = vpop.f32.mrb[0].mxu0
          %v1704 = vadd.f32 %v1579, %v1703
          %v1705 = vpop.f32.mrb[0].mxu0
          %v1706 = vpop.f32.mrb[0].mxu0
          %v1707 = vadd.f32 %v1579, %v1706
          %v1708 = vpop.f32.mrb[0].mxu0
          %1709 = vmatprep.mubr.bf16.mxu0 0
          %1710 = vmatmul.mubr.bf16.gmra.mrb[0].mxu0 %v1556
          %v1711 = vpop.f32.mrb[0].mxu0
          %v1712 = vadd.f32 %v1579, %v1711
          %v1713 = vpop.f32.mrb[0].mxu0
          %v1714 = vpop.f32.mrb[0].mxu0
          %v1715 = vadd.f32 %v1579, %v1714
          %v1716 = vpop.f32.mrb[0].mxu0
          %1717 = vmatprep.mubr.bf16.mxu0 0
          %1718 = vmatmul.mubr.bf16.gmra.mrb[0].mxu0 %v1557
          %v1719 = vpop.f32.mrb[0].mxu0
          %v1720 = vadd.f32 %v1579, %v1719
          %v1721 = vpop.f32.mrb[0].mxu0
          %v1722 = vpop.f32.mrb[0].mxu0
          %v1723 = vadd.f32 %v1579, %v1722
          %v1724 = vpop.f32.mrb[0].mxu0
          %1725 = vdwg.mxu0
          %v1726 = vpack.c.bf16 %v1667, %v1664
          %v1727 = vpack.c.bf16 %v1675, %v1672
          %v1728 = vpack.c.bf16 %v1683, %v1680
          %v1729 = vpack.c.bf16 %v1691, %v1688
          %v1730 = vpack.c.bf16 %v1699, %v1696
          %v1731 = vpack.c.bf16 %v1707, %v1704
          %v1732 = vpack.c.bf16 %v1715, %v1712
          %v1733 = vpack.c.bf16 %v1723, %v1720
          %v1742 = vunpack.c.l.b16 %v1726
          %v1743 = vunpack.c.h.b16 %v1726
          %v1744 = vunpack.c.l.b16 %v1727
          %v1745 = vunpack.c.h.b16 %v1727
          %v1746 = vunpack.c.l.b16 %v1728
          %v1747 = vunpack.c.h.b16 %v1728
          %v1748 = vunpack.c.l.b16 %v1729
          %v1749 = vunpack.c.h.b16 %v1729
          %v1750 = vunpack.c.l.b16 %v1730
          %v1751 = vunpack.c.h.b16 %v1730
          %v1752 = vunpack.c.l.b16 %v1731
          %v1753 = vunpack.c.h.b16 %v1731
          %v1754 = vunpack.c.l.b16 %v1732
          %v1755 = vunpack.c.h.b16 %v1732
          %v1756 = vunpack.c.l.b16 %v1733
          %v1757 = vunpack.c.h.b16 %v1733
          %v1758 = vpack.c.b16 %v1742, %v1742
          %v1759 = vpack.c.b16 %v1743, %v1743
          %v1760 = vpack.c.b16 %v1744, %v1744
          %v1761 = vpack.c.b16 %v1745, %v1745
          %v1762 = vpack.c.b16 %v1746, %v1746
          %v1763 = vpack.c.b16 %v1747, %v1747
          %v1764 = vpack.c.b16 %v1748, %v1748
          %v1765 = vpack.c.b16 %v1749, %v1749
          %v1766 = vpack.c.b16 %v1750, %v1750
          %v1767 = vpack.c.b16 %v1751, %v1751
          %v1768 = vpack.c.b16 %v1752, %v1752
          %v1769 = vpack.c.b16 %v1753, %v1753
          %v1770 = vpack.c.b16 %v1754, %v1754
          %v1771 = vpack.c.b16 %v1755, %v1755
          %v1772 = vpack.c.b16 %v1756, %v1756
          %v1773 = vpack.c.b16 %v1757, %v1757
          %1790 = vst [vmem:[%s456] sm:$0xf] %v1758
          %1791 = vst [vmem:[%s456 + $0x4] sm:$0xf] %v1759
          %1792 = vst [vmem:[%s456 + $0x8] sm:$0xf] %v1760
          %1793 = vst [vmem:[%s456 + $0xc] sm:$0xf] %v1761
          %1794 = vst [vmem:[%s456 + $0x10] sm:$0xf] %v1762
          %1795 = vst [vmem:[%s456 + $0x14] sm:$0xf] %v1763
          %1796 = vst [vmem:[%s456 + $0x18] sm:$0xf] %v1764
          %1797 = vst [vmem:[%s456 + $0x1c] sm:$0xf] %v1765
          %1798 = vst [vmem:[%s456 + $0x20] sm:$0xf] %v1766
          %1799 = vst [vmem:[%s456 + $0x24] sm:$0xf] %v1767
          %1800 = vst [vmem:[%s456 + $0x28] sm:$0xf] %v1768
          %1801 = vst [vmem:[%s456 + $0x2c] sm:$0xf] %v1769
          %1802 = vst [vmem:[%s456 + $0x30] sm:$0xf] %v1770
          %1803 = vst [vmem:[%s456 + $0x34] sm:$0xf] %v1771
          %1804 = vst [vmem:[%s456 + $0x38] sm:$0xf] %v1772
          %1805 = vst [vmem:[%s456 + $0x3c] sm:$0xf] %v1773
        $region123: #{position_attention_forward.3} parent=106 // pred_fallthru
          _
        %s1806 = smul.u32 16, %s21
        %p1807 = scmp.lt.s32.totalorder %s20, 1
        %s1808 = scalar_select %p1807, %s20, 1
        %p1809 = scmp.lt.s32.totalorder %s1806, 15
        %s1810 = scalar_select %p1809, %s1806, 15
        %s1811 = smul.addr %s1808, 16
        %s1812 = sadd.s32 %s1810, %s1811
        %s1813 = smul.addr %s1812, 4
        %s1814 = scalar_lea.vmem %s4, %s1813
        // Predicated region
        $region124: #{position_attention_forward.3} parent=106 // pred_check
          %p1815 = pneg %p152
        $region125: #{position_attention_forward.3} parent=106 // pred_check_branch
          %1817 = sbr.rel (%p1815) target = $region127
        $region126: #{position_attention_forward.3} parent=106 // pred_region
          %s1818 = smul.u32 16, %s21
        $region127: #{position_attention_forward.3} parent=106 // pred_fallthru
          _
      $region107: #{position_attention_forward.3} parent=5 // pred_fallthru
        _
      %p1819 = scmp.le.s32.totalorder 2, %s10
      // Predicated region
      $region128: #{position_attention_forward.3} parent=5 // pred_check
        %p1820 = pneg %p1819
      $region129: #{position_attention_forward.3} parent=5 // pred_check_branch
        %1822 = sbr.rel (%p1820) target = $region131
      $region130: #{position_attention_forward.3} parent=5 // pred_region
        %s1823 = ssub.s32 %s10, 2
        // Predicated region
        $region132: #{position_attention_forward.3} parent=130 // pred_check
          %p1824 = pneg %p158
        $region133: #{position_attention_forward.3} parent=130 // pred_check_branch
          %1826 = sbr.rel (%p1824) target = $region135
        $region134: #{position_attention_forward.3} parent=130 // pred_region
          %s1827 = smul.u32 16, %s24
          %p1828 = scmp.lt.s32.totalorder %s23, 1
          %s1829 = scalar_select %p1828, %s23, 1
          %p1830 = scmp.lt.s32.totalorder %s1827, 15
          %s1831 = scalar_select %p1830, %s1827, 15
          %s1832 = smul.addr %s1829, 16
          %s1833 = sadd.s32 %s1831, %s1832
          %s1834 = smul.addr %s1833, 4
          %s1835 = scalar_lea.vmem %s4, %s1834
        $region135: #{position_attention_forward.3} parent=130 // pred_fallthru
          _
      $region131: #{position_attention_forward.3} parent=5 // pred_fallthru
        _
    $region6: #{position_attention_forward.3} parent=1 // loop_footer
      %s14 = sadd.s32 1, %s10
    $region7: #{position_attention_forward.3} parent=1 // loop_footer_branch
      %9 = sbr.rel target = $region3
    $region8: #{position_attention_forward.3} parent=1 // loop_exit
      _

// kernel: position_attention_forward.2
$region0: #{position_attention_forward.2}
  #allocation0 [shape = 'u32[]', space=smem, size = 0x4, offset = 0x4, fixed_abs, tag = 'smem constant byte address 0x4 - core index']
  #allocation1 [shape = 'u32[144,128]{1,0:T(1,128)}', space=vmem, size = 0x12000, scoped, tag = 'internal scratch']
  %s0 = inlined_call_operand.vmem [shape: bf16[2,128,896], index: 0, kind: input, shape index: {}]
  %s1 = inlined_call_operand.vmem [shape: bf16[896,128], index: 1, kind: input, shape index: {}]
  %s2 = inlined_call_operand.vmem [shape: f32[1,128], index: 2, kind: input, shape index: {}]
  %s3 = inlined_call_operand.vmem [shape: bf16[128,384], index: 3, kind: input, shape index: {}]
  %s4 = inlined_call_operand.vmem [shape: f32[1,384], index: 4, kind: input, shape index: {}]
  %s5 = inlined_call_operand.vmem [shape: bf16[2,128,384], index: 5, kind: output, shape index: {}]
  %s6 = sld [smem:[#allocation0]]
  $region53: #{position_attention_forward.2} parent=0
    _
  %s8 = ssub.s32 1, %s6
  %s9 = scalar_select 0, %s8, %s6
  loop: start=0, step=1, limit=4
  $region2: #{position_attention_forward.2} parent=0 // loop_pre_header
    _
  $region3: #{position_attention_forward.2} parent=0 // loop_header
    %s11 = sphi 0, %s15
    %p12 = scmp.ge.s32.totalorder %s11, 4
    %s18 = sphi 0, %s30
    %s19 = sphi 0, %s26
    %s20 = sphi 0, %s18
    %s21 = sphi 0, %s19
    %s22 = sphi 0, %s20
    %s23 = sphi 0, %s21
    %s35 = sphi 0, %s37
    %s38 = sphi 0, %s35
    %s39 = sphi 0, %s38
    %s55 = sphi 0, %s39
    %s59 = sphi 0, %s59
    %s61 = sphi 0, %s59
    %s62 = sphi 0, %s61
    %s76 = sphi 0, %s62
    %s80 = sphi 0, %s80
    %s82 = sphi 0, %s80
    %s83 = sphi 0, %s82
    %s97 = sphi 0, %s83
    %s101 = sphi 0, %s101
    %s103 = sphi 0, %s101
    %s104 = sphi 0, %s103
    %s118 = sphi 0, %s104
    %s122 = sphi 0, %s122
    %s124 = sphi 0, %s122
    %s125 = sphi 0, %s124
    %s139 = sphi 0, %s125
    %s147 = sphi 0, %s149
    %s150 = sphi 0, %s147
    %s151 = sphi 0, %s150
    %s167 = sphi 0, %s151
  $region4: #{position_attention_forward.2} parent=0 // loop_header_branch
    %14 = sbr.rel (%p12) target = $region8
  $region5: #{position_attention_forward.2} parent=0 // loop_body
    %s16 = ssub.s32 %s11, 1
    %s17 = ssub.s32 %s11, 2
    %s24 = sadd.s32 1, %s19
    %p25 = scmp.ge.s32.totalorder %s24, 1
    %s26 = scalar_select %p25, 0, %s24
    %s27 = sadd.s32 1, %s18
    %s28 = scalar_select %p25, %s27, %s18
    %p29 = scmp.ge.s32.totalorder %s28, 2
    %s30 = scalar_select %p29, 0, %s28
    %s31 = ssub.s32 %s18, %s30
    %s32 = ssub.s32 %s19, %s26
    %s33 = sor.u32 %s31, %s32
    %p34 = scmp.eq.s32.totalorder %s33, 0
    %s36 = sadd.s32 %s35, 1
    %s37 = scalar_select %p34, %s35, %s36
    %p40 = pneg %p34
    %p41 = scmp.eq.s32.totalorder %s11, 1
    %p42 = por %p40, %p41
    %p43 = scmp.ne.s32.totalorder %s35, %s38
    %p44 = scmp.eq.s32.totalorder %s11, 0
    %p45 = por %p43, %p44
    %p46 = scmp.ne.s32.totalorder %s35, %s38
    %p47 = scmp.eq.s32.totalorder %s16, 1
    %p48 = por %p46, %p47
    %p49 = scmp.ne.s32.totalorder %s38, %s39
    %p50 = scmp.eq.s32.totalorder %s16, 0
    %p51 = por %p49, %p50
    %p52 = scmp.ne.s32.totalorder %s38, %s39
    %p53 = scmp.eq.s32.totalorder %s17, 1
    %p54 = por %p52, %p53
    %p56 = scmp.ne.s32.totalorder %s39, %s55
    %p57 = scmp.eq.s32.totalorder %s17, 0
    %p58 = por %p56, %p57
    %s60 = sadd.s32 %s59, 1
    %p63 = scmp.eq.s32.totalorder %s11, 1
    %p64 = scmp.ne.s32.totalorder %s59, %s61
    %p65 = scmp.eq.s32.totalorder %s11, 0
    %p66 = por %p64, %p65
    %p67 = scmp.ne.s32.totalorder %s59, %s61
    %p68 = scmp.eq.s32.totalorder %s16, 1
    %p69 = por %p67, %p68
    %p70 = scmp.ne.s32.totalorder %s61, %s62
    %p71 = scmp.eq.s32.totalorder %s16, 0
    %p72 = por %p70, %p71
    %p73 = scmp.ne.s32.totalorder %s61, %s62
    %p74 = scmp.eq.s32.totalorder %s17, 1
    %p75 = por %p73, %p74
    %p77 = scmp.ne.s32.totalorder %s62, %s76
    %p78 = scmp.eq.s32.totalorder %s17, 0
    %p79 = por %p77, %p78
    %s81 = sadd.s32 %s80, 1
    %p84 = scmp.eq.s32.totalorder %s11, 1
    %p85 = scmp.ne.s32.totalorder %s80, %s82
    %p86 = scmp.eq.s32.totalorder %s11, 0
    %p87 = por %p85, %p86
    %p88 = scmp.ne.s32.totalorder %s80, %s82
    %p89 = scmp.eq.s32.totalorder %s16, 1
    %p90 = por %p88, %p89
    %p91 = scmp.ne.s32.totalorder %s82, %s83
    %p92 = scmp.eq.s32.totalorder %s16, 0
    %p93 = por %p91, %p92
    %p94 = scmp.ne.s32.totalorder %s82, %s83
    %p95 = scmp.eq.s32.totalorder %s17, 1
    %p96 = por %p94, %p95
    %p98 = scmp.ne.s32.totalorder %s83, %s97
    %p99 = scmp.eq.s32.totalorder %s17, 0
    %p100 = por %p98, %p99
    %s102 = sadd.s32 %s101, 1
    %p105 = scmp.eq.s32.totalorder %s11, 1
    %p106 = scmp.ne.s32.totalorder %s101, %s103
    %p107 = scmp.eq.s32.totalorder %s11, 0
    %p108 = por %p106, %p107
    %p109 = scmp.ne.s32.totalorder %s101, %s103
    %p110 = scmp.eq.s32.totalorder %s16, 1
    %p111 = por %p109, %p110
    %p112 = scmp.ne.s32.totalorder %s103, %s104
    %p113 = scmp.eq.s32.totalorder %s16, 0
    %p114 = por %p112, %p113
    %p115 = scmp.ne.s32.totalorder %s103, %s104
    %p116 = scmp.eq.s32.totalorder %s17, 1
    %p117 = por %p115, %p116
    %p119 = scmp.ne.s32.totalorder %s104, %s118
    %p120 = scmp.eq.s32.totalorder %s17, 0
    %p121 = por %p119, %p120
    %s123 = sadd.s32 %s122, 1
    %p126 = scmp.eq.s32.totalorder %s11, 1
    %p127 = scmp.ne.s32.totalorder %s122, %s124
    %p128 = scmp.eq.s32.totalorder %s11, 0
    %p129 = por %p127, %p128
    %p130 = scmp.ne.s32.totalorder %s122, %s124
    %p131 = scmp.eq.s32.totalorder %s16, 1
    %p132 = por %p130, %p131
    %p133 = scmp.ne.s32.totalorder %s124, %s125
    %p134 = scmp.eq.s32.totalorder %s16, 0
    %p135 = por %p133, %p134
    %p136 = scmp.ne.s32.totalorder %s124, %s125
    %p137 = scmp.eq.s32.totalorder %s17, 1
    %p138 = por %p136, %p137
    %p140 = scmp.ne.s32.totalorder %s125, %s139
    %p141 = scmp.eq.s32.totalorder %s17, 0
    %p142 = por %p140, %p141
    %s143 = ssub.s32 %s18, %s30
    %s144 = ssub.s32 %s19, %s26
    %s145 = sor.u32 %s143, %s144
    %p146 = scmp.eq.s32.totalorder %s145, 0
    %s148 = sadd.s32 %s147, 1
    %s149 = scalar_select %p146, %s147, %s148
    %p152 = pneg %p146
    %p153 = scmp.eq.s32.totalorder %s11, 1
    %p154 = por %p152, %p153
    %p155 = scmp.ne.s32.totalorder %s147, %s150
    %p156 = scmp.eq.s32.totalorder %s11, 0
    %p157 = por %p155, %p156
    %p158 = scmp.ne.s32.totalorder %s147, %s150
    %p159 = scmp.eq.s32.totalorder %s16, 1
    %p160 = por %p158, %p159
    %p161 = scmp.ne.s32.totalorder %s150, %s151
    %p162 = scmp.eq.s32.totalorder %s16, 0
    %p163 = por %p161, %p162
    %p164 = scmp.ne.s32.totalorder %s150, %s151
    %p165 = scmp.eq.s32.totalorder %s17, 1
    %p166 = por %p164, %p165
    %p168 = scmp.ne.s32.totalorder %s151, %s167
    %p169 = scmp.eq.s32.totalorder %s17, 0
    %p170 = por %p168, %p169
    %p171 = scmp.le.s32.totalorder 1, %s11
    %p172 = scmp.lt.s32.totalorder %s11, 3
    %p173 = pnand %p171, %p172
    %p174 = pneg %p173
    // Predicated region
    $region9: #{position_attention_forward.2} parent=5 // pred_check
      _
    $region10: #{position_attention_forward.2} parent=5 // pred_check_branch
      %176 = sbr.rel (%p173) target = $region12
    $region11: #{position_attention_forward.2} parent=5 // pred_region
      %s177 = ssub.s32 %s11, 1
      // Predicated region
      $region13: #{position_attention_forward.2} parent=11 // pred_check
        %p178 = pneg %p72
      $region14: #{position_attention_forward.2} parent=11 // pred_check_branch
        %180 = sbr.rel (%p178) target = $region16
      $region15: #{position_attention_forward.2} parent=11 // pred_region
        _
      $region16: #{position_attention_forward.2} parent=11 // pred_fallthru
        _
      // Predicated region
      $region17: #{position_attention_forward.2} parent=11 // pred_check
        %p181 = pneg %p93
      $region18: #{position_attention_forward.2} parent=11 // pred_check_branch
        %183 = sbr.rel (%p181) target = $region20
      $region19: #{position_attention_forward.2} parent=11 // pred_region
        _
      $region20: #{position_attention_forward.2} parent=11 // pred_fallthru
        _
      // Predicated region
      $region21: #{position_attention_forward.2} parent=11 // pred_check
        %p184 = pneg %p114
      $region22: #{position_attention_forward.2} parent=11 // pred_check_branch
        %186 = sbr.rel (%p184) target = $region24
      $region23: #{position_attention_forward.2} parent=11 // pred_region
        _
      $region24: #{position_attention_forward.2} parent=11 // pred_fallthru
        _
      // Predicated region
      $region25: #{position_attention_forward.2} parent=11 // pred_check
        %p187 = pneg %p135
      $region26: #{position_attention_forward.2} parent=11 // pred_check_branch
        %189 = sbr.rel (%p187) target = $region28
      $region27: #{position_attention_forward.2} parent=11 // pred_region
        _
      $region28: #{position_attention_forward.2} parent=11 // pred_fallthru
        _
    $region12: #{position_attention_forward.2} parent=5 // pred_fallthru
      _
    %p190 = scmp.lt.s32.totalorder %s11, 2
    // Predicated region
    $region29: #{position_attention_forward.2} parent=5 // pred_check
      %p191 = pneg %p190
    $region30: #{position_attention_forward.2} parent=5 // pred_check_branch
      %193 = sbr.rel (%p191) target = $region32
    $region31: #{position_attention_forward.2} parent=5 // pred_region
      // Predicated region
      $region33: #{position_attention_forward.2} parent=31 // pred_check
        %p194 = pneg %p45
      $region34: #{position_attention_forward.2} parent=31 // pred_check_branch
        %196 = sbr.rel (%p194) target = $region36
      $region35: #{position_attention_forward.2} parent=31 // pred_region
        %s197 = smul.u32 16, %s19
        %p198 = scmp.lt.s32.totalorder %s18, 1
        %s199 = scalar_select %p198, %s18, 1
        %p200 = scmp.lt.s32.totalorder %s197, 15
        %s201 = scalar_select %p200, %s197, 15
        %s202 = smul.addr %s201, 7
        %s203 = smul.addr %s199, 112
        %s204 = sadd.s32 %s202, %s203
        %s205 = smul.addr %s204, 4
        %s206 = scalar_lea.vmem %s0, %s205
        %s207 = smul.u32 16, %s19
      $region36: #{position_attention_forward.2} parent=31 // pred_fallthru
        _
    $region32: #{position_attention_forward.2} parent=5 // pred_fallthru
      _
    %p208 = scmp.le.s32.totalorder 1, %s11
    %p209 = scmp.lt.s32.totalorder %s11, 3
    %p210 = pnand %p208, %p209
    %p211 = pneg %p210
    // Predicated region
    $region37: #{position_attention_forward.2} parent=5 // pred_check
      _
    $region38: #{position_attention_forward.2} parent=5 // pred_check_branch
      %213 = sbr.rel (%p210) target = $region40
    $region39: #{position_attention_forward.2} parent=5 // pred_region
      %s214 = ssub.s32 %s11, 1
      %s215 = smul.u32 16, %s21
      %p216 = scmp.lt.s32.totalorder %s20, 1
      %s217 = scalar_select %p216, %s20, 1
      %p218 = scmp.lt.s32.totalorder %s215, 15
      %s219 = scalar_select %p218, %s215, 15
      %s220 = smul.addr %s219, 7
      %s221 = smul.addr %s217, 112
      %s222 = sadd.s32 %s220, %s221
      %s223 = smul.addr %s222, 4
      %s224 = scalar_lea.vmem %s0, %s223
      %p225 = pneg %p51
      %p226 = pneg %p48
      %p227 = pneg %p72
      %p228 = pneg %p69
      %p229 = pneg %p93
      %p230 = pneg %p90
      %p231 = pneg %p114
      %p232 = pneg %p111
      %p233 = pneg %p135
      %p234 = pneg %p132
      %p235 = pneg %p163
      %p236 = pneg %p160
      %s237 = smul.u32 16, %s21
      %p238 = scmp.lt.s32.totalorder %s20, 1
      %s239 = scalar_select %p238, %s20, 1
      %p240 = scmp.lt.s32.totalorder %s237, 15
      %s241 = scalar_select %p240, %s237, 15
      %s242 = smul.addr %s241, 3
      %s243 = smul.addr %s239, 48
      %s244 = sadd.s32 %s242, %s243
      %s245 = smul.addr %s244, 4
      %s246 = scalar_lea.vmem %s5, %s245
      %s247 = smul.u32 16, %s21
      %p248 = scmp.lt.s32.totalorder %s20, 1
      %s249 = scalar_select %p248, %s20, 1
      %p250 = scmp.lt.s32.totalorder %s247, 15
      %s251 = scalar_select %p250, %s247, 15
      %s252 = smul.addr %s251, 7
      %s253 = smul.addr %s249, 112
      %s254 = sadd.s32 %s252, %s253
      %s255 = smul.addr %s254, 4
      %s256 = scalar_lea.vmem %s0, %s255
      %s257 = smul.u32 16, %s21
      %s258 = smul.u32 16, %s21
      %p259 = scmp.lt.s32.totalorder %s20, 1
      %s260 = scalar_select %p259, %s20, 1
      %p261 = scmp.lt.s32.totalorder %s258, 15
      %s262 = scalar_select %p261, %s258, 15
      %s263 = smul.addr %s262, 3
      %s264 = smul.addr %s260, 48
      %s265 = sadd.s32 %s263, %s264
      %s266 = smul.addr %s265, 4
      %s267 = scalar_lea.vmem %s5, %s266
      %s268 = smul.u32 16, %s21
      %v270 = vld [vmem:[%s256] sm:$0xff]
      %v271 = vld [vmem:[%s256 + $0x8] sm:$0xff]
      %v272 = vld [vmem:[%s256 + $0x10] sm:$0xff]
      %v273 = vld [vmem:[%s256 + $0x18] sm:$0xf]
      %v274 = vld [vmem:[%s256 + $0x1c] sm:$0xff]
      %v275 = vld [vmem:[%s256 + $0x24] sm:$0xff]
      %v276 = vld [vmem:[%s256 + $0x2c] sm:$0xff]
      %v277 = vld [vmem:[%s256 + $0x34] sm:$0xf]
      %v278 = vld [vmem:[%s256 + $0x38] sm:$0xff]
      %v279 = vld [vmem:[%s256 + $0x40] sm:$0xff]
      %v280 = vld [vmem:[%s256 + $0x48] sm:$0xff]
      %v281 = vld [vmem:[%s256 + $0x50] sm:$0xf]
      %v282 = vld [vmem:[%s256 + $0x54] sm:$0xff]
      %v283 = vld [vmem:[%s256 + $0x5c] sm:$0xff]
      %v284 = vld [vmem:[%s256 + $0x64] sm:$0xff]
      %v285 = vld [vmem:[%s256 + $0x6c] sm:$0xf]
      %v286 = vld [vmem:[%s256 + $0x70] sm:$0xff]
      %v287 = vld [vmem:[%s256 + $0x78] sm:$0xff]
      %v288 = vld [vmem:[%s256 + $0x80] sm:$0xff]
      %v289 = vld [vmem:[%s256 + $0x88] sm:$0xf]
      %v290 = vld [vmem:[%s256 + $0x8c] sm:$0xff]
      %v291 = vld [vmem:[%s256 + $0x94] sm:$0xff]
      %v292 = vld [vmem:[%s256 + $0x9c] sm:$0xff]
      %v293 = vld [vmem:[%s256 + $0xa4] sm:$0xf]
      %v294 = vld [vmem:[%s256 + $0xa8] sm:$0xff]
      %v295 = vld [vmem:[%s256 + $0xb0] sm:$0xff]
      %v296 = vld [vmem:[%s256 + $0xb8] sm:$0xff]
      %v297 = vld [vmem:[%s256 + $0xc0] sm:$0xf]
      %v298 = vld [vmem:[%s256 + $0xc4] sm:$0xff]
      %v299 = vld [vmem:[%s256 + $0xcc] sm:$0xff]
      %v300 = vld [vmem:[%s256 + $0xd4] sm:$0xff]
      %v301 = vld [vmem:[%s256 + $0xdc] sm:$0xf]
      %v302 = vld [vmem:[%s256 + $0xe0] sm:$0xff]
      %v303 = vld [vmem:[%s256 + $0xe8] sm:$0xff]
      %v304 = vld [vmem:[%s256 + $0xf0] sm:$0xff]
      %v305 = vld [vmem:[%s256 + $0xf8] sm:$0xf]
      %v306 = vld [vmem:[%s256 + $0xfc] sm:$0xff]
      %v307 = vld [vmem:[%s256 + $0x104] sm:$0xff]
      %v308 = vld [vmem:[%s256 + $0x10c] sm:$0xff]
      %v309 = vld [vmem:[%s256 + $0x114] sm:$0xf]
      %v310 = vld [vmem:[%s256 + $0x118] sm:$0xff]
      %v311 = vld [vmem:[%s256 + $0x120] sm:$0xff]
      %v312 = vld [vmem:[%s256 + $0x128] sm:$0xff]
      %v313 = vld [vmem:[%s256 + $0x130] sm:$0xf]
      %v314 = vld [vmem:[%s256 + $0x134] sm:$0xff]
      %v315 = vld [vmem:[%s256 + $0x13c] sm:$0xff]
      %v316 = vld [vmem:[%s256 + $0x144] sm:$0xff]
      %v317 = vld [vmem:[%s256 + $0x14c] sm:$0xf]
      %v318 = vld [vmem:[%s256 + $0x150] sm:$0xff]
      %v319 = vld [vmem:[%s256 + $0x158] sm:$0xff]
      %v320 = vld [vmem:[%s256 + $0x160] sm:$0xff]
      %v321 = vld [vmem:[%s256 + $0x168] sm:$0xf]
      %v322 = vld [vmem:[%s256 + $0x16c] sm:$0xff]
      %v323 = vld [vmem:[%s256 + $0x174] sm:$0xff]
      %v324 = vld [vmem:[%s256 + $0x17c] sm:$0xff]
      %v325 = vld [vmem:[%s256 + $0x184] sm:$0xf]
      %v326 = vld [vmem:[%s256 + $0x188] sm:$0xff]
      %v327 = vld [vmem:[%s256 + $0x190] sm:$0xff]
      %v328 = vld [vmem:[%s256 + $0x198] sm:$0xff]
      %v329 = vld [vmem:[%s256 + $0x1a0] sm:$0xf]
      %v330 = vld [vmem:[%s256 + $0x1a4] sm:$0xff]
      %v331 = vld [vmem:[%s256 + $0x1ac] sm:$0xff]
      %v332 = vld [vmem:[%s256 + $0x1b4] sm:$0xff]
      %v333 = vld [vmem:[%s256 + $0x1bc] sm:$0xf]
      %v334 = vld [vmem:[%s1] sm:$0xf]
      %v335 = vld [vmem:[%s1 + $0x4] sm:$0xf]
      %v336 = vld [vmem:[%s1 + $0x8] sm:$0xf]
      %v337 = vld [vmem:[%s1 + $0xc] sm:$0xf]
      %v338 = vld [vmem:[%s1 + $0x10] sm:$0xf]
      %v339 = vld [vmem:[%s1 + $0x14] sm:$0xf]
      %v340 = vld [vmem:[%s1 + $0x18] sm:$0xf]
      %v341 = vld [vmem:[%s1 + $0x1c] sm:$0xf]
      %v342 = vld [vmem:[%s1 + $0x20] sm:$0xf]
      %v343 = vld [vmem:[%s1 + $0x24] sm:$0xf]
      %v344 = vld [vmem:[%s1 + $0x28] sm:$0xf]
      %v345 = vld [vmem:[%s1 + $0x2c] sm:$0xf]
      %v346 = vld [vmem:[%s1 + $0x30] sm:$0xf]
      %v347 = vld [vmem:[%s1 + $0x34] sm:$0xf]
      %v348 = vld [vmem:[%s1 + $0x38] sm:$0xf]
      %v349 = vld [vmem:[%s1 + $0x3c] sm:$0xf]
      %v350 = vld [vmem:[%s1 + $0x40] sm:$0xf]
      %v351 = vld [vmem:[%s1 + $0x44] sm:$0xf]
      %v352 = vld [vmem:[%s1 + $0x48] sm:$0xf]
      %v353 = vld [vmem:[%s1 + $0x4c] sm:$0xf]
      %v354 = vld [vmem:[%s1 + $0x50] sm:$0xf]
      %v355 = vld [vmem:[%s1 + $0x54] sm:$0xf]
      %v356 = vld [vmem:[%s1 + $0x58] sm:$0xf]
      %v357 = vld [vmem:[%s1 + $0x5c] sm:$0xf]
      %v358 = vld [vmem:[%s1 + $0x60] sm:$0xf]
      %v359 = vld [vmem:[%s1 + $0x64] sm:$0xf]
      %v360 = vld [vmem:[%s1 + $0x68] sm:$0xf]
      %v361 = vld [vmem:[%s1 + $0x6c] sm:$0xf]
      %v362 = vld [vmem:[%s1 + $0x70] sm:$0xf]
      %v363 = vld [vmem:[%s1 + $0x74] sm:$0xf]
      %v364 = vld [vmem:[%s1 + $0x78] sm:$0xf]
      %v365 = vld [vmem:[%s1 + $0x7c] sm:$0xf]
      %v366 = vld [vmem:[%s1 + $0x80] sm:$0xf]
      %v367 = vld [vmem:[%s1 + $0x84] sm:$0xf]
      %v368 = vld [vmem:[%s1 + $0x88] sm:$0xf]
      %v369 = vld [vmem:[%s1 + $0x8c] sm:$0xf]
      %v370 = vld [vmem:[%s1 + $0x90] sm:$0xf]
      %v371 = vld [vmem:[%s1 + $0x94] sm:$0xf]
      %v372 = vld [vmem:[%s1 + $0x98] sm:$0xf]
      %v373 = vld [vmem:[%s1 + $0x9c] sm:$0xf]
      %v374 = vld [vmem:[%s1 + $0xa0] sm:$0xf]
      %v375 = vld [vmem:[%s1 + $0xa4] sm:$0xf]
      %v376 = vld [vmem:[%s1 + $0xa8] sm:$0xf]
      %v377 = vld [vmem:[%s1 + $0xac] sm:$0xf]
      %v378 = vld [vmem:[%s1 + $0xb0] sm:$0xf]
      %v379 = vld [vmem:[%s1 + $0xb4] sm:$0xf]
      %v380 = vld [vmem:[%s1 + $0xb8] sm:$0xf]
      %v381 = vld [vmem:[%s1 + $0xbc] sm:$0xf]
      %v382 = vld [vmem:[%s1 + $0xc0] sm:$0xf]
      %v383 = vld [vmem:[%s1 + $0xc4] sm:$0xf]
      %v384 = vld [vmem:[%s1 + $0xc8] sm:$0xf]
      %v385 = vld [vmem:[%s1 + $0xcc] sm:$0xf]
      %v386 = vld [vmem:[%s1 + $0xd0] sm:$0xf]
      %v387 = vld [vmem:[%s1 + $0xd4] sm:$0xf]
      %v388 = vld [vmem:[%s1 + $0xd8] sm:$0xf]
      %v389 = vld [vmem:[%s1 + $0xdc] sm:$0xf]
      %v390 = vld [vmem:[%s1 + $0xe0] sm:$0xf]
      %v391 = vld [vmem:[%s1 + $0xe4] sm:$0xf]
      %v392 = vld [vmem:[%s1 + $0xe8] sm:$0xf]
      %v393 = vld [vmem:[%s1 + $0xec] sm:$0xf]
      %v394 = vld [vmem:[%s1 + $0xf0] sm:$0xf]
      %v395 = vld [vmem:[%s1 + $0xf4] sm:$0xf]
      %v396 = vld [vmem:[%s1 + $0xf8] sm:$0xf]
      %v397 = vld [vmem:[%s1 + $0xfc] sm:$0xf]
      %v398 = vld [vmem:[%s1 + $0x100] sm:$0xf]
      %v399 = vld [vmem:[%s1 + $0x104] sm:$0xf]
      %v400 = vld [vmem:[%s1 + $0x108] sm:$0xf]
      %v401 = vld [vmem:[%s1 + $0x10c] sm:$0xf]
      %v402 = vld [vmem:[%s1 + $0x110] sm:$0xf]
      %v403 = vld [vmem:[%s1 + $0x114] sm:$0xf]
      %v404 = vld [vmem:[%s1 + $0x118] sm:$0xf]
      %v405 = vld [vmem:[%s1 + $0x11c] sm:$0xf]
      %v406 = vld [vmem:[%s1 + $0x120] sm:$0xf]
      %v407 = vld [vmem:[%s1 + $0x124] sm:$0xf]
      %v408 = vld [vmem:[%s1 + $0x128] sm:$0xf]
      %v409 = vld [vmem:[%s1 + $0x12c] sm:$0xf]
      %v410 = vld [vmem:[%s1 + $0x130] sm:$0xf]
      %v411 = vld [vmem:[%s1 + $0x134] sm:$0xf]
      %v412 = vld [vmem:[%s1 + $0x138] sm:$0xf]
      %v413 = vld [vmem:[%s1 + $0x13c] sm:$0xf]
      %v414 = vld [vmem:[%s1 + $0x140] sm:$0xf]
      %v415 = vld [vmem:[%s1 + $0x144] sm:$0xf]
      %v416 = vld [vmem:[%s1 + $0x148] sm:$0xf]
      %v417 = vld [vmem:[%s1 + $0x14c] sm:$0xf]
      %v418 = vld [vmem:[%s1 + $0x150] sm:$0xf]
      %v419 = vld [vmem:[%s1 + $0x154] sm:$0xf]
      %v420 = vld [vmem:[%s1 + $0x158] sm:$0xf]
      %v421 = vld [vmem:[%s1 + $0x15c] sm:$0xf]
      %v422 = vld [vmem:[%s1 + $0x160] sm:$0xf]
      %v423 = vld [vmem:[%s1 + $0x164] sm:$0xf]
      %v424 = vld [vmem:[%s1 + $0x168] sm:$0xf]
      %v425 = vld [vmem:[%s1 + $0x16c] sm:$0xf]
      %v426 = vld [vmem:[%s1 + $0x170] sm:$0xf]
      %v427 = vld [vmem:[%s1 + $0x174] sm:$0xf]
      %v428 = vld [vmem:[%s1 + $0x178] sm:$0xf]
      %v429 = vld [vmem:[%s1 + $0x17c] sm:$0xf]
      %v430 = vld [vmem:[%s1 + $0x180] sm:$0xf]
      %v431 = vld [vmem:[%s1 + $0x184] sm:$0xf]
      %v432 = vld [vmem:[%s1 + $0x188] sm:$0xf]
      %v433 = vld [vmem:[%s1 + $0x18c] sm:$0xf]
      %v434 = vld [vmem:[%s1 + $0x190] sm:$0xf]
      %v435 = vld [vmem:[%s1 + $0x194] sm:$0xf]
      %v436 = vld [vmem:[%s1 + $0x198] sm:$0xf]
      %v437 = vld [vmem:[%s1 + $0x19c] sm:$0xf]
      %v438 = vld [vmem:[%s1 + $0x1a0] sm:$0xf]
      %v439 = vld [vmem:[%s1 + $0x1a4] sm:$0xf]
      %v440 = vld [vmem:[%s1 + $0x1a8] sm:$0xf]
      %v441 = vld [vmem:[%s1 + $0x1ac] sm:$0xf]
      %v442 = vld [vmem:[%s1 + $0x1b0] sm:$0xf]
      %v443 = vld [vmem:[%s1 + $0x1b4] sm:$0xf]
      %v444 = vld [vmem:[%s1 + $0x1b8] sm:$0xf]
      %v445 = vld [vmem:[%s1 + $0x1bc] sm:$0xf]
      %v446 = vld [vmem:[%s2] sm:$0x1]
      %v448 = vlaneseq
      %v449 = vshrl.u32 %v448, 7
      %v450 = vsub.s32 0, %v449
      %v451 = vrot.slane %v446, %v450
      %v517 = vunpack.c.l.b16 %v270
      %v518 = vunpack.c.h.b16 %v270
      %v519 = vunpack.c.l.b16 %v271
      %v520 = vunpack.c.h.b16 %v271
      %v521 = vunpack.c.l.b16 %v272
      %v522 = vunpack.c.h.b16 %v272
      %v523 = vunpack.c.l.b16 %v273
      %v524 = vunpack.c.l.b16 %v274
      %v525 = vunpack.c.h.b16 %v274
      %v526 = vunpack.c.l.b16 %v275
      %v527 = vunpack.c.h.b16 %v275
      %v528 = vunpack.c.l.b16 %v276
      %v529 = vunpack.c.h.b16 %v276
      %v530 = vunpack.c.l.b16 %v277
      %v531 = vunpack.c.l.b16 %v278
      %v532 = vunpack.c.h.b16 %v278
      %v533 = vunpack.c.l.b16 %v279
      %v534 = vunpack.c.h.b16 %v279
      %v535 = vunpack.c.l.b16 %v280
      %v536 = vunpack.c.h.b16 %v280
      %v537 = vunpack.c.l.b16 %v281
      %v538 = vunpack.c.l.b16 %v282
      %v539 = vunpack.c.h.b16 %v282
      %v540 = vunpack.c.l.b16 %v283
      %v541 = vunpack.c.h.b16 %v283
      %v542 = vunpack.c.l.b16 %v284
      %v543 = vunpack.c.h.b16 %v284
      %v544 = vunpack.c.l.b16 %v285
      %v545 = vunpack.c.l.b16 %v286
      %v546 = vunpack.c.h.b16 %v286
      %v547 = vunpack.c.l.b16 %v287
      %v548 = vunpack.c.h.b16 %v287
      %v549 = vunpack.c.l.b16 %v288
      %v550 = vunpack.c.h.b16 %v288
      %v551 = vunpack.c.l.b16 %v289
      %v552 = vunpack.c.l.b16 %v290
      %v553 = vunpack.c.h.b16 %v290
      %v554 = vunpack.c.l.b16 %v291
      %v555 = vunpack.c.h.b16 %v291
      %v556 = vunpack.c.l.b16 %v292
      %v557 = vunpack.c.h.b16 %v292
      %v558 = vunpack.c.l.b16 %v293
      %v559 = vunpack.c.l.b16 %v294
      %v560 = vunpack.c.h.b16 %v294
      %v561 = vunpack.c.l.b16 %v295
      %v562 = vunpack.c.h.b16 %v295
      %v563 = vunpack.c.l.b16 %v296
      %v564 = vunpack.c.h.b16 %v296
      %v565 = vunpack.c.l.b16 %v297
      %v566 = vunpack.c.l.b16 %v298
      %v567 = vunpack.c.h.b16 %v298
      %v568 = vunpack.c.l.b16 %v299
      %v569 = vunpack.c.h.b16 %v299
      %v570 = vunpack.c.l.b16 %v300
      %v571 = vunpack.c.h.b16 %v300
      %v572 = vunpack.c.l.b16 %v301
      %v573 = vunpack.c.l.b16 %v302
      %v574 = vunpack.c.h.b16 %v302
      %v575 = vunpack.c.l.b16 %v303
      %v576 = vunpack.c.h.b16 %v303
      %v577 = vunpack.c.l.b16 %v304
      %v578 = vunpack.c.h.b16 %v304
      %v579 = vunpack.c.l.b16 %v305
      %v580 = vunpack.c.l.b16 %v306
      %v581 = vunpack.c.h.b16 %v306
      %v582 = vunpack.c.l.b16 %v307
      %v583 = vunpack.c.h.b16 %v307
      %v584 = vunpack.c.l.b16 %v308
      %v585 = vunpack.c.h.b16 %v308
      %v586 = vunpack.c.l.b16 %v309
      %v587 = vunpack.c.l.b16 %v310
      %v588 = vunpack.c.h.b16 %v310
      %v589 = vunpack.c.l.b16 %v311
      %v590 = vunpack.c.h.b16 %v311
      %v591 = vunpack.c.l.b16 %v312
      %v592 = vunpack.c.h.b16 %v312
      %v593 = vunpack.c.l.b16 %v313
      %v594 = vunpack.c.l.b16 %v314
      %v595 = vunpack.c.h.b16 %v314
      %v596 = vunpack.c.l.b16 %v315
      %v597 = vunpack.c.h.b16 %v315
      %v598 = vunpack.c.l.b16 %v316
      %v599 = vunpack.c.h.b16 %v316
      %v600 = vunpack.c.l.b16 %v317
      %v601 = vunpack.c.l.b16 %v318
      %v602 = vunpack.c.h.b16 %v318
      %v603 = vunpack.c.l.b16 %v319
      %v604 = vunpack.c.h.b16 %v319
      %v605 = vunpack.c.l.b16 %v320
      %v606 = vunpack.c.h.b16 %v320
      %v607 = vunpack.c.l.b16 %v321
      %v608 = vunpack.c.l.b16 %v322
      %v609 = vunpack.c.h.b16 %v322
      %v610 = vunpack.c.l.b16 %v323
      %v611 = vunpack.c.h.b16 %v323
      %v612 = vunpack.c.l.b16 %v324
      %v613 = vunpack.c.h.b16 %v324
      %v614 = vunpack.c.l.b16 %v325
      %v615 = vunpack.c.l.b16 %v326
      %v616 = vunpack.c.h.b16 %v326
      %v617 = vunpack.c.l.b16 %v327
      %v618 = vunpack.c.h.b16 %v327
      %v619 = vunpack.c.l.b16 %v328
      %v620 = vunpack.c.h.b16 %v328
      %v621 = vunpack.c.l.b16 %v329
      %v622 = vunpack.c.l.b16 %v330
      %v623 = vunpack.c.h.b16 %v330
      %v624 = vunpack.c.l.b16 %v331
      %v625 = vunpack.c.h.b16 %v331
      %v626 = vunpack.c.l.b16 %v332
      %v627 = vunpack.c.h.b16 %v332
      %v628 = vunpack.c.l.b16 %v333
      %v629 = vpack.c.b16 %v524, %v517
      %v630 = vpack.c.b16 %v525, %v518
      %v631 = vpack.c.b16 %v526, %v519
      %v632 = vpack.c.b16 %v527, %v520
      %v633 = vpack.c.b16 %v528, %v521
      %v634 = vpack.c.b16 %v529, %v522
      %v635 = vpack.c.b16 %v530, %v523
      %v636 = vpack.c.b16 %v538, %v531
      %v637 = vpack.c.b16 %v539, %v532
      %v638 = vpack.c.b16 %v540, %v533
      %v639 = vpack.c.b16 %v541, %v534
      %v640 = vpack.c.b16 %v542, %v535
      %v641 = vpack.c.b16 %v543, %v536
      %v642 = vpack.c.b16 %v544, %v537
      %v643 = vpack.c.b16 %v552, %v545
      %v644 = vpack.c.b16 %v553, %v546
      %v645 = vpack.c.b16 %v554, %v547
      %v646 = vpack.c.b16 %v555, %v548
      %v647 = vpack.c.b16 %v556, %v549
      %v648 = vpack.c.b16 %v557, %v550
      %v649 = vpack.c.b16 %v558, %v551
      %v650 = vpack.c.b16 %v566, %v559
      %v651 = vpack.c.b16 %v567, %v560
      %v652 = vpack.c.b16 %v568, %v561
      %v653 = vpack.c.b16 %v569, %v562
      %v654 = vpack.c.b16 %v570, %v563
      %v655 = vpack.c.b16 %v571, %v564
      %v656 = vpack.c.b16 %v572, %v565
      %v657 = vpack.c.b16 %v580, %v573
      %v658 = vpack.c.b16 %v581, %v574
      %v659 = vpack.c.b16 %v582, %v575
      %v660 = vpack.c.b16 %v583, %v576
      %v661 = vpack.c.b16 %v584, %v577
      %v662 = vpack.c.b16 %v585, %v578
      %v663 = vpack.c.b16 %v586, %v579
      %v664 = vpack.c.b16 %v594, %v587
      %v665 = vpack.c.b16 %v595, %v588
      %v666 = vpack.c.b16 %v596, %v589
      %v667 = vpack.c.b16 %v597, %v590
      %v668 = vpack.c.b16 %v598, %v591
      %v669 = vpack.c.b16 %v599, %v592
      %v670 = vpack.c.b16 %v600, %v593
      %v671 = vpack.c.b16 %v608, %v601
      %v672 = vpack.c.b16 %v609, %v602
      %v673 = vpack.c.b16 %v610, %v603
      %v674 = vpack.c.b16 %v611, %v604
      %v675 = vpack.c.b16 %v612, %v605
      %v676 = vpack.c.b16 %v613, %v606
      %v677 = vpack.c.b16 %v614, %v607
      %v678 = vpack.c.b16 %v622, %v615
      %v679 = vpack.c.b16 %v623, %v616
      %v680 = vpack.c.b16 %v624, %v617
      %v681 = vpack.c.b16 %v625, %v618
      %v682 = vpack.c.b16 %v626, %v619
      %v683 = vpack.c.b16 %v627, %v620
      %v684 = vpack.c.b16 %v628, %v621
      %v853 = vunpack.c.l.b16 %v334
      %v854 = vunpack.c.l.b16 %v335
      %v855 = vunpack.c.l.b16 %v336
      %v856 = vunpack.c.l.b16 %v337
      %v857 = vunpack.c.l.b16 %v338
      %v858 = vunpack.c.l.b16 %v339
      %v859 = vunpack.c.l.b16 %v340
      %v860 = vunpack.c.l.b16 %v341
      %v861 = vunpack.c.l.b16 %v342
      %v862 = vunpack.c.l.b16 %v343
      %v863 = vunpack.c.l.b16 %v344
      %v864 = vunpack.c.l.b16 %v345
      %v865 = vunpack.c.l.b16 %v346
      %v866 = vunpack.c.l.b16 %v347
      %v867 = vunpack.c.l.b16 %v348
      %v868 = vunpack.c.l.b16 %v349
      %v869 = vunpack.c.l.b16 %v350
      %v870 = vunpack.c.l.b16 %v351
      %v871 = vunpack.c.l.b16 %v352
      %v872 = vunpack.c.l.b16 %v353
      %v873 = vunpack.c.l.b16 %v354
      %v874 = vunpack.c.l.b16 %v355
      %v875 = vunpack.c.l.b16 %v356
      %v876 = vunpack.c.l.b16 %v357
      %v877 = vunpack.c.l.b16 %v358
      %v878 = vunpack.c.l.b16 %v359
      %v879 = vunpack.c.l.b16 %v360
      %v880 = vunpack.c.l.b16 %v361
      %v881 = vunpack.c.l.b16 %v362
      %v882 = vunpack.c.l.b16 %v363
      %v883 = vunpack.c.l.b16 %v364
      %v884 = vunpack.c.l.b16 %v365
      %v885 = vunpack.c.l.b16 %v366
      %v886 = vunpack.c.l.b16 %v367
      %v887 = vunpack.c.l.b16 %v368
      %v888 = vunpack.c.l.b16 %v369
      %v889 = vunpack.c.l.b16 %v370
      %v890 = vunpack.c.l.b16 %v371
      %v891 = vunpack.c.l.b16 %v372
      %v892 = vunpack.c.l.b16 %v373
      %v893 = vunpack.c.l.b16 %v374
      %v894 = vunpack.c.l.b16 %v375
      %v895 = vunpack.c.l.b16 %v376
      %v896 = vunpack.c.l.b16 %v377
      %v897 = vunpack.c.l.b16 %v378
      %v898 = vunpack.c.l.b16 %v379
      %v899 = vunpack.c.l.b16 %v380
      %v900 = vunpack.c.l.b16 %v381
      %v901 = vunpack.c.l.b16 %v382
      %v902 = vunpack.c.l.b16 %v383
      %v903 = vunpack.c.l.b16 %v384
      %v904 = vunpack.c.l.b16 %v385
      %v905 = vunpack.c.l.b16 %v386
      %v906 = vunpack.c.l.b16 %v387
      %v907 = vunpack.c.l.b16 %v388
      %v908 = vunpack.c.l.b16 %v389
      %v909 = vunpack.c.l.b16 %v390
      %v910 = vunpack.c.l.b16 %v391
      %v911 = vunpack.c.l.b16 %v392
      %v912 = vunpack.c.l.b16 %v393
      %v913 = vunpack.c.l.b16 %v394
      %v914 = vunpack.c.l.b16 %v395
      %v915 = vunpack.c.l.b16 %v396
      %v916 = vunpack.c.l.b16 %v397
      %v917 = vunpack.c.l.b16 %v398
      %v918 = vunpack.c.l.b16 %v399
      %v919 = vunpack.c.l.b16 %v400
      %v920 = vunpack.c.l.b16 %v401
      %v921 = vunpack.c.l.b16 %v402
      %v922 = vunpack.c.l.b16 %v403
      %v923 = vunpack.c.l.b16 %v404
      %v924 = vunpack.c.l.b16 %v405
      %v925 = vunpack.c.l.b16 %v406
      %v926 = vunpack.c.l.b16 %v407
      %v927 = vunpack.c.l.b16 %v408
      %v928 = vunpack.c.l.b16 %v409
      %v929 = vunpack.c.l.b16 %v410
      %v930 = vunpack.c.l.b16 %v411
      %v931 = vunpack.c.l.b16 %v412
      %v932 = vunpack.c.l.b16 %v413
      %v933 = vunpack.c.l.b16 %v414
      %v934 = vunpack.c.l.b16 %v415
      %v935 = vunpack.c.l.b16 %v416
      %v936 = vunpack.c.l.b16 %v417
      %v937 = vunpack.c.l.b16 %v418
      %v938 = vunpack.c.l.b16 %v419
      %v939 = vunpack.c.l.b16 %v420
      %v940 = vunpack.c.l.b16 %v421
      %v941 = vunpack.c.l.b16 %v422
      %v942 = vunpack.c.l.b16 %v423
      %v943 = vunpack.c.l.b16 %v424
      %v944 = vunpack.c.l.b16 %v425
      %v945 = vunpack.c.l.b16 %v426
      %v946 = vunpack.c.l.b16 %v427
      %v947 = vunpack.c.l.b16 %v428
      %v948 = vunpack.c.l.b16 %v429
      %v949 = vunpack.c.l.b16 %v430
      %v950 = vunpack.c.l.b16 %v431
      %v951 = vunpack.c.l.b16 %v432
      %v952 = vunpack.c.l.b16 %v433
      %v953 = vunpack.c.l.b16 %v434
      %v954 = vunpack.c.l.b16 %v435
      %v955 = vunpack.c.l.b16 %v436
      %v956 = vunpack.c.l.b16 %v437
      %v957 = vunpack.c.l.b16 %v438
      %v958 = vunpack.c.l.b16 %v439
      %v959 = vunpack.c.l.b16 %v440
      %v960 = vunpack.c.l.b16 %v441
      %v961 = vunpack.c.l.b16 %v442
      %v962 = vunpack.c.l.b16 %v443
      %v963 = vunpack.c.l.b16 %v444
      %v964 = vunpack.c.l.b16 %v445
      %v965 = vpack.c.b16 %v854, %v853
      %v966 = vpack.c.b16 %v856, %v855
      %v967 = vpack.c.b16 %v858, %v857
      %v968 = vpack.c.b16 %v860, %v859
      %v969 = vpack.c.b16 %v862, %v861
      %v970 = vpack.c.b16 %v864, %v863
      %v971 = vpack.c.b16 %v866, %v865
      %v972 = vpack.c.b16 %v868, %v867
      %v973 = vpack.c.b16 %v870, %v869
      %v974 = vpack.c.b16 %v872, %v871
      %v975 = vpack.c.b16 %v874, %v873
      %v976 = vpack.c.b16 %v876, %v875
      %v977 = vpack.c.b16 %v878, %v877
      %v978 = vpack.c.b16 %v880, %v879
      %v979 = vpack.c.b16 %v882, %v881
      %v980 = vpack.c.b16 %v884, %v883
      %v981 = vpack.c.b16 %v886, %v885
      %v982 = vpack.c.b16 %v888, %v887
      %v983 = vpack.c.b16 %v890, %v889
      %v984 = vpack.c.b16 %v892, %v891
      %v985 = vpack.c.b16 %v894, %v893
      %v986 = vpack.c.b16 %v896, %v895
      %v987 = vpack.c.b16 %v898, %v897
      %v988 = vpack.c.b16 %v900, %v899
      %v989 = vpack.c.b16 %v902, %v901
      %v990 = vpack.c.b16 %v904, %v903
      %v991 = vpack.c.b16 %v906, %v905
      %v992 = vpack.c.b16 %v908, %v907
      %v993 = vpack.c.b16 %v910, %v909
      %v994 = vpack.c.b16 %v912, %v911
      %v995 = vpack.c.b16 %v914, %v913
      %v996 = vpack.c.b16 %v916, %v915
      %v997 = vpack.c.b16 %v918, %v917
      %v998 = vpack.c.b16 %v920, %v919
      %v999 = vpack.c.b16 %v922, %v921
      %v1000 = vpack.c.b16 %v924, %v923
      %v1001 = vpack.c.b16 %v926, %v925
      %v1002 = vpack.c.b16 %v928, %v927
      %v1003 = vpack.c.b16 %v930, %v929
      %v1004 = vpack.c.b16 %v932, %v931
      %v1005 = vpack.c.b16 %v934, %v933
      %v1006 = vpack.c.b16 %v936, %v935
      %v1007 = vpack.c.b16 %v938, %v937
      %v1008 = vpack.c.b16 %v940, %v939
      %v1009 = vpack.c.b16 %v942, %v941
      %v1010 = vpack.c.b16 %v944, %v943
      %v1011 = vpack.c.b16 %v946, %v945
      %v1012 = vpack.c.b16 %v948, %v947
      %v1013 = vpack.c.b16 %v950, %v949
      %v1014 = vpack.c.b16 %v952, %v951
      %v1015 = vpack.c.b16 %v954, %v953
      %v1016 = vpack.c.b16 %v956, %v955
      %v1017 = vpack.c.b16 %v958, %v957
      %v1018 = vpack.c.b16 %v960, %v959
      %v1019 = vpack.c.b16 %v962, %v961
      %v1020 = vpack.c.b16 %v964, %v963
      %1077 = vmatprep.subr.bf16.mxu0 0
      %1078 = vmatpush1.bf16.msra.mxu0 %v965
      %1079 = vmatprep.subr.bf16.mxu0 0
      %1080 = vmatpush1.bf16.msra.mxu0 %v966
      %1081 = vmatprep.subr.bf16.mxu0 0
      %1082 = vmatpush1.bf16.msra.mxu0 %v967
      %1083 = vmatprep.subr.bf16.mxu0 0
      %1084 = vmatpush1.bf16.msra.mxu0 %v968
      %1085 = vmatprep.subr.bf16.mxu0 0
      %1086 = vmatpush1.bf16.msra.mxu0 %v969
      %1087 = vmatprep.subr.bf16.mxu0 0
      %1088 = vmatpush1.bf16.msra.mxu0 %v970
      %1089 = vmatprep.subr.bf16.mxu0 0
      %1090 = vmatpush1.bf16.msra.mxu0 %v971
      %1091 = vmatprep.subr.bf16.mxu0 0
      %1092 = vmatpush1.bf16.msra.mxu0 %v972
      %1093 = vmatprep.subr.bf16.mxu0 0
      %1094 = vmatpush1.bf16.msra.mxu0 %v973
      %1095 = vmatprep.subr.bf16.mxu0 0
      %1096 = vmatpush1.bf16.msra.mxu0 %v974
      %1097 = vmatprep.subr.bf16.mxu0 0
      %1098 = vmatpush1.bf16.msra.mxu0 %v975
      %1099 = vmatprep.subr.bf16.mxu0 0
      %1100 = vmatpush1.bf16.msra.mxu0 %v976
      %1101 = vmatprep.subr.bf16.mxu0 0
      %1102 = vmatpush1.bf16.msra.mxu0 %v977
      %1103 = vmatprep.subr.bf16.mxu0 0
      %1104 = vmatpush1.bf16.msra.mxu0 %v978
      %1105 = vmatprep.subr.bf16.mxu0 0
      %1106 = vmatpush1.bf16.msra.mxu0 %v979
      %1107 = vmatprep.subr.bf16.mxu0 0
      %1108 = vmatpush1.bf16.msra.mxu0 %v980
      %1109 = vmatprep.mubr.bf16.mxu0 %v630
      %1110 = vmatmul.mubr.bf16.gmra.mrb[0].mxu0 %v629
      %v1111 = vpop.f32.mrb[0].mxu0
      %v1112 = vadd.f32 %v451, %v1111
      %v1113 = vpop.f32.mrb[0].mxu0
      %v1114 = vpop.f32.mrb[0].mxu0
      %v1115 = vadd.f32 %v451, %v1114
      %v1116 = vpop.f32.mrb[0].mxu0
      %1117 = vmatprep.mubr.bf16.mxu0 %v637
      %1118 = vmatmul.mubr.bf16.gmra.mrb[0].mxu0 %v636
      %v1119 = vpop.f32.mrb[0].mxu0
      %v1120 = vadd.f32 %v451, %v1119
      %v1121 = vpop.f32.mrb[0].mxu0
      %v1122 = vpop.f32.mrb[0].mxu0
      %v1123 = vadd.f32 %v451, %v1122
      %v1124 = vpop.f32.mrb[0].mxu0
      %1125 = vmatprep.mubr.bf16.mxu0 %v644
      %1126 = vmatmul.mubr.bf16.gmra.mrb[0].mxu0 %v643
      %v1127 = vpop.f32.mrb[0].mxu0
      %v1128 = vadd.f32 %v451, %v1127
      %v1129 = vpop.f32.mrb[0].mxu0
      %v1130 = vpop.f32.mrb[0].mxu0
      %v1131 = vadd.f32 %v451, %v1130
      %v1132 = vpop.f32.mrb[0].mxu0
      %1133 = vmatprep.mubr.bf16.mxu0 %v651
      %1134 = vmatmul.mubr.bf16.gmra.mrb[0].mxu0 %v650
      %v1135 = vpop.f32.mrb[0].mxu0
      %v1136 = vadd.f32 %v451, %v1135
      %v1137 = vpop.f32.mrb[0].mxu0
      %v1138 = vpop.f32.mrb[0].mxu0
      %v1139 = vadd.f32 %v451, %v1138
      %v1140 = vpop.f32.mrb[0].mxu0
      %1141 = vmatprep.mubr.bf16.mxu0 %v658
      %1142 = vmatmul.mubr.bf16.gmra.mrb[0].mxu0 %v657
      %v1143 = vpop.f32.mrb[0].mxu0
      %v1144 = vadd.f32 %v451, %v1143
      %v1145 = vpop.f32.mrb[0].mxu0
      %v1146 = vpop.f32.mrb[0].mxu0
      %v1147 = vadd.f32 %v451, %v1146
      %v1148 = vpop.f32.mrb[0].mxu0
      %1149 = vmatprep.mubr.bf16.mxu0 %v665
      %1150 = vmatmul.mubr.bf16.gmra.mrb[0].mxu0 %v664
      %v1151 = vpop.f32.mrb[0].mxu0
      %v1152 = vadd.f32 %v451, %v1151
      %v1153 = vpop.f32.mrb[0].mxu0
      %v1154 = vpop.f32.mrb[0].mxu0
      %v1155 = vadd.f32 %v451, %v1154
      %v1156 = vpop.f32.mrb[0].mxu0
      %1157 = vmatprep.mubr.bf16.mxu0 %v672
      %1158 = vmatmul.mubr.bf16.gmra.mrb[0].mxu0 %v671
      %v1159 = vpop.f32.mrb[0].mxu0
      %v1160 = vadd.f32 %v451, %v1159
      %v1161 = vpop.f32.mrb[0].mxu0
      %v1162 = vpop.f32.mrb[0].mxu0
      %v1163 = vadd.f32 %v451, %v1162
      %v1164 = vpop.f32.mrb[0].mxu0
      %1165 = vmatprep.mubr.bf16.mxu0 %v679
      %1166 = vmatmul.mubr.bf16.gmra.mrb[0].mxu0 %v678
      %v1167 = vpop.f32.mrb[0].mxu0
      %v1168 = vadd.f32 %v451, %v1167
      %v1169 = vpop.f32.mrb[0].mxu0
      %v1170 = vpop.f32.mrb[0].mxu0
      %v1171 = vadd.f32 %v451, %v1170
      %v1172 = vpop.f32.mrb[0].mxu0
      %1173 = vdwg.mxu0
      %1174 = vmatprep.subr.bf16.mxu0 0
      %1175 = vmatpush1.bf16.msra.mxu0 %v981
      %1176 = vmatprep.subr.bf16.mxu0 0
      %1177 = vmatpush1.bf16.msra.mxu0 %v982
      %1178 = vmatprep.subr.bf16.mxu0 0
      %1179 = vmatpush1.bf16.msra.mxu0 %v983
      %1180 = vmatprep.subr.bf16.mxu0 0
      %1181 = vmatpush1.bf16.msra.mxu0 %v984
      %1182 = vmatprep.subr.bf16.mxu0 0
      %1183 = vmatpush1.bf16.msra.mxu0 %v985
      %1184 = vmatprep.subr.bf16.mxu0 0
      %1185 = vmatpush1.bf16.msra.mxu0 %v986
      %1186 = vmatprep.subr.bf16.mxu0 0
      %1187 = vmatpush1.bf16.msra.mxu0 %v987
      %1188 = vmatprep.subr.bf16.mxu0 0
      %1189 = vmatpush1.bf16.msra.mxu0 %v988
      %1190 = vmatprep.subr.bf16.mxu0 0
      %1191 = vmatpush1.bf16.msra.mxu0 %v989
      %1192 = vmatprep.subr.bf16.mxu0 0
      %1193 = vmatpush1.bf16.msra.mxu0 %v990
      %1194 = vmatprep.subr.bf16.mxu0 0
      %1195 = vmatpush1.bf16.msra.mxu0 %v991
      %1196 = vmatprep.subr.bf16.mxu0 0
      %1197 = vmatpush1.bf16.msra.mxu0 %v992
      %1198 = vmatprep.subr.bf16.mxu0 0
      %1199 = vmatpush1.bf16.msra.mxu0 %v993
      %1200 = vmatprep.subr.bf16.mxu0 0
      %1201 = vmatpush1.bf16.msra.mxu0 %v994
      %1202 = vmatprep.subr.bf16.mxu0 0
      %1203 = vmatpush1.bf16.msra.mxu0 %v995
      %1204 = vmatprep.subr.bf16.mxu0 0
      %1205 = vmatpush1.bf16.msra.mxu0 %v996
      %1206 = vmatprep.mubr.bf16.mxu0 %v632
      %1207 = vmatmul.mubr.bf16.gmra.mrb[0].mxu0 %v631
      %v1208 = vpop.f32.mrb[0].mxu0
      %v1209 = vadd.f32 %v1112, %v1208
      %v1210 = vpop.f32.mrb[0].mxu0
      %v1211 = vpop.f32.mrb[0].mxu0
      %v1212 = vadd.f32 %v1115, %v1211
      %v1213 = vpop.f32.mrb[0].mxu0
      %1214 = vmatprep.mubr.bf16.mxu0 %v639
      %1215 = vmatmul.mubr.bf16.gmra.mrb[0].mxu0 %v638
      %v1216 = vpop.f32.mrb[0].mxu0
      %v1217 = vadd.f32 %v1120, %v1216
      %v1218 = vpop.f32.mrb[0].mxu0
      %v1219 = vpop.f32.mrb[0].mxu0
      %v1220 = vadd.f32 %v1123, %v1219
      %v1221 = vpop.f32.mrb[0].mxu0
      %1222 = vmatprep.mubr.bf16.mxu0 %v646
      %1223 = vmatmul.mubr.bf16.gmra.mrb[0].mxu0 %v645
      %v1224 = vpop.f32.mrb[0].mxu0
      %v1225 = vadd.f32 %v1128, %v1224
      %v1226 = vpop.f32.mrb[0].mxu0
      %v1227 = vpop.f32.mrb[0].mxu0
      %v1228 = vadd.f32 %v1131, %v1227
      %v1229 = vpop.f32.mrb[0].mxu0
      %1230 = vmatprep.mubr.bf16.mxu0 %v653
      %1231 = vmatmul.mubr.bf16.gmra.mrb[0].mxu0 %v652
      %v1232 = vpop.f32.mrb[0].mxu0
      %v1233 = vadd.f32 %v1136, %v1232
      %v1234 = vpop.f32.mrb[0].mxu0
      %v1235 = vpop.f32.mrb[0].mxu0
      %v1236 = vadd.f32 %v1139, %v1235
      %v1237 = vpop.f32.mrb[0].mxu0
      %1238 = vmatprep.mubr.bf16.mxu0 %v660
      %1239 = vmatmul.mubr.bf16.gmra.mrb[0].mxu0 %v659
      %v1240 = vpop.f32.mrb[0].mxu0
      %v1241 = vadd.f32 %v1144, %v1240
      %v1242 = vpop.f32.mrb[0].mxu0
      %v1243 = vpop.f32.mrb[0].mxu0
      %v1244 = vadd.f32 %v1147, %v1243
      %v1245 = vpop.f32.mrb[0].mxu0
      %1246 = vmatprep.mubr.bf16.mxu0 %v667
      %1247 = vmatmul.mubr.bf16.gmra.mrb[0].mxu0 %v666
      %v1248 = vpop.f32.mrb[0].mxu0
      %v1249 = vadd.f32 %v1152, %v1248
      %v1250 = vpop.f32.mrb[0].mxu0
      %v1251 = vpop.f32.mrb[0].mxu0
      %v1252 = vadd.f32 %v1155, %v1251
      %v1253 = vpop.f32.mrb[0].mxu0
      %1254 = vmatprep.mubr.bf16.mxu0 %v674
      %1255 = vmatmul.mubr.bf16.gmra.mrb[0].mxu0 %v673
      %v1256 = vpop.f32.mrb[0].mxu0
      %v1257 = vadd.f32 %v1160, %v1256
      %v1258 = vpop.f32.mrb[0].mxu0
      %v1259 = vpop.f32.mrb[0].mxu0
      %v1260 = vadd.f32 %v1163, %v1259
      %v1261 = vpop.f32.mrb[0].mxu0
      %1262 = vmatprep.mubr.bf16.mxu0 %v681
      %1263 = vmatmul.mubr.bf16.gmra.mrb[0].mxu0 %v680
      %v1264 = vpop.f32.mrb[0].mxu0
      %v1265 = vadd.f32 %v1168, %v1264
      %v1266 = vpop.f32.mrb[0].mxu0
      %v1267 = vpop.f32.mrb[0].mxu0
      %v1268 = vadd.f32 %v1171, %v1267
      %v1269 = vpop.f32.mrb[0].mxu0
      %1270 = vdwg.mxu0
      %1271 = vmatprep.subr.bf16.mxu0 0
      %1272 = vmatpush1.bf16.msra.mxu0 %v997
      %1273 = vmatprep.subr.bf16.mxu0 0
      %1274 = vmatpush1.bf16.msra.mxu0 %v998
      %1275 = vmatprep.subr.bf16.mxu0 0
      %1276 = vmatpush1.bf16.msra.mxu0 %v999
      %1277 = vmatprep.subr.bf16.mxu0 0
      %1278 = vmatpush1.bf16.msra.mxu0 %v1000
      %1279 = vmatprep.subr.bf16.mxu0 0
      %1280 = vmatpush1.bf16.msra.mxu0 %v1001
      %1281 = vmatprep.subr.bf16.mxu0 0
      %1282 = vmatpush1.bf16.msra.mxu0 %v1002
      %1283 = vmatprep.subr.bf16.mxu0 0
      %1284 = vmatpush1.bf16.msra.mxu0 %v1003
      %1285 = vmatprep.subr.bf16.mxu0 0
      %1286 = vmatpush1.bf16.msra.mxu0 %v1004
      %1287 = vmatprep.subr.bf16.mxu0 0
      %1288 = vmatpush1.bf16.msra.mxu0 %v1005
      %1289 = vmatprep.subr.bf16.mxu0 0
      %1290 = vmatpush1.bf16.msra.mxu0 %v1006
      %1291 = vmatprep.subr.bf16.mxu0 0
      %1292 = vmatpush1.bf16.msra.mxu0 %v1007
      %1293 = vmatprep.subr.bf16.mxu0 0
      %1294 = vmatpush1.bf16.msra.mxu0 %v1008
      %1295 = vmatprep.subr.bf16.mxu0 0
      %1296 = vmatpush1.bf16.msra.mxu0 %v1009
      %1297 = vmatprep.subr.bf16.mxu0 0
      %1298 = vmatpush1.bf16.msra.mxu0 %v1010
      %1299 = vmatprep.subr.bf16.mxu0 0
      %1300 = vmatpush1.bf16.msra.mxu0 %v1011
      %1301 = vmatprep.subr.bf16.mxu0 0
      %1302 = vmatpush1.bf16.msra.mxu0 %v1012
      %1303 = vmatprep.mubr.bf16.mxu0 %v634
      %1304 = vmatmul.mubr.bf16.gmra.mrb[0].mxu0 %v633
      %v1305 = vpop.f32.mrb[0].mxu0
      %v1306 = vadd.f32 %v1209, %v1305
      %v1307 = vpop.f32.mrb[0].mxu0
      %v1308 = vpop.f32.mrb[0].mxu0
      %v1309 = vadd.f32 %v1212, %v1308
      %v1310 = vpop.f32.mrb[0].mxu0
      %1311 = vmatprep.mubr.bf16.mxu0 %v641
      %1312 = vmatmul.mubr.bf16.gmra.mrb[0].mxu0 %v640
      %v1313 = vpop.f32.mrb[0].mxu0
      %v1314 = vadd.f32 %v1217, %v1313
      %v1315 = vpop.f32.mrb[0].mxu0
      %v1316 = vpop.f32.mrb[0].mxu0
      %v1317 = vadd.f32 %v1220, %v1316
      %v1318 = vpop.f32.mrb[0].mxu0
      %1319 = vmatprep.mubr.bf16.mxu0 %v648
      %1320 = vmatmul.mubr.bf16.gmra.mrb[0].mxu0 %v647
      %v1321 = vpop.f32.mrb[0].mxu0
      %v1322 = vadd.f32 %v1225, %v1321
      %v1323 = vpop.f32.mrb[0].mxu0
      %v1324 = vpop.f32.mrb[0].mxu0
      %v1325 = vadd.f32 %v1228, %v1324
      %v1326 = vpop.f32.mrb[0].mxu0
      %1327 = vmatprep.mubr.bf16.mxu0 %v655
      %1328 = vmatmul.mubr.bf16.gmra.mrb[0].mxu0 %v654
      %v1329 = vpop.f32.mrb[0].mxu0
      %v1330 = vadd.f32 %v1233, %v1329
      %v1331 = vpop.f32.mrb[0].mxu0
      %v1332 = vpop.f32.mrb[0].mxu0
      %v1333 = vadd.f32 %v1236, %v1332
      %v1334 = vpop.f32.mrb[0].mxu0
      %1335 = vmatprep.mubr.bf16.mxu0 %v662
      %1336 = vmatmul.mubr.bf16.gmra.mrb[0].mxu0 %v661
      %v1337 = vpop.f32.mrb[0].mxu0
      %v1338 = vadd.f32 %v1241, %v1337
      %v1339 = vpop.f32.mrb[0].mxu0
      %v1340 = vpop.f32.mrb[0].mxu0
      %v1341 = vadd.f32 %v1244, %v1340
      %v1342 = vpop.f32.mrb[0].mxu0
      %1343 = vmatprep.mubr.bf16.mxu0 %v669
      %1344 = vmatmul.mubr.bf16.gmra.mrb[0].mxu0 %v668
      %v1345 = vpop.f32.mrb[0].mxu0
      %v1346 = vadd.f32 %v1249, %v1345
      %v1347 = vpop.f32.mrb[0].mxu0
      %v1348 = vpop.f32.mrb[0].mxu0
      %v1349 = vadd.f32 %v1252, %v1348
      %v1350 = vpop.f32.mrb[0].mxu0
      %1351 = vmatprep.mubr.bf16.mxu0 %v676
      %1352 = vmatmul.mubr.bf16.gmra.mrb[0].mxu0 %v675
      %v1353 = vpop.f32.mrb[0].mxu0
      %v1354 = vadd.f32 %v1257, %v1353
      %v1355 = vpop.f32.mrb[0].mxu0
      %v1356 = vpop.f32.mrb[0].mxu0
      %v1357 = vadd.f32 %v1260, %v1356
      %v1358 = vpop.f32.mrb[0].mxu0
      %1359 = vmatprep.mubr.bf16.mxu0 %v683
      %1360 = vmatmul.mubr.bf16.gmra.mrb[0].mxu0 %v682
      %v1361 = vpop.f32.mrb[0].mxu0
      %v1362 = vadd.f32 %v1265, %v1361
      %v1363 = vpop.f32.mrb[0].mxu0
      %v1364 = vpop.f32.mrb[0].mxu0
      %v1365 = vadd.f32 %v1268, %v1364
      %v1366 = vpop.f32.mrb[0].mxu0
      %1367 = vdwg.mxu0
      %1368 = vmatprep.subr.bf16.mxu0 0
      %1369 = vmatpush1.bf16.msra.mxu0 %v1013
      %1370 = vmatprep.subr.bf16.mxu0 0
      %1371 = vmatpush1.bf16.msra.mxu0 %v1014
      %1372 = vmatprep.subr.bf16.mxu0 0
      %1373 = vmatpush1.bf16.msra.mxu0 %v1015
      %1374 = vmatprep.subr.bf16.mxu0 0
      %1375 = vmatpush1.bf16.msra.mxu0 %v1016
      %1376 = vmatprep.subr.bf16.mxu0 0
      %1377 = vmatpush1.bf16.msra.mxu0 %v1017
      %1378 = vmatprep.subr.bf16.mxu0 0
      %1379 = vmatpush1.bf16.msra.mxu0 %v1018
      %1380 = vmatprep.subr.bf16.mxu0 0
      %1381 = vmatpush1.bf16.msra.mxu0 %v1019
      %1382 = vmatprep.subr.bf16.mxu0 0
      %1383 = vmatpush1.bf16.msra.mxu0 %v1020
      %1384 = vmatprep.subr.bf16.mxu0 0
      %1385 = vmatpush1.bf16.msra.mxu0 0
      %1386 = vmatprep.subr.bf16.mxu0 0
      %1387 = vmatpush1.bf16.msra.mxu0 0
      %1388 = vmatprep.subr.bf16.mxu0 0
      %1389 = vmatpush1.bf16.msra.mxu0 0
      %1390 = vmatprep.subr.bf16.mxu0 0
      %1391 = vmatpush1.bf16.msra.mxu0 0
      %1392 = vmatprep.subr.bf16.mxu0 0
      %1393 = vmatpush1.bf16.msra.mxu0 0
      %1394 = vmatprep.subr.bf16.mxu0 0
      %1395 = vmatpush1.bf16.msra.mxu0 0
      %1396 = vmatprep.subr.bf16.mxu0 0
      %1397 = vmatpush1.bf16.msra.mxu0 0
      %1398 = vmatprep.subr.bf16.mxu0 0
      %1399 = vmatpush1.bf16.msra.mxu0 0
      %1400 = vmatprep.mubr.bf16.mxu0 0
      %1401 = vmatmul.mubr.bf16.gmra.mrb[0].mxu0 %v635
      %v1402 = vpop.f32.mrb[0].mxu0
      %v1403 = vadd.f32 %v1306, %v1402
      %v1404 = vpop.f32.mrb[0].mxu0
      %v1405 = vpop.f32.mrb[0].mxu0
      %v1406 = vadd.f32 %v1309, %v1405
      %v1407 = vpop.f32.mrb[0].mxu0
      %1408 = vmatprep.mubr.bf16.mxu0 0
      %1409 = vmatmul.mubr.bf16.gmra.mrb[0].mxu0 %v642
      %v1410 = vpop.f32.mrb[0].mxu0
      %v1411 = vadd.f32 %v1314, %v1410
      %v1412 = vpop.f32.mrb[0].mxu0
      %v1413 = vpop.f32.mrb[0].mxu0
      %v1414 = vadd.f32 %v1317, %v1413
      %v1415 = vpop.f32.mrb[0].mxu0
      %1416 = vmatprep.mubr.bf16.mxu0 0
      %1417 = vmatmul.mubr.bf16.gmra.mrb[0].mxu0 %v649
      %v1418 = vpop.f32.mrb[0].mxu0
      %v1419 = vadd.f32 %v1322, %v1418
      %v1420 = vpop.f32.mrb[0].mxu0
      %v1421 = vpop.f32.mrb[0].mxu0
      %v1422 = vadd.f32 %v1325, %v1421
      %v1423 = vpop.f32.mrb[0].mxu0
      %1424 = vmatprep.mubr.bf16.mxu0 0
      %1425 = vmatmul.mubr.bf16.gmra.mrb[0].mxu0 %v656
      %v1426 = vpop.f32.mrb[0].mxu0
      %v1427 = vadd.f32 %v1330, %v1426
      %v1428 = vpop.f32.mrb[0].mxu0
      %v1429 = vpop.f32.mrb[0].mxu0
      %v1430 = vadd.f32 %v1333, %v1429
      %v1431 = vpop.f32.mrb[0].mxu0
      %1432 = vmatprep.mubr.bf16.mxu0 0
      %1433 = vmatmul.mubr.bf16.gmra.mrb[0].mxu0 %v663
      %v1434 = vpop.f32.mrb[0].mxu0
      %v1435 = vadd.f32 %v1338, %v1434
      %v1436 = vpop.f32.mrb[0].mxu0
      %v1437 = vpop.f32.mrb[0].mxu0
      %v1438 = vadd.f32 %v1341, %v1437
      %v1439 = vpop.f32.mrb[0].mxu0
      %1440 = vmatprep.mubr.bf16.mxu0 0
      %1441 = vmatmul.mubr.bf16.gmra.mrb[0].mxu0 %v670
      %v1442 = vpop.f32.mrb[0].mxu0
      %v1443 = vadd.f32 %v1346, %v1442
      %v1444 = vpop.f32.mrb[0].mxu0
      %v1445 = vpop.f32.mrb[0].mxu0
      %v1446 = vadd.f32 %v1349, %v1445
      %v1447 = vpop.f32.mrb[0].mxu0
      %1448 = vmatprep.mubr.bf16.mxu0 0
      %1449 = vmatmul.mubr.bf16.gmra.mrb[0].mxu0 %v677
      %v1450 = vpop.f32.mrb[0].mxu0
      %v1451 = vadd.f32 %v1354, %v1450
      %v1452 = vpop.f32.mrb[0].mxu0
      %v1453 = vpop.f32.mrb[0].mxu0
      %v1454 = vadd.f32 %v1357, %v1453
      %v1455 = vpop.f32.mrb[0].mxu0
      %1456 = vmatprep.mubr.bf16.mxu0 0
      %1457 = vmatmul.mubr.bf16.gmra.mrb[0].mxu0 %v684
      %v1458 = vpop.f32.mrb[0].mxu0
      %v1459 = vadd.f32 %v1362, %v1458
      %v1460 = vpop.f32.mrb[0].mxu0
      %v1461 = vpop.f32.mrb[0].mxu0
      %v1462 = vadd.f32 %v1365, %v1461
      %v1463 = vpop.f32.mrb[0].mxu0
      %1464 = vdwg.mxu0
      %v1465 = vpack.c.bf16 %v1406, %v1403
      %v1466 = vpack.c.bf16 %v1414, %v1411
      %v1467 = vpack.c.bf16 %v1422, %v1419
      %v1468 = vpack.c.bf16 %v1430, %v1427
      %v1469 = vpack.c.bf16 %v1438, %v1435
      %v1470 = vpack.c.bf16 %v1446, %v1443
      %v1471 = vpack.c.bf16 %v1454, %v1451
      %v1472 = vpack.c.bf16 %v1462, %v1459
      %v1473 = vld [vmem:[%s3] sm:$0xf]
      %v1474 = vld [vmem:[%s3 + $0xc] sm:$0xf]
      %v1475 = vld [vmem:[%s3 + $0x18] sm:$0xf]
      %v1476 = vld [vmem:[%s3 + $0x24] sm:$0xf]
      %v1477 = vld [vmem:[%s3 + $0x30] sm:$0xf]
      %v1478 = vld [vmem:[%s3 + $0x3c] sm:$0xf]
      %v1479 = vld [vmem:[%s3 + $0x48] sm:$0xf]
      %v1480 = vld [vmem:[%s3 + $0x54] sm:$0xf]
      %v1481 = vld [vmem:[%s3 + $0x60] sm:$0xf]
      %v1482 = vld [vmem:[%s3 + $0x6c] sm:$0xf]
      %v1483 = vld [vmem:[%s3 + $0x78] sm:$0xf]
      %v1484 = vld [vmem:[%s3 + $0x84] sm:$0xf]
      %v1485 = vld [vmem:[%s3 + $0x90] sm:$0xf]
      %v1486 = vld [vmem:[%s3 + $0x9c] sm:$0xf]
      %v1487 = vld [vmem:[%s3 + $0xa8] sm:$0xf]
      %v1488 = vld [vmem:[%s3 + $0xb4] sm:$0xf]
      %v1489 = vld [vmem:[%s4] sm:$0x1]
      %v1491 = vlaneseq
      %v1492 = vshrl.u32 %v1491, 7
      %v1493 = vsub.s32 0, %v1492
      %v1494 = vrot.slane %v1489, %v1493
      %v1512 = vunpack.c.l.b16 %v1473
      %v1513 = vunpack.c.l.b16 %v1474
      %v1514 = vunpack.c.l.b16 %v1475
      %v1515 = vunpack.c.l.b16 %v1476
      %v1516 = vunpack.c.l.b16 %v1477
      %v1517 = vunpack.c.l.b16 %v1478
      %v1518 = vunpack.c.l.b16 %v1479
      %v1519 = vunpack.c.l.b16 %v1480
      %v1520 = vunpack.c.l.b16 %v1481
      %v1521 = vunpack.c.l.b16 %v1482
      %v1522 = vunpack.c.l.b16 %v1483
      %v1523 = vunpack.c.l.b16 %v1484
      %v1524 = vunpack.c.l.b16 %v1485
      %v1525 = vunpack.c.l.b16 %v1486
      %v1526 = vunpack.c.l.b16 %v1487
      %v1527 = vunpack.c.l.b16 %v1488
      %v1528 = vpack.c.b16 %v1513, %v1512
      %v1529 = vpack.c.b16 %v1515, %v1514
      %v1530 = vpack.c.b16 %v1517, %v1516
      %v1531 = vpack.c.b16 %v1519, %v1518
      %v1532 = vpack.c.b16 %v1521, %v1520
      %v1533 = vpack.c.b16 %v1523, %v1522
      %v1534 = vpack.c.b16 %v1525, %v1524
      %v1535 = vpack.c.b16 %v1527, %v1526
      %1544 = vmatprep.subr.bf16.mxu0 0
      %1545 = vmatpush1.bf16.msra.mxu0 %v1528
      %1546 = vmatprep.subr.bf16.mxu0 0
      %1547 = vmatpush1.bf16.msra.mxu0 %v1529
      %1548 = vmatprep.subr.bf16.mxu0 0
      %1549 = vmatpush1.bf16.msra.mxu0 %v1530
      %1550 = vmatprep.subr.bf16.mxu0 0
      %1551 = vmatpush1.bf16.msra.mxu0 %v1531
      %1552 = vmatprep.subr.bf16.mxu0 0
      %1553 = vmatpush1.bf16.msra.mxu0 %v1532
      %1554 = vmatprep.subr.bf16.mxu0 0
      %1555 = vmatpush1.bf16.msra.mxu0 %v1533
      %1556 = vmatprep.subr.bf16.mxu0 0
      %1557 = vmatpush1.bf16.msra.mxu0 %v1534
      %1558 = vmatprep.subr.bf16.mxu0 0
      %1559 = vmatpush1.bf16.msra.mxu0 %v1535
      %1560 = vmatprep.subr.bf16.mxu0 0
      %1561 = vmatpush1.bf16.msra.mxu0 0
      %1562 = vmatprep.subr.bf16.mxu0 0
      %1563 = vmatpush1.bf16.msra.mxu0 0
      %1564 = vmatprep.subr.bf16.mxu0 0
      %1565 = vmatpush1.bf16.msra.mxu0 0
      %1566 = vmatprep.subr.bf16.mxu0 0
      %1567 = vmatpush1.bf16.msra.mxu0 0
      %1568 = vmatprep.subr.bf16.mxu0 0
      %1569 = vmatpush1.bf16.msra.mxu0 0
      %1570 = vmatprep.subr.bf16.mxu0 0
      %1571 = vmatpush1.bf16.msra.mxu0 0
      %1572 = vmatprep.subr.bf16.mxu0 0
      %1573 = vmatpush1.bf16.msra.mxu0 0
      %1574 = vmatprep.subr.bf16.mxu0 0
      %1575 = vmatpush1.bf16.msra.mxu0 0
      %1576 = vmatprep.mubr.bf16.mxu0 0
      %1577 = vmatmul.mubr.bf16.gmra.mrb[0].mxu0 %v1465
      %v1578 = vpop.f32.mrb[0].mxu0
      %v1579 = vadd.f32 %v1494, %v1578
      %v1580 = vpop.f32.mrb[0].mxu0
      %v1581 = vpop.f32.mrb[0].mxu0
      %v1582 = vadd.f32 %v1494, %v1581
      %v1583 = vpop.f32.mrb[0].mxu0
      %1584 = vmatprep.mubr.bf16.mxu0 0
      %1585 = vmatmul.mubr.bf16.gmra.mrb[0].mxu0 %v1466
      %v1586 = vpop.f32.mrb[0].mxu0
      %v1587 = vadd.f32 %v1494, %v1586
      %v1588 = vpop.f32.mrb[0].mxu0
      %v1589 = vpop.f32.mrb[0].mxu0
      %v1590 = vadd.f32 %v1494, %v1589
      %v1591 = vpop.f32.mrb[0].mxu0
      %1592 = vmatprep.mubr.bf16.mxu0 0
      %1593 = vmatmul.mubr.bf16.gmra.mrb[0].mxu0 %v1467
      %v1594 = vpop.f32.mrb[0].mxu0
      %v1595 = vadd.f32 %v1494, %v1594
      %v1596 = vpop.f32.mrb[0].mxu0
      %v1597 = vpop.f32.mrb[0].mxu0
      %v1598 = vadd.f32 %v1494, %v1597
      %v1599 = vpop.f32.mrb[0].mxu0
      %1600 = vmatprep.mubr.bf16.mxu0 0
      %1601 = vmatmul.mubr.bf16.gmra.mrb[0].mxu0 %v1468
      %v1602 = vpop.f32.mrb[0].mxu0
      %v1603 = vadd.f32 %v1494, %v1602
      %v1604 = vpop.f32.mrb[0].mxu0
      %v1605 = vpop.f32.mrb[0].mxu0
      %v1606 = vadd.f32 %v1494, %v1605
      %v1607 = vpop.f32.mrb[0].mxu0
      %1608 = vmatprep.mubr.bf16.mxu0 0
      %1609 = vmatmul.mubr.bf16.gmra.mrb[0].mxu0 %v1469
      %v1610 = vpop.f32.mrb[0].mxu0
      %v1611 = vadd.f32 %v1494, %v1610
      %v1612 = vpop.f32.mrb[0].mxu0
      %v1613 = vpop.f32.mrb[0].mxu0
      %v1614 = vadd.f32 %v1494, %v1613
      %v1615 = vpop.f32.mrb[0].mxu0
      %1616 = vmatprep.mubr.bf16.mxu0 0
      %1617 = vmatmul.mubr.bf16.gmra.mrb[0].mxu0 %v1470
      %v1618 = vpop.f32.mrb[0].mxu0
      %v1619 = vadd.f32 %v1494, %v1618
      %v1620 = vpop.f32.mrb[0].mxu0
      %v1621 = vpop.f32.mrb[0].mxu0
      %v1622 = vadd.f32 %v1494, %v1621
      %v1623 = vpop.f32.mrb[0].mxu0
      %1624 = vmatprep.mubr.bf16.mxu0 0
      %1625 = vmatmul.mubr.bf16.gmra.mrb[0].mxu0 %v1471
      %v1626 = vpop.f32.mrb[0].mxu0
      %v1627 = vadd.f32 %v1494, %v1626
      %v1628 = vpop.f32.mrb[0].mxu0
      %v1629 = vpop.f32.mrb[0].mxu0
      %v1630 = vadd.f32 %v1494, %v1629
      %v1631 = vpop.f32.mrb[0].mxu0
      %1632 = vmatprep.mubr.bf16.mxu0 0
      %1633 = vmatmul.mubr.bf16.gmra.mrb[0].mxu0 %v1472
      %v1634 = vpop.f32.mrb[0].mxu0
      %v1635 = vadd.f32 %v1494, %v1634
      %v1636 = vpop.f32.mrb[0].mxu0
      %v1637 = vpop.f32.mrb[0].mxu0
      %v1638 = vadd.f32 %v1494, %v1637
      %v1639 = vpop.f32.mrb[0].mxu0
      %1640 = vdwg.mxu0
      %v1641 = vpack.c.bf16 %v1582, %v1579
      %v1642 = vpack.c.bf16 %v1590, %v1587
      %v1643 = vpack.c.bf16 %v1598, %v1595
      %v1644 = vpack.c.bf16 %v1606, %v1603
      %v1645 = vpack.c.bf16 %v1614, %v1611
      %v1646 = vpack.c.bf16 %v1622, %v1619
      %v1647 = vpack.c.bf16 %v1630, %v1627
      %v1648 = vpack.c.bf16 %v1638, %v1635
      %v1657 = vunpack.c.l.b16 %v1641
      %v1658 = vunpack.c.h.b16 %v1641
      %v1659 = vunpack.c.l.b16 %v1642
      %v1660 = vunpack.c.h.b16 %v1642
      %v1661 = vunpack.c.l.b16 %v1643
      %v1662 = vunpack.c.h.b16 %v1643
      %v1663 = vunpack.c.l.b16 %v1644
      %v1664 = vunpack.c.h.b16 %v1644
      %v1665 = vunpack.c.l.b16 %v1645
      %v1666 = vunpack.c.h.b16 %v1645
      %v1667 = vunpack.c.l.b16 %v1646
      %v1668 = vunpack.c.h.b16 %v1646
      %v1669 = vunpack.c.l.b16 %v1647
      %v1670 = vunpack.c.h.b16 %v1647
      %v1671 = vunpack.c.l.b16 %v1648
      %v1672 = vunpack.c.h.b16 %v1648
      %v1673 = vpack.c.b16 %v1657, %v1657
      %v1674 = vpack.c.b16 %v1658, %v1658
      %v1675 = vpack.c.b16 %v1659, %v1659
      %v1676 = vpack.c.b16 %v1660, %v1660
      %v1677 = vpack.c.b16 %v1661, %v1661
      %v1678 = vpack.c.b16 %v1662, %v1662
      %v1679 = vpack.c.b16 %v1663, %v1663
      %v1680 = vpack.c.b16 %v1664, %v1664
      %v1681 = vpack.c.b16 %v1665, %v1665
      %v1682 = vpack.c.b16 %v1666, %v1666
      %v1683 = vpack.c.b16 %v1667, %v1667
      %v1684 = vpack.c.b16 %v1668, %v1668
      %v1685 = vpack.c.b16 %v1669, %v1669
      %v1686 = vpack.c.b16 %v1670, %v1670
      %v1687 = vpack.c.b16 %v1671, %v1671
      %v1688 = vpack.c.b16 %v1672, %v1672
      %1705 = vst [vmem:[%s267] sm:$0xf] %v1673
      %1706 = vst [vmem:[%s267 + $0xc] sm:$0xf] %v1674
      %1707 = vst [vmem:[%s267 + $0x18] sm:$0xf] %v1675
      %1708 = vst [vmem:[%s267 + $0x24] sm:$0xf] %v1676
      %1709 = vst [vmem:[%s267 + $0x30] sm:$0xf] %v1677
      %1710 = vst [vmem:[%s267 + $0x3c] sm:$0xf] %v1678
      %1711 = vst [vmem:[%s267 + $0x48] sm:$0xf] %v1679
      %1712 = vst [vmem:[%s267 + $0x54] sm:$0xf] %v1680
      %1713 = vst [vmem:[%s267 + $0x60] sm:$0xf] %v1681
      %1714 = vst [vmem:[%s267 + $0x6c] sm:$0xf] %v1682
      %1715 = vst [vmem:[%s267 + $0x78] sm:$0xf] %v1683
      %1716 = vst [vmem:[%s267 + $0x84] sm:$0xf] %v1684
      %1717 = vst [vmem:[%s267 + $0x90] sm:$0xf] %v1685
      %1718 = vst [vmem:[%s267 + $0x9c] sm:$0xf] %v1686
      %1719 = vst [vmem:[%s267 + $0xa8] sm:$0xf] %v1687
      %1720 = vst [vmem:[%s267 + $0xb4] sm:$0xf] %v1688
      %v1721 = vld [vmem:[%s3 + $0x4] sm:$0xf]
      %v1722 = vld [vmem:[%s3 + $0x10] sm:$0xf]
      %v1723 = vld [vmem:[%s3 + $0x1c] sm:$0xf]
      %v1724 = vld [vmem:[%s3 + $0x28] sm:$0xf]
      %v1725 = vld [vmem:[%s3 + $0x34] sm:$0xf]
      %v1726 = vld [vmem:[%s3 + $0x40] sm:$0xf]
      %v1727 = vld [vmem:[%s3 + $0x4c] sm:$0xf]
      %v1728 = vld [vmem:[%s3 + $0x58] sm:$0xf]
      %v1729 = vld [vmem:[%s3 + $0x64] sm:$0xf]
      %v1730 = vld [vmem:[%s3 + $0x70] sm:$0xf]
      %v1731 = vld [vmem:[%s3 + $0x7c] sm:$0xf]
      %v1732 = vld [vmem:[%s3 + $0x88] sm:$0xf]
      %v1733 = vld [vmem:[%s3 + $0x94] sm:$0xf]
      %v1734 = vld [vmem:[%s3 + $0xa0] sm:$0xf]
      %v1735 = vld [vmem:[%s3 + $0xac] sm:$0xf]
      %v1736 = vld [vmem:[%s3 + $0xb8] sm:$0xf]
      %v1737 = vld [vmem:[%s4 + $0x1] sm:$0x1]
      %v1739 = vlaneseq
      %v1740 = vshrl.u32 %v1739, 7
      %v1741 = vsub.s32 0, %v1740
      %v1742 = vrot.slane %v1737, %v1741
      %v1760 = vunpack.c.l.b16 %v1721
      %v1761 = vunpack.c.l.b16 %v1722
      %v1762 = vunpack.c.l.b16 %v1723
      %v1763 = vunpack.c.l.b16 %v1724
      %v1764 = vunpack.c.l.b16 %v1725
      %v1765 = vunpack.c.l.b16 %v1726
      %v1766 = vunpack.c.l.b16 %v1727
      %v1767 = vunpack.c.l.b16 %v1728
      %v1768 = vunpack.c.l.b16 %v1729
      %v1769 = vunpack.c.l.b16 %v1730
      %v1770 = vunpack.c.l.b16 %v1731
      %v1771 = vunpack.c.l.b16 %v1732
      %v1772 = vunpack.c.l.b16 %v1733
      %v1773 = vunpack.c.l.b16 %v1734
      %v1774 = vunpack.c.l.b16 %v1735
      %v1775 = vunpack.c.l.b16 %v1736
      %v1776 = vpack.c.b16 %v1761, %v1760
      %v1777 = vpack.c.b16 %v1763, %v1762
      %v1778 = vpack.c.b16 %v1765, %v1764
      %v1779 = vpack.c.b16 %v1767, %v1766
      %v1780 = vpack.c.b16 %v1769, %v1768
      %v1781 = vpack.c.b16 %v1771, %v1770
      %v1782 = vpack.c.b16 %v1773, %v1772
      %v1783 = vpack.c.b16 %v1775, %v1774
      %1792 = vmatprep.subr.bf16.mxu0 0
      %1793 = vmatpush1.bf16.msra.mxu0 %v1776
      %1794 = vmatprep.subr.bf16.mxu0 0
      %1795 = vmatpush1.bf16.msra.mxu0 %v1777
      %1796 = vmatprep.subr.bf16.mxu0 0
      %1797 = vmatpush1.bf16.msra.mxu0 %v1778
      %1798 = vmatprep.subr.bf16.mxu0 0
      %1799 = vmatpush1.bf16.msra.mxu0 %v1779
      %1800 = vmatprep.subr.bf16.mxu0 0
      %1801 = vmatpush1.bf16.msra.mxu0 %v1780
      %1802 = vmatprep.subr.bf16.mxu0 0
      %1803 = vmatpush1.bf16.msra.mxu0 %v1781
      %1804 = vmatprep.subr.bf16.mxu0 0
      %1805 = vmatpush1.bf16.msra.mxu0 %v1782
      %1806 = vmatprep.subr.bf16.mxu0 0
      %1807 = vmatpush1.bf16.msra.mxu0 %v1783
      %1808 = vmatprep.subr.bf16.mxu0 0
      %1809 = vmatpush1.bf16.msra.mxu0 0
      %1810 = vmatprep.subr.bf16.mxu0 0
      %1811 = vmatpush1.bf16.msra.mxu0 0
      %1812 = vmatprep.subr.bf16.mxu0 0
      %1813 = vmatpush1.bf16.msra.mxu0 0
      %1814 = vmatprep.subr.bf16.mxu0 0
      %1815 = vmatpush1.bf16.msra.mxu0 0
      %1816 = vmatprep.subr.bf16.mxu0 0
      %1817 = vmatpush1.bf16.msra.mxu0 0
      %1818 = vmatprep.subr.bf16.mxu0 0
      %1819 = vmatpush1.bf16.msra.mxu0 0
      %1820 = vmatprep.subr.bf16.mxu0 0
      %1821 = vmatpush1.bf16.msra.mxu0 0
      %1822 = vmatprep.subr.bf16.mxu0 0
      %1823 = vmatpush1.bf16.msra.mxu0 0
      %1824 = vmatprep.mubr.bf16.mxu0 0
      %1825 = vmatmul.mubr.bf16.gmra.mrb[0].mxu0 %v1465
      %v1826 = vpop.f32.mrb[0].mxu0
      %v1827 = vadd.f32 %v1742, %v1826
      %v1828 = vpop.f32.mrb[0].mxu0
      %v1829 = vpop.f32.mrb[0].mxu0
      %v1830 = vadd.f32 %v1742, %v1829
      %v1831 = vpop.f32.mrb[0].mxu0
      %1832 = vmatprep.mubr.bf16.mxu0 0
      %1833 = vmatmul.mubr.bf16.gmra.mrb[0].mxu0 %v1466
      %v1834 = vpop.f32.mrb[0].mxu0
      %v1835 = vadd.f32 %v1742, %v1834
      %v1836 = vpop.f32.mrb[0].mxu0
      %v1837 = vpop.f32.mrb[0].mxu0
      %v1838 = vadd.f32 %v1742, %v1837
      %v1839 = vpop.f32.mrb[0].mxu0
      %1840 = vmatprep.mubr.bf16.mxu0 0
      %1841 = vmatmul.mubr.bf16.gmra.mrb[0].mxu0 %v1467
      %v1842 = vpop.f32.mrb[0].mxu0
      %v1843 = vadd.f32 %v1742, %v1842
      %v1844 = vpop.f32.mrb[0].mxu0
      %v1845 = vpop.f32.mrb[0].mxu0
      %v1846 = vadd.f32 %v1742, %v1845
      %v1847 = vpop.f32.mrb[0].mxu0
      %1848 = vmatprep.mubr.bf16.mxu0 0
      %1849 = vmatmul.mubr.bf16.gmra.mrb[0].mxu0 %v1468
      %v1850 = vpop.f32.mrb[0].mxu0
      %v1851 = vadd.f32 %v1742, %v1850
      %v1852 = vpop.f32.mrb[0].mxu0
      %v1853 = vpop.f32.mrb[0].mxu0
      %v1854 = vadd.f32 %v1742, %v1853
      %v1855 = vpop.f32.mrb[0].mxu0
      %1856 = vmatprep.mubr.bf16.mxu0 0
      %1857 = vmatmul.mubr.bf16.gmra.mrb[0].mxu0 %v1469
      %v1858 = vpop.f32.mrb[0].mxu0
      %v1859 = vadd.f32 %v1742, %v1858
      %v1860 = vpop.f32.mrb[0].mxu0
      %v1861 = vpop.f32.mrb[0].mxu0
      %v1862 = vadd.f32 %v1742, %v1861
      %v1863 = vpop.f32.mrb[0].mxu0
      %1864 = vmatprep.mubr.bf16.mxu0 0
      %1865 = vmatmul.mubr.bf16.gmra.mrb[0].mxu0 %v1470
      %v1866 = vpop.f32.mrb[0].mxu0
      %v1867 = vadd.f32 %v1742, %v1866
      %v1868 = vpop.f32.mrb[0].mxu0
      %v1869 = vpop.f32.mrb[0].mxu0
      %v1870 = vadd.f32 %v1742, %v1869
      %v1871 = vpop.f32.mrb[0].mxu0
      %1872 = vmatprep.mubr.bf16.mxu0 0
      %1873 = vmatmul.mubr.bf16.gmra.mrb[0].mxu0 %v1471
      %v1874 = vpop.f32.mrb[0].mxu0
      %v1875 = vadd.f32 %v1742, %v1874
      %v1876 = vpop.f32.mrb[0].mxu0
      %v1877 = vpop.f32.mrb[0].mxu0
      %v1878 = vadd.f32 %v1742, %v1877
      %v1879 = vpop.f32.mrb[0].mxu0
      %1880 = vmatprep.mubr.bf16.mxu0 0
      %1881 = vmatmul.mubr.bf16.gmra.mrb[0].mxu0 %v1472
      %v1882 = vpop.f32.mrb[0].mxu0
      %v1883 = vadd.f32 %v1742, %v1882
      %v1884 = vpop.f32.mrb[0].mxu0
      %v1885 = vpop.f32.mrb[0].mxu0
      %v1886 = vadd.f32 %v1742, %v1885
      %v1887 = vpop.f32.mrb[0].mxu0
      %1888 = vdwg.mxu0
      %v1889 = vpack.c.bf16 %v1830, %v1827
      %v1890 = vpack.c.bf16 %v1838, %v1835
      %v1891 = vpack.c.bf16 %v1846, %v1843
      %v1892 = vpack.c.bf16 %v1854, %v1851
      %v1893 = vpack.c.bf16 %v1862, %v1859
      %v1894 = vpack.c.bf16 %v1870, %v1867
      %v1895 = vpack.c.bf16 %v1878, %v1875
      %v1896 = vpack.c.bf16 %v1886, %v1883
      %v1905 = vunpack.c.l.b16 %v1889
      %v1906 = vunpack.c.h.b16 %v1889
      %v1907 = vunpack.c.l.b16 %v1890
      %v1908 = vunpack.c.h.b16 %v1890
      %v1909 = vunpack.c.l.b16 %v1891
      %v1910 = vunpack.c.h.b16 %v1891
      %v1911 = vunpack.c.l.b16 %v1892
      %v1912 = vunpack.c.h.b16 %v1892
      %v1913 = vunpack.c.l.b16 %v1893
      %v1914 = vunpack.c.h.b16 %v1893
      %v1915 = vunpack.c.l.b16 %v1894
      %v1916 = vunpack.c.h.b16 %v1894
      %v1917 = vunpack.c.l.b16 %v1895
      %v1918 = vunpack.c.h.b16 %v1895
      %v1919 = vunpack.c.l.b16 %v1896
      %v1920 = vunpack.c.h.b16 %v1896
      %v1921 = vpack.c.b16 %v1905, %v1905
      %v1922 = vpack.c.b16 %v1906, %v1906
      %v1923 = vpack.c.b16 %v1907, %v1907
      %v1924 = vpack.c.b16 %v1908, %v1908
      %v1925 = vpack.c.b16 %v1909, %v1909
      %v1926 = vpack.c.b16 %v1910, %v1910
      %v1927 = vpack.c.b16 %v1911, %v1911
      %v1928 = vpack.c.b16 %v1912, %v1912
      %v1929 = vpack.c.b16 %v1913, %v1913
      %v1930 = vpack.c.b16 %v1914, %v1914
      %v1931 = vpack.c.b16 %v1915, %v1915
      %v1932 = vpack.c.b16 %v1916, %v1916
      %v1933 = vpack.c.b16 %v1917, %v1917
      %v1934 = vpack.c.b16 %v1918, %v1918
      %v1935 = vpack.c.b16 %v1919, %v1919
      %v1936 = vpack.c.b16 %v1920, %v1920
      %1953 = vst [vmem:[%s267 + $0x4] sm:$0xf] %v1921
      %1954 = vst [vmem:[%s267 + $0x10] sm:$0xf] %v1922
      %1955 = vst [vmem:[%s267 + $0x1c] sm:$0xf] %v1923
      %1956 = vst [vmem:[%s267 + $0x28] sm:$0xf] %v1924
      %1957 = vst [vmem:[%s267 + $0x34] sm:$0xf] %v1925
      %1958 = vst [vmem:[%s267 + $0x40] sm:$0xf] %v1926
      %1959 = vst [vmem:[%s267 + $0x4c] sm:$0xf] %v1927
      %1960 = vst [vmem:[%s267 + $0x58] sm:$0xf] %v1928
      %1961 = vst [vmem:[%s267 + $0x64] sm:$0xf] %v1929
      %1962 = vst [vmem:[%s267 + $0x70] sm:$0xf] %v1930
      %1963 = vst [vmem:[%s267 + $0x7c] sm:$0xf] %v1931
      %1964 = vst [vmem:[%s267 + $0x88] sm:$0xf] %v1932
      %1965 = vst [vmem:[%s267 + $0x94] sm:$0xf] %v1933
      %1966 = vst [vmem:[%s267 + $0xa0] sm:$0xf] %v1934
      %1967 = vst [vmem:[%s267 + $0xac] sm:$0xf] %v1935
      %1968 = vst [vmem:[%s267 + $0xb8] sm:$0xf] %v1936
      %v1969 = vld [vmem:[%s3 + $0x8] sm:$0xf]
      %v1970 = vld [vmem:[%s3 + $0x14] sm:$0xf]
      %v1971 = vld [vmem:[%s3 + $0x20] sm:$0xf]
      %v1972 = vld [vmem:[%s3 + $0x2c] sm:$0xf]
      %v1973 = vld [vmem:[%s3 + $0x38] sm:$0xf]
      %v1974 = vld [vmem:[%s3 + $0x44] sm:$0xf]
      %v1975 = vld [vmem:[%s3 + $0x50] sm:$0xf]
      %v1976 = vld [vmem:[%s3 + $0x5c] sm:$0xf]
      %v1977 = vld [vmem:[%s3 + $0x68] sm:$0xf]
      %v1978 = vld [vmem:[%s3 + $0x74] sm:$0xf]
      %v1979 = vld [vmem:[%s3 + $0x80] sm:$0xf]
      %v1980 = vld [vmem:[%s3 + $0x8c] sm:$0xf]
      %v1981 = vld [vmem:[%s3 + $0x98] sm:$0xf]
      %v1982 = vld [vmem:[%s3 + $0xa4] sm:$0xf]
      %v1983 = vld [vmem:[%s3 + $0xb0] sm:$0xf]
      %v1984 = vld [vmem:[%s3 + $0xbc] sm:$0xf]
      %v1985 = vld [vmem:[%s4 + $0x2] sm:$0x1]
      %v1987 = vlaneseq
      %v1988 = vshrl.u32 %v1987, 7
      %v1989 = vsub.s32 0, %v1988
      %v1990 = vrot.slane %v1985, %v1989
      %v2008 = vunpack.c.l.b16 %v1969
      %v2009 = vunpack.c.l.b16 %v1970
      %v2010 = vunpack.c.l.b16 %v1971
      %v2011 = vunpack.c.l.b16 %v1972
      %v2012 = vunpack.c.l.b16 %v1973
      %v2013 = vunpack.c.l.b16 %v1974
      %v2014 = vunpack.c.l.b16 %v1975
      %v2015 = vunpack.c.l.b16 %v1976
      %v2016 = vunpack.c.l.b16 %v1977
      %v2017 = vunpack.c.l.b16 %v1978
      %v2018 = vunpack.c.l.b16 %v1979
      %v2019 = vunpack.c.l.b16 %v1980
      %v2020 = vunpack.c.l.b16 %v1981
      %v2021 = vunpack.c.l.b16 %v1982
      %v2022 = vunpack.c.l.b16 %v1983
      %v2023 = vunpack.c.l.b16 %v1984
      %v2024 = vpack.c.b16 %v2009, %v2008
      %v2025 = vpack.c.b16 %v2011, %v2010
      %v2026 = vpack.c.b16 %v2013, %v2012
      %v2027 = vpack.c.b16 %v2015, %v2014
      %v2028 = vpack.c.b16 %v2017, %v2016
      %v2029 = vpack.c.b16 %v2019, %v2018
      %v2030 = vpack.c.b16 %v2021, %v2020
      %v2031 = vpack.c.b16 %v2023, %v2022
      %2040 = vmatprep.subr.bf16.mxu0 0
      %2041 = vmatpush1.bf16.msra.mxu0 %v2024
      %2042 = vmatprep.subr.bf16.mxu0 0
      %2043 = vmatpush1.bf16.msra.mxu0 %v2025
      %2044 = vmatprep.subr.bf16.mxu0 0
      %2045 = vmatpush1.bf16.msra.mxu0 %v2026
      %2046 = vmatprep.subr.bf16.mxu0 0
      %2047 = vmatpush1.bf16.msra.mxu0 %v2027
      %2048 = vmatprep.subr.bf16.mxu0 0
      %2049 = vmatpush1.bf16.msra.mxu0 %v2028
      %2050 = vmatprep.subr.bf16.mxu0 0
      %2051 = vmatpush1.bf16.msra.mxu0 %v2029
      %2052 = vmatprep.subr.bf16.mxu0 0
      %2053 = vmatpush1.bf16.msra.mxu0 %v2030
      %2054 = vmatprep.subr.bf16.mxu0 0
      %2055 = vmatpush1.bf16.msra.mxu0 %v2031
      %2056 = vmatprep.subr.bf16.mxu0 0
      %2057 = vmatpush1.bf16.msra.mxu0 0
      %2058 = vmatprep.subr.bf16.mxu0 0
      %2059 = vmatpush1.bf16.msra.mxu0 0
      %2060 = vmatprep.subr.bf16.mxu0 0
      %2061 = vmatpush1.bf16.msra.mxu0 0
      %2062 = vmatprep.subr.bf16.mxu0 0
      %2063 = vmatpush1.bf16.msra.mxu0 0
      %2064 = vmatprep.subr.bf16.mxu0 0
      %2065 = vmatpush1.bf16.msra.mxu0 0
      %2066 = vmatprep.subr.bf16.mxu0 0
      %2067 = vmatpush1.bf16.msra.mxu0 0
      %2068 = vmatprep.subr.bf16.mxu0 0
      %2069 = vmatpush1.bf16.msra.mxu0 0
      %2070 = vmatprep.subr.bf16.mxu0 0
      %2071 = vmatpush1.bf16.msra.mxu0 0
      %2072 = vmatprep.mubr.bf16.mxu0 0
      %2073 = vmatmul.mubr.bf16.gmra.mrb[0].mxu0 %v1465
      %v2074 = vpop.f32.mrb[0].mxu0
      %v2075 = vadd.f32 %v1990, %v2074
      %v2076 = vpop.f32.mrb[0].mxu0
      %v2077 = vpop.f32.mrb[0].mxu0
      %v2078 = vadd.f32 %v1990, %v2077
      %v2079 = vpop.f32.mrb[0].mxu0
      %2080 = vmatprep.mubr.bf16.mxu0 0
      %2081 = vmatmul.mubr.bf16.gmra.mrb[0].mxu0 %v1466
      %v2082 = vpop.f32.mrb[0].mxu0
      %v2083 = vadd.f32 %v1990, %v2082
      %v2084 = vpop.f32.mrb[0].mxu0
      %v2085 = vpop.f32.mrb[0].mxu0
      %v2086 = vadd.f32 %v1990, %v2085
      %v2087 = vpop.f32.mrb[0].mxu0
      %2088 = vmatprep.mubr.bf16.mxu0 0
      %2089 = vmatmul.mubr.bf16.gmra.mrb[0].mxu0 %v1467
      %v2090 = vpop.f32.mrb[0].mxu0
      %v2091 = vadd.f32 %v1990, %v2090
      %v2092 = vpop.f32.mrb[0].mxu0
      %v2093 = vpop.f32.mrb[0].mxu0
      %v2094 = vadd.f32 %v1990, %v2093
      %v2095 = vpop.f32.mrb[0].mxu0
      %2096 = vmatprep.mubr.bf16.mxu0 0
      %2097 = vmatmul.mubr.bf16.gmra.mrb[0].mxu0 %v1468
      %v2098 = vpop.f32.mrb[0].mxu0
      %v2099 = vadd.f32 %v1990, %v2098
      %v2100 = vpop.f32.mrb[0].mxu0
      %v2101 = vpop.f32.mrb[0].mxu0
      %v2102 = vadd.f32 %v1990, %v2101
      %v2103 = vpop.f32.mrb[0].mxu0
      %2104 = vmatprep.mubr.bf16.mxu0 0
      %2105 = vmatmul.mubr.bf16.gmra.mrb[0].mxu0 %v1469
      %v2106 = vpop.f32.mrb[0].mxu0
      %v2107 = vadd.f32 %v1990, %v2106
      %v2108 = vpop.f32.mrb[0].mxu0
      %v2109 = vpop.f32.mrb[0].mxu0
      %v2110 = vadd.f32 %v1990, %v2109
      %v2111 = vpop.f32.mrb[0].mxu0
      %2112 = vmatprep.mubr.bf16.mxu0 0
      %2113 = vmatmul.mubr.bf16.gmra.mrb[0].mxu0 %v1470
      %v2114 = vpop.f32.mrb[0].mxu0
      %v2115 = vadd.f32 %v1990, %v2114
      %v2116 = vpop.f32.mrb[0].mxu0
      %v2117 = vpop.f32.mrb[0].mxu0
      %v2118 = vadd.f32 %v1990, %v2117
      %v2119 = vpop.f32.mrb[0].mxu0
      %2120 = vmatprep.mubr.bf16.mxu0 0
      %2121 = vmatmul.mubr.bf16.gmra.mrb[0].mxu0 %v1471
      %v2122 = vpop.f32.mrb[0].mxu0
      %v2123 = vadd.f32 %v1990, %v2122
      %v2124 = vpop.f32.mrb[0].mxu0
      %v2125 = vpop.f32.mrb[0].mxu0
      %v2126 = vadd.f32 %v1990, %v2125
      %v2127 = vpop.f32.mrb[0].mxu0
      %2128 = vmatprep.mubr.bf16.mxu0 0
      %2129 = vmatmul.mubr.bf16.gmra.mrb[0].mxu0 %v1472
      %v2130 = vpop.f32.mrb[0].mxu0
      %v2131 = vadd.f32 %v1990, %v2130
      %v2132 = vpop.f32.mrb[0].mxu0
      %v2133 = vpop.f32.mrb[0].mxu0
      %v2134 = vadd.f32 %v1990, %v2133
      %v2135 = vpop.f32.mrb[0].mxu0
      %2136 = vdwg.mxu0
      %v2137 = vpack.c.bf16 %v2078, %v2075
      %v2138 = vpack.c.bf16 %v2086, %v2083
      %v2139 = vpack.c.bf16 %v2094, %v2091
      %v2140 = vpack.c.bf16 %v2102, %v2099
      %v2141 = vpack.c.bf16 %v2110, %v2107
      %v2142 = vpack.c.bf16 %v2118, %v2115
      %v2143 = vpack.c.bf16 %v2126, %v2123
      %v2144 = vpack.c.bf16 %v2134, %v2131
      %v2153 = vunpack.c.l.b16 %v2137
      %v2154 = vunpack.c.h.b16 %v2137
      %v2155 = vunpack.c.l.b16 %v2138
      %v2156 = vunpack.c.h.b16 %v2138
      %v2157 = vunpack.c.l.b16 %v2139
      %v2158 = vunpack.c.h.b16 %v2139
      %v2159 = vunpack.c.l.b16 %v2140
      %v2160 = vunpack.c.h.b16 %v2140
      %v2161 = vunpack.c.l.b16 %v2141
      %v2162 = vunpack.c.h.b16 %v2141
      %v2163 = vunpack.c.l.b16 %v2142
      %v2164 = vunpack.c.h.b16 %v2142
      %v2165 = vunpack.c.l.b16 %v2143
      %v2166 = vunpack.c.h.b16 %v2143
      %v2167 = vunpack.c.l.b16 %v2144
      %v2168 = vunpack.c.h.b16 %v2144
      %v2169 = vpack.c.b16 %v2153, %v2153
      %v2170 = vpack.c.b16 %v2154, %v2154
      %v2171 = vpack.c.b16 %v2155, %v2155
      %v2172 = vpack.c.b16 %v2156, %v2156
      %v2173 = vpack.c.b16 %v2157, %v2157
      %v2174 = vpack.c.b16 %v2158, %v2158
      %v2175 = vpack.c.b16 %v2159, %v2159
      %v2176 = vpack.c.b16 %v2160, %v2160
      %v2177 = vpack.c.b16 %v2161, %v2161
      %v2178 = vpack.c.b16 %v2162, %v2162
      %v2179 = vpack.c.b16 %v2163, %v2163
      %v2180 = vpack.c.b16 %v2164, %v2164
      %v2181 = vpack.c.b16 %v2165, %v2165
      %v2182 = vpack.c.b16 %v2166, %v2166
      %v2183 = vpack.c.b16 %v2167, %v2167
      %v2184 = vpack.c.b16 %v2168, %v2168
      %2201 = vst [vmem:[%s267 + $0x8] sm:$0xf] %v2169
      %2202 = vst [vmem:[%s267 + $0x14] sm:$0xf] %v2170
      %2203 = vst [vmem:[%s267 + $0x20] sm:$0xf] %v2171
      %2204 = vst [vmem:[%s267 + $0x2c] sm:$0xf] %v2172
      %2205 = vst [vmem:[%s267 + $0x38] sm:$0xf] %v2173
      %2206 = vst [vmem:[%s267 + $0x44] sm:$0xf] %v2174
      %2207 = vst [vmem:[%s267 + $0x50] sm:$0xf] %v2175
      %2208 = vst [vmem:[%s267 + $0x5c] sm:$0xf] %v2176
      %2209 = vst [vmem:[%s267 + $0x68] sm:$0xf] %v2177
      %2210 = vst [vmem:[%s267 + $0x74] sm:$0xf] %v2178
      %2211 = vst [vmem:[%s267 + $0x80] sm:$0xf] %v2179
      %2212 = vst [vmem:[%s267 + $0x8c] sm:$0xf] %v2180
      %2213 = vst [vmem:[%s267 + $0x98] sm:$0xf] %v2181
      %2214 = vst [vmem:[%s267 + $0xa4] sm:$0xf] %v2182
      %2215 = vst [vmem:[%s267 + $0xb0] sm:$0xf] %v2183
      %2216 = vst [vmem:[%s267 + $0xbc] sm:$0xf] %v2184
      %s2217 = smul.u32 16, %s21
      %p2218 = scmp.lt.s32.totalorder %s20, 1
      %s2219 = scalar_select %p2218, %s20, 1
      %p2220 = scmp.lt.s32.totalorder %s2217, 15
      %s2221 = scalar_select %p2220, %s2217, 15
      %s2222 = smul.addr %s2221, 3
      %s2223 = smul.addr %s2219, 48
      %s2224 = sadd.s32 %s2222, %s2223
      %s2225 = smul.addr %s2224, 4
      %s2226 = scalar_lea.vmem %s5, %s2225
      // Predicated region
      $region41: #{position_attention_forward.2} parent=39 // pred_check
        %p2227 = pneg %p160
      $region42: #{position_attention_forward.2} parent=39 // pred_check_branch
        %2229 = sbr.rel (%p2227) target = $region44
      $region43: #{position_attention_forward.2} parent=39 // pred_region
        %s2230 = smul.u32 16, %s21
      $region44: #{position_attention_forward.2} parent=39 // pred_fallthru
        _
    $region40: #{position_attention_forward.2} parent=5 // pred_fallthru
      _
    %p2231 = scmp.le.s32.totalorder 2, %s11
    // Predicated region
    $region45: #{position_attention_forward.2} parent=5 // pred_check
      %p2232 = pneg %p2231
    $region46: #{position_attention_forward.2} parent=5 // pred_check_branch
      %2234 = sbr.rel (%p2232) target = $region48
    $region47: #{position_attention_forward.2} parent=5 // pred_region
      %s2235 = ssub.s32 %s11, 2
      // Predicated region
      $region49: #{position_attention_forward.2} parent=47 // pred_check
        %p2236 = pneg %p166
      $region50: #{position_attention_forward.2} parent=47 // pred_check_branch
        %2238 = sbr.rel (%p2236) target = $region52
      $region51: #{position_attention_forward.2} parent=47 // pred_region
        %s2239 = smul.u32 16, %s23
        %p2240 = scmp.lt.s32.totalorder %s22, 1
        %s2241 = scalar_select %p2240, %s22, 1
        %p2242 = scmp.lt.s32.totalorder %s2239, 15
        %s2243 = scalar_select %p2242, %s2239, 15
        %s2244 = smul.addr %s2243, 3
        %s2245 = smul.addr %s2241, 48
        %s2246 = sadd.s32 %s2244, %s2245
        %s2247 = smul.addr %s2246, 4
        %s2248 = scalar_lea.vmem %s5, %s2247
      $region52: #{position_attention_forward.2} parent=47 // pred_fallthru
        _
    $region48: #{position_attention_forward.2} parent=5 // pred_fallthru
      _
  $region6: #{position_attention_forward.2} parent=0 // loop_footer
    %s15 = sadd.s32 1, %s11
  $region7: #{position_attention_forward.2} parent=0 // loop_footer_branch
    %10 = sbr.rel target = $region3
  $region8: #{position_attention_forward.2} parent=0 // loop_exit
    _

</llo_original>
